<compile_context>
chip_gen: v7x
topology: tpu7x:2x2x1
jax: 0.10.0
libtpu: 0.0.40
codegen_flags: <defaults>
</compile_context>

<pallas_src>
import math

import jax
import jax.numpy as jnp
from jax.experimental import pallas as pl
from jax.experimental.pallas import tpu as pltpu

D_MODEL = 32
N_HEADS = 4
D_FF = 64
N_LAYERS = 2
EPS = 1e-6


# ---------------------------------------------------------------------------
# fused decoder kernel (all layers + final norm)
# ---------------------------------------------------------------------------
def decoder_kernel(x_ref, mem_ref, smask_ref, tmask_ref,
                   wsqkv_ref, bsqkv_ref, wso_ref, bso_ref,
                   wcq_ref, bcq_ref, wckv_ref, bckv_ref, wco_ref, bco_ref,
                   w1_ref, b1_ref, w2_ref, b2_ref,
                   lng_ref, lnb_ref, fg_ref, fb_ref,
                   out_ref, xbuf_ref):
    layer = pl.program_id(0)
    batch, t_q, t_k = smask_ref.shape          # (B, Tq, Tk)
    d = x_ref.shape[-1]                        # D_MODEL
    dk = d // N_HEADS
    scale = 1.0 / math.sqrt(dk)

    # layer 0: bring the input activations into the resident VMEM scratch.
    @pl.when(layer == 0)
    def _():
        xbuf_ref[...] = x_ref[...]

    x = xbuf_ref[...]                          # (B*Tq, D)
    mem = mem_ref[...]                         # (B*Tk, D)
    smask = smask_ref[...] != 0                # (B, Tq, Tk) bool (True = attend)
    tmask = tmask_ref[...] != 0                # (B, Tq, Tq) bool

    lng = lng_ref[0]                           # (3, D) sublayer-norm gammas
    lnb = lnb_ref[0]                           # (3, D) sublayer-norm betas

    def layernorm(z, g, b):
        # Matches the PyTorch LayerNorm: unbiased std (ddof=1), divide by (std+eps).
        feat = z.shape[-1]
        mean = jnp.mean(z, axis=-1, keepdims=True)
        var = jnp.sum((z - mean) ** 2, axis=-1, keepdims=True) * (1.0 / (feat - 1))
        inv = pl.reciprocal(jnp.sqrt(var) + EPS, approx=True)
        return g * (z - mean) * inv + b

    def mha(q, k, v, mask, t_kv):
        # q: (B*Tq, D), k/v: (B*t_kv, D), mask: (B, Tq, t_kv) bool (False = masked)
        qb = q.reshape(batch, t_q, d)
        kb = k.reshape(batch, t_kv, d)
        vb = v.reshape(batch, t_kv, d)
        heads = []
        for h in range(N_HEADS):
            sl = slice(h * dk, (h + 1) * dk)
            s = jnp.einsum('bqd,bkd->bqk', qb[:, :, sl], kb[:, :, sl],
                           preferred_element_type=jnp.float32) * scale
            s = jnp.where(mask, s, -1e9)
            s = s - jnp.max(s, axis=-1, keepdims=True)
            p = jnp.exp(s)
            p = p * pl.reciprocal(jnp.sum(p, axis=-1, keepdims=True), approx=True)
            heads.append(jnp.einsum('bqk,bkd->bqd', p, vb[:, :, sl],
                                    preferred_element_type=jnp.float32))
        return jnp.concatenate(heads, axis=-1).reshape(batch * t_q, d)

    # sublayer 1: masked self-attention (pre-norm residual; dropout = identity)
    xn = layernorm(x, lng[0:1, :], lnb[0:1, :])
    qkv = jnp.dot(xn, wsqkv_ref[0], preferred_element_type=jnp.float32) + bsqkv_ref[0]
    attn = mha(qkv[:, 0:d], qkv[:, d:2 * d], qkv[:, 2 * d:3 * d], tmask, t_q)
    x = x + jnp.dot(attn, wso_ref[0], preferred_element_type=jnp.float32) + bso_ref[0]

    # sublayer 2: cross-attention over the encoder memory
    xn = layernorm(x, lng[1:2, :], lnb[1:2, :])
    q = jnp.dot(xn, wcq_ref[0], preferred_element_type=jnp.float32) + bcq_ref[0]
    kv = jnp.dot(mem, wckv_ref[0], preferred_element_type=jnp.float32) + bckv_ref[0]
    attn = mha(q, kv[:, 0:d], kv[:, d:2 * d], smask, t_k)
    x = x + jnp.dot(attn, wco_ref[0], preferred_element_type=jnp.float32) + bco_ref[0]

    # sublayer 3: position-wise feed-forward
    xn = layernorm(x, lng[2:3, :], lnb[2:3, :])
    h1 = jnp.maximum(
        jnp.dot(xn, w1_ref[0], preferred_element_type=jnp.float32) + b1_ref[0], 0.0)
    x = x + jnp.dot(h1, w2_ref[0], preferred_element_type=jnp.float32) + b2_ref[0]

    xbuf_ref[...] = x

    # last layer: fused final LayerNorm of Decoder + single HBM writeback.
    @pl.when(layer == pl.num_programs(0) - 1)
    def _():
        out_ref[...] = layernorm(x, fg_ref[...], fb_ref[...])


# ---------------------------------------------------------------------------
# wrapper
# ---------------------------------------------------------------------------
def decoder_forward(x, memory, src_mask, tgt_mask, params):
    B, Tq, D = x.shape
    Tk = memory.shape[1]
    assert D == D_MODEL
    L = params["w_sqkv"].shape[0]
    BT, BM = B * Tq, B * Tk

    # Collapse (B, Tq)/(B, Tk) into the matmul row dim; ship masks as int8.
    x2 = x.reshape(BT, D)
    mem2 = memory.reshape(BM, D)
    smask_i8 = (src_mask != 0).astype(jnp.int8)
    tmask_i8 = (tgt_mask != 0).astype(jnp.int8)

    grid_spec = pltpu.PrefetchScalarGridSpec(
        num_scalar_prefetch=0,
        grid=(L,),
        in_specs=[
            pl.BlockSpec((BT, D), lambda l: (0, 0)),           # x (layer 0 only)
            pl.BlockSpec((BM, D), lambda l: (0, 0)),           # memory
            pl.BlockSpec((B, Tq, Tk), lambda l: (0, 0, 0)),    # src_mask (int8)
            pl.BlockSpec((B, Tq, Tq), lambda l: (0, 0, 0)),    # tgt_mask (int8)
            pl.BlockSpec((1, D, 3 * D), lambda l: (l, 0, 0)),  # self-attn W_qkv
            pl.BlockSpec((1, 1, 3 * D), lambda l: (l, 0, 0)),  # self-attn b_qkv
            pl.BlockSpec((1, D, D), lambda l: (l, 0, 0)),      # self-attn W_o
            pl.BlockSpec((1, 1, D), lambda l: (l, 0, 0)),      # self-attn b_o
            pl.BlockSpec((1, D, D), lambda l: (l, 0, 0)),      # cross-attn W_q
            pl.BlockSpec((1, 1, D), lambda l: (l, 0, 0)),      # cross-attn b_q
            pl.BlockSpec((1, D, 2 * D), lambda l: (l, 0, 0)),  # cross-attn W_kv
            pl.BlockSpec((1, 1, 2 * D), lambda l: (l, 0, 0)),  # cross-attn b_kv
            pl.BlockSpec((1, D, D), lambda l: (l, 0, 0)),      # cross-attn W_o
            pl.BlockSpec((1, 1, D), lambda l: (l, 0, 0)),      # cross-attn b_o
            pl.BlockSpec((1, D, D_FF), lambda l: (l, 0, 0)),   # FFN W1
            pl.BlockSpec((1, 1, D_FF), lambda l: (l, 0, 0)),   # FFN b1
            pl.BlockSpec((1, D_FF, D), lambda l: (l, 0, 0)),   # FFN W2
            pl.BlockSpec((1, 1, D), lambda l: (l, 0, 0)),      # FFN b2
            pl.BlockSpec((1, 3, D), lambda l: (l, 0, 0)),      # sublayer LN gamma
            pl.BlockSpec((1, 3, D), lambda l: (l, 0, 0)),      # sublayer LN beta
            pl.BlockSpec((1, D), lambda l: (0, 0)),            # final LN gamma
            pl.BlockSpec((1, D), lambda l: (0, 0)),            # final LN beta
        ],
        out_specs=pl.BlockSpec((BT, D), lambda l: (0, 0)),     # resident across layers
        scratch_shapes=[pltpu.VMEM((BT, D), jnp.float32)],     # x kept in VMEM
    )

    out2 = pl.pallas_call(
        decoder_kernel,
        out_shape=jax.ShapeDtypeStruct((BT, D), jnp.float32),
        grid_spec=grid_spec,
        compiler_params=pltpu.CompilerParams(
            dimension_semantics=("arbitrary",)),               # layer axis is sequential
    )(x2, mem2, smask_i8, tmask_i8,
      params["w_sqkv"], params["b_sqkv"], params["w_so"], params["b_so"],
      params["w_cq"], params["b_cq"], params["w_ckv"], params["b_ckv"],
      params["w_co"], params["b_co"],
      params["w1"], params["b1"], params["w2"], params["b2"],
      params["ln_g"], params["ln_b"], params["fg"], params["fb"])

    return out2.reshape(B, Tq, D)


# ---------------------------------------------------------------------------
# deterministic parameter init (synthetic; no checkpoint load)
# weights stored as (in_features, out_features): y = x @ W + b
# ---------------------------------------------------------------------------
def init_params(key):
    ks = jax.random.split(key, 9)
    L, D, F = N_LAYERS, D_MODEL, D_FF

    def nrm(k, shape, s=0.05):
        return jax.random.normal(k, shape, jnp.float32) * s

    return dict(
        w_sqkv=nrm(ks[0], (L, D, 3 * D)),          # [Wq | Wk | Wv] (self-attn)
        b_sqkv=nrm(ks[1], (L, 1, 3 * D), 0.01),
        w_so=nrm(ks[2], (L, D, D)),
        b_so=jnp.zeros((L, 1, D), jnp.float32),
        w_cq=nrm(ks[3], (L, D, D)),                # cross-attn query
        b_cq=jnp.zeros((L, 1, D), jnp.float32),
        w_ckv=nrm(ks[4], (L, D, 2 * D)),           # [Wk | Wv] (cross-attn)
        b_ckv=nrm(ks[5], (L, 1, 2 * D), 0.01),
        w_co=nrm(ks[6], (L, D, D)),
        b_co=jnp.zeros((L, 1, D), jnp.float32),
        w1=nrm(ks[7], (L, D, F)),
        b1=jnp.zeros((L, 1, F), jnp.float32),
        w2=nrm(ks[8], (L, F, D)),
        b2=jnp.zeros((L, 1, D), jnp.float32),
        ln_g=jnp.ones((L, 3, D), jnp.float32),
        ln_b=jnp.zeros((L, 3, D), jnp.float32),
        fg=jnp.ones((1, D), jnp.float32),
        fb=jnp.zeros((1, D), jnp.float32),
    )


# ---------------------------------------------------------------------------
# pure-JAX reference (for correctness check)
# ---------------------------------------------------------------------------
def _ref_layernorm(z, g, b, eps=EPS):
    d = z.shape[-1]
    mean = jnp.mean(z, axis=-1, keepdims=True)
    var = jnp.sum((z - mean) ** 2, axis=-1, keepdims=True) / (d - 1)
    return g * (z - mean) / (jnp.sqrt(var) + eps) + b


def _ref_mha(q_in, kv_in, mask, wq, bq, wk, bk, wv, bv, wo, bo):
    B, Tq, D = q_in.shape
    dk = D // N_HEADS
    q = (q_in @ wq + bq).reshape(B, Tq, N_HEADS, dk).transpose(0, 2, 1, 3)
    k = (kv_in @ wk + bk).reshape(B, -1, N_HEADS, dk).transpose(0, 2, 1, 3)
    v = (kv_in @ wv + bv).reshape(B, -1, N_HEADS, dk).transpose(0, 2, 1, 3)
    s = jnp.einsum('bhqd,bhkd->bhqk', q, k) / math.sqrt(dk)
    s = jnp.where(mask[:, None] != 0, s, -1e9)
    p = jax.nn.softmax(s, axis=-1)
    o = jnp.einsum('bhqk,bhkd->bhqd', p, v).transpose(0, 2, 1, 3).reshape(B, Tq, D)
    return o @ wo + bo


def ref_decoder(x, memory, smask, tmask, p):
    D = D_MODEL
    for l in range(N_LAYERS):
        g, b = p["ln_g"][l], p["ln_b"][l]
        wqkv, bqkv = p["w_sqkv"][l], p["b_sqkv"][l]
        xn = _ref_layernorm(x, g[0], b[0])
        x = x + _ref_mha(xn, xn, tmask,
                         wqkv[:, 0:D], bqkv[:, 0:D],
                         wqkv[:, D:2 * D], bqkv[:, D:2 * D],
                         wqkv[:, 2 * D:3 * D], bqkv[:, 2 * D:3 * D],
                         p["w_so"][l], p["b_so"][l])
        wkv, bkv = p["w_ckv"][l], p["b_ckv"][l]
        xn = _ref_layernorm(x, g[1], b[1])
        x = x + _ref_mha(xn, memory, smask,
                         p["w_cq"][l], p["b_cq"][l],
                         wkv[:, 0:D], bkv[:, 0:D],
                         wkv[:, D:2 * D], bkv[:, D:2 * D],
                         p["w_co"][l], p["b_co"][l])
        xn = _ref_layernorm(x, g[2], b[2])
        h1 = jax.nn.relu(xn @ p["w1"][l] + p["b1"][l])
        x = x + h1 @ p["w2"][l] + p["b2"][l]
    return _ref_layernorm(x, p["fg"], p["fb"])


# ---------------------------------------------------------------------------
if __name__ == "__main__":
    key = jax.random.PRNGKey(0)
    kx, km, kp = jax.random.split(key, 3)

    B, Tq, Tk = 2, 8, 16
    x = jax.random.normal(kx, (B, Tq, D_MODEL), jnp.float32)
    memory = jax.random.normal(km, (B, Tk, D_MODEL), jnp.float32)
    # masks: nonzero = attend, 0 = masked (same convention as masked_fill(mask == 0, -1e9))
    tgt_mask = jnp.broadcast_to(jnp.tril(jnp.ones((Tq, Tq), jnp.float32)), (B, Tq, Tq))
    src_mask = jnp.ones((B, Tq, Tk), jnp.float32)

    params = init_params(kp)

    out = decoder_forward(x, memory, src_mask, tgt_mask, params)
    out = jax.block_until_ready(out)

    ref = ref_decoder(x, memory, src_mask, tgt_mask, params)
    assert out.shape == (B, Tq, D_MODEL), out.shape
    assert bool(jnp.all(jnp.isfinite(out)))
    if not jnp.allclose(out, ref, atol=1e-2, rtol=1e-2):
        raise AssertionError("Pallas decoder output does not match JAX reference")

    print("KERNEL_OK")
</pallas_src>

<mosaic_0001>
module attributes {stable_mosaic.version = 11 : i64} {
  func.func @decoder_kernel(%arg0: i32, %arg1: memref<16x32xf32, #tpu.memory_space<vmem>>, %arg2: memref<32x32xf32, #tpu.memory_space<vmem>>, %arg3: memref<2x8x16xi8, #tpu.memory_space<vmem>>, %arg4: memref<2x8x8xi8, #tpu.memory_space<vmem>>, %arg5: memref<1x32x96xf32, #tpu.memory_space<vmem>>, %arg6: memref<1x1x96xf32, #tpu.memory_space<vmem>>, %arg7: memref<1x32x32xf32, #tpu.memory_space<vmem>>, %arg8: memref<1x1x32xf32, #tpu.memory_space<vmem>>, %arg9: memref<1x32x32xf32, #tpu.memory_space<vmem>>, %arg10: memref<1x1x32xf32, #tpu.memory_space<vmem>>, %arg11: memref<1x32x64xf32, #tpu.memory_space<vmem>>, %arg12: memref<1x1x64xf32, #tpu.memory_space<vmem>>, %arg13: memref<1x32x32xf32, #tpu.memory_space<vmem>>, %arg14: memref<1x1x32xf32, #tpu.memory_space<vmem>>, %arg15: memref<1x32x64xf32, #tpu.memory_space<vmem>>, %arg16: memref<1x1x64xf32, #tpu.memory_space<vmem>>, %arg17: memref<1x64x32xf32, #tpu.memory_space<vmem>>, %arg18: memref<1x1x32xf32, #tpu.memory_space<vmem>>, %arg19: memref<1x3x32xf32, #tpu.memory_space<vmem>>, %arg20: memref<1x3x32xf32, #tpu.memory_space<vmem>>, %arg21: memref<1x32xf32, #tpu.memory_space<vmem>>, %arg22: memref<1x32xf32, #tpu.memory_space<vmem>>, %arg23: memref<16x32xf32, #tpu.memory_space<vmem>>, %arg24: memref<16x32xf32, #tpu.memory_space<vmem>>) attributes {dimension_semantics = [#tpu.dimension_semantics<arbitrary>], iteration_bounds = array<i64: 2>, scalar_prefetch = 0 : i64, scratch_operands = 1 : i64, tpu.core_type = #tpu.core_type<tc>, window_params = [{pipeline_mode = #tpu.pipeline_mode<synchronous>, transform_indices = @transform_0, window_bounds = array<i64: 16, 32>}, {pipeline_mode = #tpu.pipeline_mode<synchronous>, transform_indices = @transform_1, window_bounds = array<i64: 32, 32>}, {pipeline_mode = #tpu.pipeline_mode<synchronous>, transform_indices = @transform_2, window_bounds = array<i64: 2, 8, 16>}, {pipeline_mode = #tpu.pipeline_mode<synchronous>, transform_indices = @transform_3, window_bounds = array<i64: 2, 8, 8>}, {transform_indices = @transform_4, window_bounds = array<i64: 1, 32, 96>}, {transform_indices = @transform_5, window_bounds = array<i64: 1, 1, 96>}, {transform_indices = @transform_6, window_bounds = array<i64: 1, 32, 32>}, {transform_indices = @transform_7, window_bounds = array<i64: 1, 1, 32>}, {transform_indices = @transform_8, window_bounds = array<i64: 1, 32, 32>}, {transform_indices = @transform_9, window_bounds = array<i64: 1, 1, 32>}, {transform_indices = @transform_10, window_bounds = array<i64: 1, 32, 64>}, {transform_indices = @transform_11, window_bounds = array<i64: 1, 1, 64>}, {transform_indices = @transform_12, window_bounds = array<i64: 1, 32, 32>}, {transform_indices = @transform_13, window_bounds = array<i64: 1, 1, 32>}, {transform_indices = @transform_14, window_bounds = array<i64: 1, 32, 64>}, {transform_indices = @transform_15, window_bounds = array<i64: 1, 1, 64>}, {transform_indices = @transform_16, window_bounds = array<i64: 1, 64, 32>}, {transform_indices = @transform_17, window_bounds = array<i64: 1, 1, 32>}, {transform_indices = @transform_18, window_bounds = array<i64: 1, 3, 32>}, {transform_indices = @transform_19, window_bounds = array<i64: 1, 3, 32>}, {pipeline_mode = #tpu.pipeline_mode<synchronous>, transform_indices = @transform_20, window_bounds = array<i64: 1, 32>}, {pipeline_mode = #tpu.pipeline_mode<synchronous>, transform_indices = @transform_21, window_bounds = array<i64: 1, 32>}, {pipeline_mode = #tpu.pipeline_mode<synchronous>, transform_indices = @transform_22, window_bounds = array<i64: 16, 32>}]} {
    %c0_i32 = arith.constant 0 : i32
    %0 = arith.cmpi eq, %arg0, %c0_i32 : i32
    %1 = arith.extui %0 : i1 to i32
    %c0_i32_0 = arith.constant 0 : i32
    %2 = arith.cmpi ne, %1, %c0_i32_0 : i32
    scf.if %2 {
      %c0_132 = arith.constant 0 : index
      %c0_133 = arith.constant 0 : index
      %315 = vector.load %arg1[%c0_132, %c0_133] : memref<16x32xf32, #tpu.memory_space<vmem>>, vector<16x32xf32>
      %c0_134 = arith.constant 0 : index
      %c0_135 = arith.constant 0 : index
      %316 = vector.load %arg24[%c0_134, %c0_135] : memref<16x32xf32, #tpu.memory_space<vmem>>, vector<16x32xf32>
      tpu.vector_store %arg24[%c0_134, %c0_135], %315 {strides = array<i32>} : memref<16x32xf32, #tpu.memory_space<vmem>>, vector<16x32xf32>,
    } else {
    }
    %c0 = arith.constant 0 : index
    %c0_1 = arith.constant 0 : index
    %3 = vector.load %arg24[%c0, %c0_1] : memref<16x32xf32, #tpu.memory_space<vmem>>, vector<16x32xf32>
    %c0_2 = arith.constant 0 : index
    %c0_3 = arith.constant 0 : index
    %4 = vector.load %arg2[%c0_2, %c0_3] : memref<32x32xf32, #tpu.memory_space<vmem>>, vector<32x32xf32>
    %c0_4 = arith.constant 0 : index
    %c0_5 = arith.constant 0 : index
    %c0_6 = arith.constant 0 : index
    %5 = vector.load %arg3[%c0_4, %c0_5, %c0_6] : memref<2x8x16xi8, #tpu.memory_space<vmem>>, vector<2x8x16xi8>
    %c0_i8 = arith.constant 0 : i8
    %6 = vector.broadcast %c0_i8 : i8 to vector<2x8x16xi8>
    %7 = arith.cmpi ne, %5, %6 : vector<2x8x16xi8>
    %c0_7 = arith.constant 0 : index
    %c0_8 = arith.constant 0 : index
    %c0_9 = arith.constant 0 : index
    %8 = vector.load %arg4[%c0_7, %c0_8, %c0_9] : memref<2x8x8xi8, #tpu.memory_space<vmem>>, vector<2x8x8xi8>
    %c0_i8_10 = arith.constant 0 : i8
    %9 = vector.broadcast %c0_i8_10 : i8 to vector<2x8x8xi8>
    %10 = arith.cmpi ne, %8, %9 : vector<2x8x8xi8>
    %c0_11 = arith.constant 0 : index
    %c0_12 = arith.constant 0 : index
    %c0_13 = arith.constant 0 : index
    %11 = vector.load %arg19[%c0_11, %c0_12, %c0_13] : memref<1x3x32xf32, #tpu.memory_space<vmem>>, vector<1x3x32xf32>
    %12 = vector.shape_cast %11 : vector<1x3x32xf32> to vector<3x32xf32>
    %c0_14 = arith.constant 0 : index
    %c0_15 = arith.constant 0 : index
    %c0_16 = arith.constant 0 : index
    %13 = vector.load %arg20[%c0_14, %c0_15, %c0_16] : memref<1x3x32xf32, #tpu.memory_space<vmem>>, vector<1x3x32xf32>
    %14 = vector.shape_cast %13 : vector<1x3x32xf32> to vector<3x32xf32>
    %15 = vector.extract_strided_slice %12 {offsets = [0, 0], sizes = [1, 32], strides = [1, 1]} : vector<3x32xf32> to vector<1x32xf32>
    %16 = vector.extract_strided_slice %14 {offsets = [0, 0], sizes = [1, 32], strides = [1, 1]} : vector<3x32xf32> to vector<1x32xf32>
    %cst = arith.constant dense<0.000000e+00> : vector<16xf32>
    %17 = vector.multi_reduction <add>, %3, %cst [1] : vector<16x32xf32> to vector<16xf32>
    %18 = vector.shape_cast %17 : vector<16xf32> to vector<16x1xf32>
    %cst_17 = arith.constant 3.200000e+01 : f32
    %19 = vector.broadcast %cst_17 : f32 to vector<16x1xf32>
    %20 = arith.divf %18, %19 : vector<16x1xf32>
    %21 = vector.broadcast %20 : vector<16x1xf32> to vector<16x32xf32>
    %22 = arith.subf %3, %21 : vector<16x32xf32>
    %23 = arith.mulf %22, %22 : vector<16x32xf32>
    %cst_18 = arith.constant dense<0.000000e+00> : vector<16xf32>
    %24 = vector.multi_reduction <add>, %23, %cst_18 [1] : vector<16x32xf32> to vector<16xf32>
    %25 = vector.shape_cast %24 : vector<16xf32> to vector<16x1xf32>
    %cst_19 = arith.constant 0.0322580636 : f32
    %26 = vector.broadcast %cst_19 : f32 to vector<16x1xf32>
    %27 = arith.mulf %25, %26 : vector<16x1xf32>
    %28 = math.sqrt %27 : vector<16x1xf32>
    %cst_20 = arith.constant 9.99999997E-7 : f32
    %29 = vector.broadcast %cst_20 : f32 to vector<16x1xf32>
    %30 = arith.addf %28, %29 : vector<16x1xf32>
    %31 = tpu.reciprocal %30 {approx = true} : vector<16x1xf32> -> vector<16x1xf32>
    %32 = vector.broadcast %20 : vector<16x1xf32> to vector<16x32xf32>
    %33 = arith.subf %3, %32 : vector<16x32xf32>
    %34 = vector.broadcast %15 : vector<1x32xf32> to vector<16x32xf32>
    %35 = arith.mulf %34, %33 : vector<16x32xf32>
    %36 = vector.broadcast %31 : vector<16x1xf32> to vector<16x32xf32>
    %37 = arith.mulf %35, %36 : vector<16x32xf32>
    %38 = vector.broadcast %16 : vector<1x32xf32> to vector<16x32xf32>
    %39 = arith.addf %37, %38 : vector<16x32xf32>
    %c0_21 = arith.constant 0 : index
    %c0_22 = arith.constant 0 : index
    %c0_23 = arith.constant 0 : index
    %40 = vector.load %arg5[%c0_21, %c0_22, %c0_23] : memref<1x32x96xf32, #tpu.memory_space<vmem>>, vector<1x32x96xf32>
    %41 = vector.shape_cast %40 : vector<1x32x96xf32> to vector<32x96xf32>
    %cst_24 = arith.constant dense<0.000000e+00> : vector<16x96xf32>
    %42 = tpu.matmul %39, %41, %cst_24 {dimension_numbers = #tpu.dot_dimension_numbers<[1], [0], [0], [1], [0, 0, 1, 1], [], []>} : vector<16x32xf32>, vector<32x96xf32>, vector<16x96xf32> -> vector<16x96xf32>
    %c0_25 = arith.constant 0 : index
    %c0_26 = arith.constant 0 : index
    %c0_27 = arith.constant 0 : index
    %43 = vector.load %arg6[%c0_25, %c0_26, %c0_27] : memref<1x1x96xf32, #tpu.memory_space<vmem>>, vector<1x1x96xf32>
    %44 = vector.shape_cast %43 : vector<1x1x96xf32> to vector<1x96xf32>
    %45 = vector.broadcast %44 : vector<1x96xf32> to vector<16x96xf32>
    %46 = arith.addf %42, %45 : vector<16x96xf32>
    %47 = vector.extract_strided_slice %46 {offsets = [0, 0], sizes = [16, 32], strides = [1, 1]} : vector<16x96xf32> to vector<16x32xf32>
    %48 = vector.extract_strided_slice %46 {offsets = [0, 32], sizes = [16, 32], strides = [1, 1]} : vector<16x96xf32> to vector<16x32xf32>
    %49 = vector.extract_strided_slice %46 {offsets = [0, 64], sizes = [16, 32], strides = [1, 1]} : vector<16x96xf32> to vector<16x32xf32>
    %50 = vector.shape_cast %47 : vector<16x32xf32> to vector<2x8x32xf32>
    %51 = vector.shape_cast %48 : vector<16x32xf32> to vector<2x8x32xf32>
    %52 = vector.shape_cast %49 : vector<16x32xf32> to vector<2x8x32xf32>
    %53 = vector.extract_strided_slice %50 {offsets = [0, 0, 0], sizes = [2, 8, 8], strides = [1, 1, 1]} : vector<2x8x32xf32> to vector<2x8x8xf32>
    %54 = vector.extract_strided_slice %51 {offsets = [0, 0, 0], sizes = [2, 8, 8], strides = [1, 1, 1]} : vector<2x8x32xf32> to vector<2x8x8xf32>
    "tpu.trace_start"() <{level = 10 : i32, message = "bqd,bkd->bqk"}> : () -> ()
    %cst_28 = arith.constant dense<0.000000e+00> : vector<2x8x8xf32>
    %55 = tpu.matmul %53, %54, %cst_28 {dimension_numbers = #tpu.dot_dimension_numbers<[2], [2], [1], [1], [0, 0, 0, 1, 1, 1], [0], [0]>} : vector<2x8x8xf32>, vector<2x8x8xf32>, vector<2x8x8xf32> -> vector<2x8x8xf32>
    "tpu.trace_stop"() : () -> ()
    %cst_29 = arith.constant 0.353553385 : f32
    %56 = vector.broadcast %cst_29 : f32 to vector<2x8x8xf32>
    %57 = arith.mulf %55, %56 : vector<2x8x8xf32>
    %cst_30 = arith.constant -1.000000e+09 : f32
    %58 = vector.broadcast %cst_30 : f32 to vector<2x8x8xf32>
    %59 = arith.select %10, %57, %58 : vector<2x8x8xi1>, vector<2x8x8xf32>
    %cst_31 = arith.constant dense<0xFF800000> : vector<2x8xf32>
    %60 = vector.multi_reduction <maximumf>, %59, %cst_31 [2] : vector<2x8x8xf32> to vector<2x8xf32>
    %61 = vector.shape_cast %60 : vector<2x8xf32> to vector<2x8x1xf32>
    %62 = vector.broadcast %61 : vector<2x8x1xf32> to vector<2x8x8xf32>
    %63 = arith.subf %59, %62 : vector<2x8x8xf32>
    %64 = math.exp %63 : vector<2x8x8xf32>
    %cst_32 = arith.constant dense<0.000000e+00> : vector<2x8xf32>
    %65 = vector.multi_reduction <add>, %64, %cst_32 [2] : vector<2x8x8xf32> to vector<2x8xf32>
    %66 = vector.shape_cast %65 : vector<2x8xf32> to vector<2x8x1xf32>
    %67 = tpu.reciprocal %66 {approx = true} : vector<2x8x1xf32> -> vector<2x8x1xf32>
    %68 = vector.broadcast %67 : vector<2x8x1xf32> to vector<2x8x8xf32>
    %69 = arith.mulf %64, %68 : vector<2x8x8xf32>
    %70 = vector.extract_strided_slice %52 {offsets = [0, 0, 0], sizes = [2, 8, 8], strides = [1, 1, 1]} : vector<2x8x32xf32> to vector<2x8x8xf32>
    "tpu.trace_start"() <{level = 10 : i32, message = "bqk,bkd->bqd"}> : () -> ()
    %cst_33 = arith.constant dense<0.000000e+00> : vector<2x8x8xf32>
    %71 = tpu.matmul %69, %70, %cst_33 {dimension_numbers = #tpu.dot_dimension_numbers<[2], [1], [1], [2], [0, 0, 0, 1, 1, 2], [0], [0]>} : vector<2x8x8xf32>, vector<2x8x8xf32>, vector<2x8x8xf32> -> vector<2x8x8xf32>
    "tpu.trace_stop"() : () -> ()
    %72 = vector.extract_strided_slice %50 {offsets = [0, 0, 8], sizes = [2, 8, 8], strides = [1, 1, 1]} : vector<2x8x32xf32> to vector<2x8x8xf32>
    %73 = vector.extract_strided_slice %51 {offsets = [0, 0, 8], sizes = [2, 8, 8], strides = [1, 1, 1]} : vector<2x8x32xf32> to vector<2x8x8xf32>
    "tpu.trace_start"() <{level = 10 : i32, message = "bqd,bkd->bqk"}> : () -> ()
    %cst_34 = arith.constant dense<0.000000e+00> : vector<2x8x8xf32>
    %74 = tpu.matmul %72, %73, %cst_34 {dimension_numbers = #tpu.dot_dimension_numbers<[2], [2], [1], [1], [0, 0, 0, 1, 1, 1], [0], [0]>} : vector<2x8x8xf32>, vector<2x8x8xf32>, vector<2x8x8xf32> -> vector<2x8x8xf32>
    "tpu.trace_stop"() : () -> ()
    %cst_35 = arith.constant 0.353553385 : f32
    %75 = vector.broadcast %cst_35 : f32 to vector<2x8x8xf32>
    %76 = arith.mulf %74, %75 : vector<2x8x8xf32>
    %cst_36 = arith.constant -1.000000e+09 : f32
    %77 = vector.broadcast %cst_36 : f32 to vector<2x8x8xf32>
    %78 = arith.select %10, %76, %77 : vector<2x8x8xi1>, vector<2x8x8xf32>
    %cst_37 = arith.constant dense<0xFF800000> : vector<2x8xf32>
    %79 = vector.multi_reduction <maximumf>, %78, %cst_37 [2] : vector<2x8x8xf32> to vector<2x8xf32>
    %80 = vector.shape_cast %79 : vector<2x8xf32> to vector<2x8x1xf32>
    %81 = vector.broadcast %80 : vector<2x8x1xf32> to vector<2x8x8xf32>
    %82 = arith.subf %78, %81 : vector<2x8x8xf32>
    %83 = math.exp %82 : vector<2x8x8xf32>
    %cst_38 = arith.constant dense<0.000000e+00> : vector<2x8xf32>
    %84 = vector.multi_reduction <add>, %83, %cst_38 [2] : vector<2x8x8xf32> to vector<2x8xf32>
    %85 = vector.shape_cast %84 : vector<2x8xf32> to vector<2x8x1xf32>
    %86 = tpu.reciprocal %85 {approx = true} : vector<2x8x1xf32> -> vector<2x8x1xf32>
    %87 = vector.broadcast %86 : vector<2x8x1xf32> to vector<2x8x8xf32>
    %88 = arith.mulf %83, %87 : vector<2x8x8xf32>
    %89 = vector.extract_strided_slice %52 {offsets = [0, 0, 8], sizes = [2, 8, 8], strides = [1, 1, 1]} : vector<2x8x32xf32> to vector<2x8x8xf32>
    "tpu.trace_start"() <{level = 10 : i32, message = "bqk,bkd->bqd"}> : () -> ()
    %cst_39 = arith.constant dense<0.000000e+00> : vector<2x8x8xf32>
    %90 = tpu.matmul %88, %89, %cst_39 {dimension_numbers = #tpu.dot_dimension_numbers<[2], [1], [1], [2], [0, 0, 0, 1, 1, 2], [0], [0]>} : vector<2x8x8xf32>, vector<2x8x8xf32>, vector<2x8x8xf32> -> vector<2x8x8xf32>
    "tpu.trace_stop"() : () -> ()
    %91 = vector.extract_strided_slice %50 {offsets = [0, 0, 16], sizes = [2, 8, 8], strides = [1, 1, 1]} : vector<2x8x32xf32> to vector<2x8x8xf32>
    %92 = vector.extract_strided_slice %51 {offsets = [0, 0, 16], sizes = [2, 8, 8], strides = [1, 1, 1]} : vector<2x8x32xf32> to vector<2x8x8xf32>
    "tpu.trace_start"() <{level = 10 : i32, message = "bqd,bkd->bqk"}> : () -> ()
    %cst_40 = arith.constant dense<0.000000e+00> : vector<2x8x8xf32>
    %93 = tpu.matmul %91, %92, %cst_40 {dimension_numbers = #tpu.dot_dimension_numbers<[2], [2], [1], [1], [0, 0, 0, 1, 1, 1], [0], [0]>} : vector<2x8x8xf32>, vector<2x8x8xf32>, vector<2x8x8xf32> -> vector<2x8x8xf32>
    "tpu.trace_stop"() : () -> ()
    %cst_41 = arith.constant 0.353553385 : f32
    %94 = vector.broadcast %cst_41 : f32 to vector<2x8x8xf32>
    %95 = arith.mulf %93, %94 : vector<2x8x8xf32>
    %cst_42 = arith.constant -1.000000e+09 : f32
    %96 = vector.broadcast %cst_42 : f32 to vector<2x8x8xf32>
    %97 = arith.select %10, %95, %96 : vector<2x8x8xi1>, vector<2x8x8xf32>
    %cst_43 = arith.constant dense<0xFF800000> : vector<2x8xf32>
    %98 = vector.multi_reduction <maximumf>, %97, %cst_43 [2] : vector<2x8x8xf32> to vector<2x8xf32>
    %99 = vector.shape_cast %98 : vector<2x8xf32> to vector<2x8x1xf32>
    %100 = vector.broadcast %99 : vector<2x8x1xf32> to vector<2x8x8xf32>
    %101 = arith.subf %97, %100 : vector<2x8x8xf32>
    %102 = math.exp %101 : vector<2x8x8xf32>
    %cst_44 = arith.constant dense<0.000000e+00> : vector<2x8xf32>
    %103 = vector.multi_reduction <add>, %102, %cst_44 [2] : vector<2x8x8xf32> to vector<2x8xf32>
    %104 = vector.shape_cast %103 : vector<2x8xf32> to vector<2x8x1xf32>
    %105 = tpu.reciprocal %104 {approx = true} : vector<2x8x1xf32> -> vector<2x8x1xf32>
    %106 = vector.broadcast %105 : vector<2x8x1xf32> to vector<2x8x8xf32>
    %107 = arith.mulf %102, %106 : vector<2x8x8xf32>
    %108 = vector.extract_strided_slice %52 {offsets = [0, 0, 16], sizes = [2, 8, 8], strides = [1, 1, 1]} : vector<2x8x32xf32> to vector<2x8x8xf32>
    "tpu.trace_start"() <{level = 10 : i32, message = "bqk,bkd->bqd"}> : () -> ()
    %cst_45 = arith.constant dense<0.000000e+00> : vector<2x8x8xf32>
    %109 = tpu.matmul %107, %108, %cst_45 {dimension_numbers = #tpu.dot_dimension_numbers<[2], [1], [1], [2], [0, 0, 0, 1, 1, 2], [0], [0]>} : vector<2x8x8xf32>, vector<2x8x8xf32>, vector<2x8x8xf32> -> vector<2x8x8xf32>
    "tpu.trace_stop"() : () -> ()
    %110 = vector.extract_strided_slice %50 {offsets = [0, 0, 24], sizes = [2, 8, 8], strides = [1, 1, 1]} : vector<2x8x32xf32> to vector<2x8x8xf32>
    %111 = vector.extract_strided_slice %51 {offsets = [0, 0, 24], sizes = [2, 8, 8], strides = [1, 1, 1]} : vector<2x8x32xf32> to vector<2x8x8xf32>
    "tpu.trace_start"() <{level = 10 : i32, message = "bqd,bkd->bqk"}> : () -> ()
    %cst_46 = arith.constant dense<0.000000e+00> : vector<2x8x8xf32>
    %112 = tpu.matmul %110, %111, %cst_46 {dimension_numbers = #tpu.dot_dimension_numbers<[2], [2], [1], [1], [0, 0, 0, 1, 1, 1], [0], [0]>} : vector<2x8x8xf32>, vector<2x8x8xf32>, vector<2x8x8xf32> -> vector<2x8x8xf32>
    "tpu.trace_stop"() : () -> ()
    %cst_47 = arith.constant 0.353553385 : f32
    %113 = vector.broadcast %cst_47 : f32 to vector<2x8x8xf32>
    %114 = arith.mulf %112, %113 : vector<2x8x8xf32>
    %cst_48 = arith.constant -1.000000e+09 : f32
    %115 = vector.broadcast %cst_48 : f32 to vector<2x8x8xf32>
    %116 = arith.select %10, %114, %115 : vector<2x8x8xi1>, vector<2x8x8xf32>
    %cst_49 = arith.constant dense<0xFF800000> : vector<2x8xf32>
    %117 = vector.multi_reduction <maximumf>, %116, %cst_49 [2] : vector<2x8x8xf32> to vector<2x8xf32>
    %118 = vector.shape_cast %117 : vector<2x8xf32> to vector<2x8x1xf32>
    %119 = vector.broadcast %118 : vector<2x8x1xf32> to vector<2x8x8xf32>
    %120 = arith.subf %116, %119 : vector<2x8x8xf32>
    %121 = math.exp %120 : vector<2x8x8xf32>
    %cst_50 = arith.constant dense<0.000000e+00> : vector<2x8xf32>
    %122 = vector.multi_reduction <add>, %121, %cst_50 [2] : vector<2x8x8xf32> to vector<2x8xf32>
    %123 = vector.shape_cast %122 : vector<2x8xf32> to vector<2x8x1xf32>
    %124 = tpu.reciprocal %123 {approx = true} : vector<2x8x1xf32> -> vector<2x8x1xf32>
    %125 = vector.broadcast %124 : vector<2x8x1xf32> to vector<2x8x8xf32>
    %126 = arith.mulf %121, %125 : vector<2x8x8xf32>
    %127 = vector.extract_strided_slice %52 {offsets = [0, 0, 24], sizes = [2, 8, 8], strides = [1, 1, 1]} : vector<2x8x32xf32> to vector<2x8x8xf32>
    "tpu.trace_start"() <{level = 10 : i32, message = "bqk,bkd->bqd"}> : () -> ()
    %cst_51 = arith.constant dense<0.000000e+00> : vector<2x8x8xf32>
    %128 = tpu.matmul %126, %127, %cst_51 {dimension_numbers = #tpu.dot_dimension_numbers<[2], [1], [1], [2], [0, 0, 0, 1, 1, 2], [0], [0]>} : vector<2x8x8xf32>, vector<2x8x8xf32>, vector<2x8x8xf32> -> vector<2x8x8xf32>
    "tpu.trace_stop"() : () -> ()
    %129 = tpu.concatenate %71, %90, %109, %128 in 2 : vector<2x8x8xf32>, vector<2x8x8xf32>, vector<2x8x8xf32>, vector<2x8x8xf32> -> vector<2x8x32xf32>
    %130 = vector.shape_cast %129 : vector<2x8x32xf32> to vector<16x32xf32>
    %c0_52 = arith.constant 0 : index
    %c0_53 = arith.constant 0 : index
    %c0_54 = arith.constant 0 : index
    %131 = vector.load %arg7[%c0_52, %c0_53, %c0_54] : memref<1x32x32xf32, #tpu.memory_space<vmem>>, vector<1x32x32xf32>
    %132 = vector.shape_cast %131 : vector<1x32x32xf32> to vector<32x32xf32>
    %cst_55 = arith.constant dense<0.000000e+00> : vector<16x32xf32>
    %133 = tpu.matmul %130, %132, %cst_55 {dimension_numbers = #tpu.dot_dimension_numbers<[1], [0], [0], [1], [0, 0, 1, 1], [], []>} : vector<16x32xf32>, vector<32x32xf32>, vector<16x32xf32> -> vector<16x32xf32>
    %134 = arith.addf %3, %133 : vector<16x32xf32>
    %c0_56 = arith.constant 0 : index
    %c0_57 = arith.constant 0 : index
    %c0_58 = arith.constant 0 : index
    %135 = vector.load %arg8[%c0_56, %c0_57, %c0_58] : memref<1x1x32xf32, #tpu.memory_space<vmem>>, vector<1x1x32xf32>
    %136 = vector.shape_cast %135 : vector<1x1x32xf32> to vector<1x32xf32>
    %137 = vector.broadcast %136 : vector<1x32xf32> to vector<16x32xf32>
    %138 = arith.addf %134, %137 : vector<16x32xf32>
    %139 = vector.extract_strided_slice %12 {offsets = [1, 0], sizes = [1, 32], strides = [1, 1]} : vector<3x32xf32> to vector<1x32xf32>
    %140 = vector.extract_strided_slice %14 {offsets = [1, 0], sizes = [1, 32], strides = [1, 1]} : vector<3x32xf32> to vector<1x32xf32>
    %cst_59 = arith.constant dense<0.000000e+00> : vector<16xf32>
    %141 = vector.multi_reduction <add>, %138, %cst_59 [1] : vector<16x32xf32> to vector<16xf32>
    %142 = vector.shape_cast %141 : vector<16xf32> to vector<16x1xf32>
    %cst_60 = arith.constant 3.200000e+01 : f32
    %143 = vector.broadcast %cst_60 : f32 to vector<16x1xf32>
    %144 = arith.divf %142, %143 : vector<16x1xf32>
    %145 = vector.broadcast %144 : vector<16x1xf32> to vector<16x32xf32>
    %146 = arith.subf %138, %145 : vector<16x32xf32>
    %147 = arith.mulf %146, %146 : vector<16x32xf32>
    %cst_61 = arith.constant dense<0.000000e+00> : vector<16xf32>
    %148 = vector.multi_reduction <add>, %147, %cst_61 [1] : vector<16x32xf32> to vector<16xf32>
    %149 = vector.shape_cast %148 : vector<16xf32> to vector<16x1xf32>
    %cst_62 = arith.constant 0.0322580636 : f32
    %150 = vector.broadcast %cst_62 : f32 to vector<16x1xf32>
    %151 = arith.mulf %149, %150 : vector<16x1xf32>
    %152 = math.sqrt %151 : vector<16x1xf32>
    %cst_63 = arith.constant 9.99999997E-7 : f32
    %153 = vector.broadcast %cst_63 : f32 to vector<16x1xf32>
    %154 = arith.addf %152, %153 : vector<16x1xf32>
    %155 = tpu.reciprocal %154 {approx = true} : vector<16x1xf32> -> vector<16x1xf32>
    %156 = vector.broadcast %144 : vector<16x1xf32> to vector<16x32xf32>
    %157 = arith.subf %138, %156 : vector<16x32xf32>
    %158 = vector.broadcast %139 : vector<1x32xf32> to vector<16x32xf32>
    %159 = arith.mulf %158, %157 : vector<16x32xf32>
    %160 = vector.broadcast %155 : vector<16x1xf32> to vector<16x32xf32>
    %161 = arith.mulf %159, %160 : vector<16x32xf32>
    %162 = vector.broadcast %140 : vector<1x32xf32> to vector<16x32xf32>
    %163 = arith.addf %161, %162 : vector<16x32xf32>
    %c0_64 = arith.constant 0 : index
    %c0_65 = arith.constant 0 : index
    %c0_66 = arith.constant 0 : index
    %164 = vector.load %arg9[%c0_64, %c0_65, %c0_66] : memref<1x32x32xf32, #tpu.memory_space<vmem>>, vector<1x32x32xf32>
    %165 = vector.shape_cast %164 : vector<1x32x32xf32> to vector<32x32xf32>
    %cst_67 = arith.constant dense<0.000000e+00> : vector<16x32xf32>
    %166 = tpu.matmul %163, %165, %cst_67 {dimension_numbers = #tpu.dot_dimension_numbers<[1], [0], [0], [1], [0, 0, 1, 1], [], []>} : vector<16x32xf32>, vector<32x32xf32>, vector<16x32xf32> -> vector<16x32xf32>
    %c0_68 = arith.constant 0 : index
    %c0_69 = arith.constant 0 : index
    %c0_70 = arith.constant 0 : index
    %167 = vector.load %arg10[%c0_68, %c0_69, %c0_70] : memref<1x1x32xf32, #tpu.memory_space<vmem>>, vector<1x1x32xf32>
    %168 = vector.shape_cast %167 : vector<1x1x32xf32> to vector<1x32xf32>
    %169 = vector.broadcast %168 : vector<1x32xf32> to vector<16x32xf32>
    %170 = arith.addf %166, %169 : vector<16x32xf32>
    %c0_71 = arith.constant 0 : index
    %c0_72 = arith.constant 0 : index
    %c0_73 = arith.constant 0 : index
    %171 = vector.load %arg11[%c0_71, %c0_72, %c0_73] : memref<1x32x64xf32, #tpu.memory_space<vmem>>, vector<1x32x64xf32>
    %172 = vector.shape_cast %171 : vector<1x32x64xf32> to vector<32x64xf32>
    %cst_74 = arith.constant dense<0.000000e+00> : vector<32x64xf32>
    %173 = tpu.matmul %4, %172, %cst_74 {dimension_numbers = #tpu.dot_dimension_numbers<[1], [0], [0], [1], [0, 0, 1, 1], [], []>} : vector<32x32xf32>, vector<32x64xf32>, vector<32x64xf32> -> vector<32x64xf32>
    %c0_75 = arith.constant 0 : index
    %c0_76 = arith.constant 0 : index
    %c0_77 = arith.constant 0 : index
    %174 = vector.load %arg12[%c0_75, %c0_76, %c0_77] : memref<1x1x64xf32, #tpu.memory_space<vmem>>, vector<1x1x64xf32>
    %175 = vector.shape_cast %174 : vector<1x1x64xf32> to vector<1x64xf32>
    %176 = vector.broadcast %175 : vector<1x64xf32> to vector<32x64xf32>
    %177 = arith.addf %173, %176 : vector<32x64xf32>
    %178 = vector.extract_strided_slice %177 {offsets = [0, 0], sizes = [32, 32], strides = [1, 1]} : vector<32x64xf32> to vector<32x32xf32>
    %179 = vector.extract_strided_slice %177 {offsets = [0, 32], sizes = [32, 32], strides = [1, 1]} : vector<32x64xf32> to vector<32x32xf32>
    %180 = vector.shape_cast %170 : vector<16x32xf32> to vector<2x8x32xf32>
    %181 = vector.shape_cast %178 : vector<32x32xf32> to vector<2x16x32xf32>
    %182 = vector.shape_cast %179 : vector<32x32xf32> to vector<2x16x32xf32>
    %183 = vector.extract_strided_slice %180 {offsets = [0, 0, 0], sizes = [2, 8, 8], strides = [1, 1, 1]} : vector<2x8x32xf32> to vector<2x8x8xf32>
    %184 = vector.extract_strided_slice %181 {offsets = [0, 0, 0], sizes = [2, 16, 8], strides = [1, 1, 1]} : vector<2x16x32xf32> to vector<2x16x8xf32>
    "tpu.trace_start"() <{level = 10 : i32, message = "bqd,bkd->bqk"}> : () -> ()
    %cst_78 = arith.constant dense<0.000000e+00> : vector<2x8x16xf32>
    %185 = tpu.matmul %183, %184, %cst_78 {dimension_numbers = #tpu.dot_dimension_numbers<[2], [2], [1], [1], [0, 0, 0, 1, 1, 1], [0], [0]>} : vector<2x8x8xf32>, vector<2x16x8xf32>, vector<2x8x16xf32> -> vector<2x8x16xf32>
    "tpu.trace_stop"() : () -> ()
    %cst_79 = arith.constant 0.353553385 : f32
    %186 = vector.broadcast %cst_79 : f32 to vector<2x8x16xf32>
    %187 = arith.mulf %185, %186 : vector<2x8x16xf32>
    %cst_80 = arith.constant -1.000000e+09 : f32
    %188 = vector.broadcast %cst_80 : f32 to vector<2x8x16xf32>
    %189 = arith.select %7, %187, %188 : vector<2x8x16xi1>, vector<2x8x16xf32>
    %cst_81 = arith.constant dense<0xFF800000> : vector<2x8xf32>
    %190 = vector.multi_reduction <maximumf>, %189, %cst_81 [2] : vector<2x8x16xf32> to vector<2x8xf32>
    %191 = vector.shape_cast %190 : vector<2x8xf32> to vector<2x8x1xf32>
    %192 = vector.broadcast %191 : vector<2x8x1xf32> to vector<2x8x16xf32>
    %193 = arith.subf %189, %192 : vector<2x8x16xf32>
    %194 = math.exp %193 : vector<2x8x16xf32>
    %cst_82 = arith.constant dense<0.000000e+00> : vector<2x8xf32>
    %195 = vector.multi_reduction <add>, %194, %cst_82 [2] : vector<2x8x16xf32> to vector<2x8xf32>
    %196 = vector.shape_cast %195 : vector<2x8xf32> to vector<2x8x1xf32>
    %197 = tpu.reciprocal %196 {approx = true} : vector<2x8x1xf32> -> vector<2x8x1xf32>
    %198 = vector.broadcast %197 : vector<2x8x1xf32> to vector<2x8x16xf32>
    %199 = arith.mulf %194, %198 : vector<2x8x16xf32>
    %200 = vector.extract_strided_slice %182 {offsets = [0, 0, 0], sizes = [2, 16, 8], strides = [1, 1, 1]} : vector<2x16x32xf32> to vector<2x16x8xf32>
    "tpu.trace_start"() <{level = 10 : i32, message = "bqk,bkd->bqd"}> : () -> ()
    %cst_83 = arith.constant dense<0.000000e+00> : vector<2x8x8xf32>
    %201 = tpu.matmul %199, %200, %cst_83 {dimension_numbers = #tpu.dot_dimension_numbers<[2], [1], [1], [2], [0, 0, 0, 1, 1, 2], [0], [0]>} : vector<2x8x16xf32>, vector<2x16x8xf32>, vector<2x8x8xf32> -> vector<2x8x8xf32>
    "tpu.trace_stop"() : () -> ()
    %202 = vector.extract_strided_slice %180 {offsets = [0, 0, 8], sizes = [2, 8, 8], strides = [1, 1, 1]} : vector<2x8x32xf32> to vector<2x8x8xf32>
    %203 = vector.extract_strided_slice %181 {offsets = [0, 0, 8], sizes = [2, 16, 8], strides = [1, 1, 1]} : vector<2x16x32xf32> to vector<2x16x8xf32>
    "tpu.trace_start"() <{level = 10 : i32, message = "bqd,bkd->bqk"}> : () -> ()
    %cst_84 = arith.constant dense<0.000000e+00> : vector<2x8x16xf32>
    %204 = tpu.matmul %202, %203, %cst_84 {dimension_numbers = #tpu.dot_dimension_numbers<[2], [2], [1], [1], [0, 0, 0, 1, 1, 1], [0], [0]>} : vector<2x8x8xf32>, vector<2x16x8xf32>, vector<2x8x16xf32> -> vector<2x8x16xf32>
    "tpu.trace_stop"() : () -> ()
    %cst_85 = arith.constant 0.353553385 : f32
    %205 = vector.broadcast %cst_85 : f32 to vector<2x8x16xf32>
    %206 = arith.mulf %204, %205 : vector<2x8x16xf32>
    %cst_86 = arith.constant -1.000000e+09 : f32
    %207 = vector.broadcast %cst_86 : f32 to vector<2x8x16xf32>
    %208 = arith.select %7, %206, %207 : vector<2x8x16xi1>, vector<2x8x16xf32>
    %cst_87 = arith.constant dense<0xFF800000> : vector<2x8xf32>
    %209 = vector.multi_reduction <maximumf>, %208, %cst_87 [2] : vector<2x8x16xf32> to vector<2x8xf32>
    %210 = vector.shape_cast %209 : vector<2x8xf32> to vector<2x8x1xf32>
    %211 = vector.broadcast %210 : vector<2x8x1xf32> to vector<2x8x16xf32>
    %212 = arith.subf %208, %211 : vector<2x8x16xf32>
    %213 = math.exp %212 : vector<2x8x16xf32>
    %cst_88 = arith.constant dense<0.000000e+00> : vector<2x8xf32>
    %214 = vector.multi_reduction <add>, %213, %cst_88 [2] : vector<2x8x16xf32> to vector<2x8xf32>
    %215 = vector.shape_cast %214 : vector<2x8xf32> to vector<2x8x1xf32>
    %216 = tpu.reciprocal %215 {approx = true} : vector<2x8x1xf32> -> vector<2x8x1xf32>
    %217 = vector.broadcast %216 : vector<2x8x1xf32> to vector<2x8x16xf32>
    %218 = arith.mulf %213, %217 : vector<2x8x16xf32>
    %219 = vector.extract_strided_slice %182 {offsets = [0, 0, 8], sizes = [2, 16, 8], strides = [1, 1, 1]} : vector<2x16x32xf32> to vector<2x16x8xf32>
    "tpu.trace_start"() <{level = 10 : i32, message = "bqk,bkd->bqd"}> : () -> ()
    %cst_89 = arith.constant dense<0.000000e+00> : vector<2x8x8xf32>
    %220 = tpu.matmul %218, %219, %cst_89 {dimension_numbers = #tpu.dot_dimension_numbers<[2], [1], [1], [2], [0, 0, 0, 1, 1, 2], [0], [0]>} : vector<2x8x16xf32>, vector<2x16x8xf32>, vector<2x8x8xf32> -> vector<2x8x8xf32>
    "tpu.trace_stop"() : () -> ()
    %221 = vector.extract_strided_slice %180 {offsets = [0, 0, 16], sizes = [2, 8, 8], strides = [1, 1, 1]} : vector<2x8x32xf32> to vector<2x8x8xf32>
    %222 = vector.extract_strided_slice %181 {offsets = [0, 0, 16], sizes = [2, 16, 8], strides = [1, 1, 1]} : vector<2x16x32xf32> to vector<2x16x8xf32>
    "tpu.trace_start"() <{level = 10 : i32, message = "bqd,bkd->bqk"}> : () -> ()
    %cst_90 = arith.constant dense<0.000000e+00> : vector<2x8x16xf32>
    %223 = tpu.matmul %221, %222, %cst_90 {dimension_numbers = #tpu.dot_dimension_numbers<[2], [2], [1], [1], [0, 0, 0, 1, 1, 1], [0], [0]>} : vector<2x8x8xf32>, vector<2x16x8xf32>, vector<2x8x16xf32> -> vector<2x8x16xf32>
    "tpu.trace_stop"() : () -> ()
    %cst_91 = arith.constant 0.353553385 : f32
    %224 = vector.broadcast %cst_91 : f32 to vector<2x8x16xf32>
    %225 = arith.mulf %223, %224 : vector<2x8x16xf32>
    %cst_92 = arith.constant -1.000000e+09 : f32
    %226 = vector.broadcast %cst_92 : f32 to vector<2x8x16xf32>
    %227 = arith.select %7, %225, %226 : vector<2x8x16xi1>, vector<2x8x16xf32>
    %cst_93 = arith.constant dense<0xFF800000> : vector<2x8xf32>
    %228 = vector.multi_reduction <maximumf>, %227, %cst_93 [2] : vector<2x8x16xf32> to vector<2x8xf32>
    %229 = vector.shape_cast %228 : vector<2x8xf32> to vector<2x8x1xf32>
    %230 = vector.broadcast %229 : vector<2x8x1xf32> to vector<2x8x16xf32>
    %231 = arith.subf %227, %230 : vector<2x8x16xf32>
    %232 = math.exp %231 : vector<2x8x16xf32>
    %cst_94 = arith.constant dense<0.000000e+00> : vector<2x8xf32>
    %233 = vector.multi_reduction <add>, %232, %cst_94 [2] : vector<2x8x16xf32> to vector<2x8xf32>
    %234 = vector.shape_cast %233 : vector<2x8xf32> to vector<2x8x1xf32>
    %235 = tpu.reciprocal %234 {approx = true} : vector<2x8x1xf32> -> vector<2x8x1xf32>
    %236 = vector.broadcast %235 : vector<2x8x1xf32> to vector<2x8x16xf32>
    %237 = arith.mulf %232, %236 : vector<2x8x16xf32>
    %238 = vector.extract_strided_slice %182 {offsets = [0, 0, 16], sizes = [2, 16, 8], strides = [1, 1, 1]} : vector<2x16x32xf32> to vector<2x16x8xf32>
    "tpu.trace_start"() <{level = 10 : i32, message = "bqk,bkd->bqd"}> : () -> ()
    %cst_95 = arith.constant dense<0.000000e+00> : vector<2x8x8xf32>
    %239 = tpu.matmul %237, %238, %cst_95 {dimension_numbers = #tpu.dot_dimension_numbers<[2], [1], [1], [2], [0, 0, 0, 1, 1, 2], [0], [0]>} : vector<2x8x16xf32>, vector<2x16x8xf32>, vector<2x8x8xf32> -> vector<2x8x8xf32>
    "tpu.trace_stop"() : () -> ()
    %240 = vector.extract_strided_slice %180 {offsets = [0, 0, 24], sizes = [2, 8, 8], strides = [1, 1, 1]} : vector<2x8x32xf32> to vector<2x8x8xf32>
    %241 = vector.extract_strided_slice %181 {offsets = [0, 0, 24], sizes = [2, 16, 8], strides = [1, 1, 1]} : vector<2x16x32xf32> to vector<2x16x8xf32>
    "tpu.trace_start"() <{level = 10 : i32, message = "bqd,bkd->bqk"}> : () -> ()
    %cst_96 = arith.constant dense<0.000000e+00> : vector<2x8x16xf32>
    %242 = tpu.matmul %240, %241, %cst_96 {dimension_numbers = #tpu.dot_dimension_numbers<[2], [2], [1], [1], [0, 0, 0, 1, 1, 1], [0], [0]>} : vector<2x8x8xf32>, vector<2x16x8xf32>, vector<2x8x16xf32> -> vector<2x8x16xf32>
    "tpu.trace_stop"() : () -> ()
    %cst_97 = arith.constant 0.353553385 : f32
    %243 = vector.broadcast %cst_97 : f32 to vector<2x8x16xf32>
    %244 = arith.mulf %242, %243 : vector<2x8x16xf32>
    %cst_98 = arith.constant -1.000000e+09 : f32
    %245 = vector.broadcast %cst_98 : f32 to vector<2x8x16xf32>
    %246 = arith.select %7, %244, %245 : vector<2x8x16xi1>, vector<2x8x16xf32>
    %cst_99 = arith.constant dense<0xFF800000> : vector<2x8xf32>
    %247 = vector.multi_reduction <maximumf>, %246, %cst_99 [2] : vector<2x8x16xf32> to vector<2x8xf32>
    %248 = vector.shape_cast %247 : vector<2x8xf32> to vector<2x8x1xf32>
    %249 = vector.broadcast %248 : vector<2x8x1xf32> to vector<2x8x16xf32>
    %250 = arith.subf %246, %249 : vector<2x8x16xf32>
    %251 = math.exp %250 : vector<2x8x16xf32>
    %cst_100 = arith.constant dense<0.000000e+00> : vector<2x8xf32>
    %252 = vector.multi_reduction <add>, %251, %cst_100 [2] : vector<2x8x16xf32> to vector<2x8xf32>
    %253 = vector.shape_cast %252 : vector<2x8xf32> to vector<2x8x1xf32>
    %254 = tpu.reciprocal %253 {approx = true} : vector<2x8x1xf32> -> vector<2x8x1xf32>
    %255 = vector.broadcast %254 : vector<2x8x1xf32> to vector<2x8x16xf32>
    %256 = arith.mulf %251, %255 : vector<2x8x16xf32>
    %257 = vector.extract_strided_slice %182 {offsets = [0, 0, 24], sizes = [2, 16, 8], strides = [1, 1, 1]} : vector<2x16x32xf32> to vector<2x16x8xf32>
    "tpu.trace_start"() <{level = 10 : i32, message = "bqk,bkd->bqd"}> : () -> ()
    %cst_101 = arith.constant dense<0.000000e+00> : vector<2x8x8xf32>
    %258 = tpu.matmul %256, %257, %cst_101 {dimension_numbers = #tpu.dot_dimension_numbers<[2], [1], [1], [2], [0, 0, 0, 1, 1, 2], [0], [0]>} : vector<2x8x16xf32>, vector<2x16x8xf32>, vector<2x8x8xf32> -> vector<2x8x8xf32>
    "tpu.trace_stop"() : () -> ()
    %259 = tpu.concatenate %201, %220, %239, %258 in 2 : vector<2x8x8xf32>, vector<2x8x8xf32>, vector<2x8x8xf32>, vector<2x8x8xf32> -> vector<2x8x32xf32>
    %260 = vector.shape_cast %259 : vector<2x8x32xf32> to vector<16x32xf32>
    %c0_102 = arith.constant 0 : index
    %c0_103 = arith.constant 0 : index
    %c0_104 = arith.constant 0 : index
    %261 = vector.load %arg13[%c0_102, %c0_103, %c0_104] : memref<1x32x32xf32, #tpu.memory_space<vmem>>, vector<1x32x32xf32>
    %262 = vector.shape_cast %261 : vector<1x32x32xf32> to vector<32x32xf32>
    %cst_105 = arith.constant dense<0.000000e+00> : vector<16x32xf32>
    %263 = tpu.matmul %260, %262, %cst_105 {dimension_numbers = #tpu.dot_dimension_numbers<[1], [0], [0], [1], [0, 0, 1, 1], [], []>} : vector<16x32xf32>, vector<32x32xf32>, vector<16x32xf32> -> vector<16x32xf32>
    %264 = arith.addf %138, %263 : vector<16x32xf32>
    %c0_106 = arith.constant 0 : index
    %c0_107 = arith.constant 0 : index
    %c0_108 = arith.constant 0 : index
    %265 = vector.load %arg14[%c0_106, %c0_107, %c0_108] : memref<1x1x32xf32, #tpu.memory_space<vmem>>, vector<1x1x32xf32>
    %266 = vector.shape_cast %265 : vector<1x1x32xf32> to vector<1x32xf32>
    %267 = vector.broadcast %266 : vector<1x32xf32> to vector<16x32xf32>
    %268 = arith.addf %264, %267 : vector<16x32xf32>
    %269 = vector.extract_strided_slice %12 {offsets = [2, 0], sizes = [1, 32], strides = [1, 1]} : vector<3x32xf32> to vector<1x32xf32>
    %270 = vector.extract_strided_slice %14 {offsets = [2, 0], sizes = [1, 32], strides = [1, 1]} : vector<3x32xf32> to vector<1x32xf32>
    %cst_109 = arith.constant dense<0.000000e+00> : vector<16xf32>
    %271 = vector.multi_reduction <add>, %268, %cst_109 [1] : vector<16x32xf32> to vector<16xf32>
    %272 = vector.shape_cast %271 : vector<16xf32> to vector<16x1xf32>
    %cst_110 = arith.constant 3.200000e+01 : f32
    %273 = vector.broadcast %cst_110 : f32 to vector<16x1xf32>
    %274 = arith.divf %272, %273 : vector<16x1xf32>
    %275 = vector.broadcast %274 : vector<16x1xf32> to vector<16x32xf32>
    %276 = arith.subf %268, %275 : vector<16x32xf32>
    %277 = arith.mulf %276, %276 : vector<16x32xf32>
    %cst_111 = arith.constant dense<0.000000e+00> : vector<16xf32>
    %278 = vector.multi_reduction <add>, %277, %cst_111 [1] : vector<16x32xf32> to vector<16xf32>
    %279 = vector.shape_cast %278 : vector<16xf32> to vector<16x1xf32>
    %cst_112 = arith.constant 0.0322580636 : f32
    %280 = vector.broadcast %cst_112 : f32 to vector<16x1xf32>
    %281 = arith.mulf %279, %280 : vector<16x1xf32>
    %282 = math.sqrt %281 : vector<16x1xf32>
    %cst_113 = arith.constant 9.99999997E-7 : f32
    %283 = vector.broadcast %cst_113 : f32 to vector<16x1xf32>
    %284 = arith.addf %282, %283 : vector<16x1xf32>
    %285 = tpu.reciprocal %284 {approx = true} : vector<16x1xf32> -> vector<16x1xf32>
    %286 = vector.broadcast %274 : vector<16x1xf32> to vector<16x32xf32>
    %287 = arith.subf %268, %286 : vector<16x32xf32>
    %288 = vector.broadcast %269 : vector<1x32xf32> to vector<16x32xf32>
    %289 = arith.mulf %288, %287 : vector<16x32xf32>
    %290 = vector.broadcast %285 : vector<16x1xf32> to vector<16x32xf32>
    %291 = arith.mulf %289, %290 : vector<16x32xf32>
    %292 = vector.broadcast %270 : vector<1x32xf32> to vector<16x32xf32>
    %293 = arith.addf %291, %292 : vector<16x32xf32>
    %c0_114 = arith.constant 0 : index
    %c0_115 = arith.constant 0 : index
    %c0_116 = arith.constant 0 : index
    %294 = vector.load %arg15[%c0_114, %c0_115, %c0_116] : memref<1x32x64xf32, #tpu.memory_space<vmem>>, vector<1x32x64xf32>
    %295 = vector.shape_cast %294 : vector<1x32x64xf32> to vector<32x64xf32>
    %cst_117 = arith.constant dense<0.000000e+00> : vector<16x64xf32>
    %296 = tpu.matmul %293, %295, %cst_117 {dimension_numbers = #tpu.dot_dimension_numbers<[1], [0], [0], [1], [0, 0, 1, 1], [], []>} : vector<16x32xf32>, vector<32x64xf32>, vector<16x64xf32> -> vector<16x64xf32>
    %c0_118 = arith.constant 0 : index
    %c0_119 = arith.constant 0 : index
    %c0_120 = arith.constant 0 : index
    %297 = vector.load %arg16[%c0_118, %c0_119, %c0_120] : memref<1x1x64xf32, #tpu.memory_space<vmem>>, vector<1x1x64xf32>
    %298 = vector.shape_cast %297 : vector<1x1x64xf32> to vector<1x64xf32>
    %299 = vector.broadcast %298 : vector<1x64xf32> to vector<16x64xf32>
    %300 = arith.addf %296, %299 : vector<16x64xf32>
    %cst_121 = arith.constant 0.000000e+00 : f32
    %301 = vector.broadcast %cst_121 : f32 to vector<16x64xf32>
    %302 = arith.maximumf %300, %301 : vector<16x64xf32>
    %c0_122 = arith.constant 0 : index
    %c0_123 = arith.constant 0 : index
    %c0_124 = arith.constant 0 : index
    %303 = vector.load %arg17[%c0_122, %c0_123, %c0_124] : memref<1x64x32xf32, #tpu.memory_space<vmem>>, vector<1x64x32xf32>
    %304 = vector.shape_cast %303 : vector<1x64x32xf32> to vector<64x32xf32>
    %cst_125 = arith.constant dense<0.000000e+00> : vector<16x32xf32>
    %305 = tpu.matmul %302, %304, %cst_125 {dimension_numbers = #tpu.dot_dimension_numbers<[1], [0], [0], [1], [0, 0, 1, 1], [], []>} : vector<16x64xf32>, vector<64x32xf32>, vector<16x32xf32> -> vector<16x32xf32>
    %306 = arith.addf %268, %305 : vector<16x32xf32>
    %c0_126 = arith.constant 0 : index
    %c0_127 = arith.constant 0 : index
    %c0_128 = arith.constant 0 : index
    %307 = vector.load %arg18[%c0_126, %c0_127, %c0_128] : memref<1x1x32xf32, #tpu.memory_space<vmem>>, vector<1x1x32xf32>
    %308 = vector.shape_cast %307 : vector<1x1x32xf32> to vector<1x32xf32>
    %309 = vector.broadcast %308 : vector<1x32xf32> to vector<16x32xf32>
    %310 = arith.addf %306, %309 : vector<16x32xf32>
    %c0_129 = arith.constant 0 : index
    %c0_130 = arith.constant 0 : index
    %311 = vector.load %arg24[%c0_129, %c0_130] : memref<16x32xf32, #tpu.memory_space<vmem>>, vector<16x32xf32>
    tpu.vector_store %arg24[%c0_129, %c0_130], %310 {strides = array<i32>} : memref<16x32xf32, #tpu.memory_space<vmem>>, vector<16x32xf32>,
    %c1_i32 = arith.constant 1 : i32
    %312 = arith.cmpi eq, %arg0, %c1_i32 : i32
    %313 = arith.extui %312 : i1 to i32
    %c0_i32_131 = arith.constant 0 : i32
    %314 = arith.cmpi ne, %313, %c0_i32_131 : i32
    scf.if %314 {
      %c0_132 = arith.constant 0 : index
      %c0_133 = arith.constant 0 : index
      %315 = vector.load %arg21[%c0_132, %c0_133] : memref<1x32xf32, #tpu.memory_space<vmem>>, vector<1x32xf32>
      %c0_134 = arith.constant 0 : index
      %c0_135 = arith.constant 0 : index
      %316 = vector.load %arg22[%c0_134, %c0_135] : memref<1x32xf32, #tpu.memory_space<vmem>>, vector<1x32xf32>
      %cst_136 = arith.constant dense<0.000000e+00> : vector<16xf32>
      %317 = vector.multi_reduction <add>, %310, %cst_136 [1] : vector<16x32xf32> to vector<16xf32>
      %318 = vector.shape_cast %317 : vector<16xf32> to vector<16x1xf32>
      %cst_137 = arith.constant 3.200000e+01 : f32
      %319 = vector.broadcast %cst_137 : f32 to vector<16x1xf32>
      %320 = arith.divf %318, %319 : vector<16x1xf32>
      %321 = vector.broadcast %320 : vector<16x1xf32> to vector<16x32xf32>
      %322 = arith.subf %310, %321 : vector<16x32xf32>
      %323 = arith.mulf %322, %322 : vector<16x32xf32>
      %cst_138 = arith.constant dense<0.000000e+00> : vector<16xf32>
      %324 = vector.multi_reduction <add>, %323, %cst_138 [1] : vector<16x32xf32> to vector<16xf32>
      %325 = vector.shape_cast %324 : vector<16xf32> to vector<16x1xf32>
      %cst_139 = arith.constant 0.0322580636 : f32
      %326 = vector.broadcast %cst_139 : f32 to vector<16x1xf32>
      %327 = arith.mulf %325, %326 : vector<16x1xf32>
      %328 = math.sqrt %327 : vector<16x1xf32>
      %cst_140 = arith.constant 9.99999997E-7 : f32
      %329 = vector.broadcast %cst_140 : f32 to vector<16x1xf32>
      %330 = arith.addf %328, %329 : vector<16x1xf32>
      %331 = tpu.reciprocal %330 {approx = true} : vector<16x1xf32> -> vector<16x1xf32>
      %332 = vector.broadcast %320 : vector<16x1xf32> to vector<16x32xf32>
      %333 = arith.subf %310, %332 : vector<16x32xf32>
      %334 = vector.broadcast %315 : vector<1x32xf32> to vector<16x32xf32>
      %335 = arith.mulf %334, %333 : vector<16x32xf32>
      %336 = vector.broadcast %331 : vector<16x1xf32> to vector<16x32xf32>
      %337 = arith.mulf %335, %336 : vector<16x32xf32>
      %338 = vector.broadcast %316 : vector<1x32xf32> to vector<16x32xf32>
      %339 = arith.addf %337, %338 : vector<16x32xf32>
      %c0_141 = arith.constant 0 : index
      %c0_142 = arith.constant 0 : index
      %340 = vector.load %arg23[%c0_141, %c0_142] : memref<16x32xf32, #tpu.memory_space<vmem>>, vector<16x32xf32>
      tpu.vector_store %arg23[%c0_141, %c0_142], %339 {strides = array<i32>} : memref<16x32xf32, #tpu.memory_space<vmem>>, vector<16x32xf32>,
    } else {
    }
    return
  }
  func.func @transform_0(%arg0: i32) -> (i32, i32) {
    %c0_i32 = arith.constant 0 : i32
    %c0_i32_0 = arith.constant 0 : i32
    %c0_i32_1 = arith.constant 0 : i32
    return %c0_i32, %c0_i32_0 : i32, i32
  }
  func.func @transform_1(%arg0: i32) -> (i32, i32) {
    %c0_i32 = arith.constant 0 : i32
    %c0_i32_0 = arith.constant 0 : i32
    %c0_i32_1 = arith.constant 0 : i32
    return %c0_i32, %c0_i32_0 : i32, i32
  }
  func.func @transform_2(%arg0: i32) -> (i32, i32, i32) {
    %c0_i32 = arith.constant 0 : i32
    %c0_i32_0 = arith.constant 0 : i32
    %c0_i32_1 = arith.constant 0 : i32
    %c0_i32_2 = arith.constant 0 : i32
    return %c0_i32, %c0_i32_0, %c0_i32_1 : i32, i32, i32
  }
  func.func @transform_3(%arg0: i32) -> (i32, i32, i32) {
    %c0_i32 = arith.constant 0 : i32
    %c0_i32_0 = arith.constant 0 : i32
    %c0_i32_1 = arith.constant 0 : i32
    %c0_i32_2 = arith.constant 0 : i32
    return %c0_i32, %c0_i32_0, %c0_i32_1 : i32, i32, i32
  }
  func.func @transform_4(%arg0: i32) -> (i32, i32, i32) {
    %c0_i32 = arith.constant 0 : i32
    %c0_i32_0 = arith.constant 0 : i32
    %c0_i32_1 = arith.constant 0 : i32
    return %arg0, %c0_i32, %c0_i32_0 : i32, i32, i32
  }
  func.func @transform_5(%arg0: i32) -> (i32, i32, i32) {
    %c0_i32 = arith.constant 0 : i32
    %c0_i32_0 = arith.constant 0 : i32
    %c0_i32_1 = arith.constant 0 : i32
    return %arg0, %c0_i32, %c0_i32_0 : i32, i32, i32
  }
  func.func @transform_6(%arg0: i32) -> (i32, i32, i32) {
    %c0_i32 = arith.constant 0 : i32
    %c0_i32_0 = arith.constant 0 : i32
    %c0_i32_1 = arith.constant 0 : i32
    return %arg0, %c0_i32, %c0_i32_0 : i32, i32, i32
  }
  func.func @transform_7(%arg0: i32) -> (i32, i32, i32) {
    %c0_i32 = arith.constant 0 : i32
    %c0_i32_0 = arith.constant 0 : i32
    %c0_i32_1 = arith.constant 0 : i32
    return %arg0, %c0_i32, %c0_i32_0 : i32, i32, i32
  }
  func.func @transform_8(%arg0: i32) -> (i32, i32, i32) {
    %c0_i32 = arith.constant 0 : i32
    %c0_i32_0 = arith.constant 0 : i32
    %c0_i32_1 = arith.constant 0 : i32
    return %arg0, %c0_i32, %c0_i32_0 : i32, i32, i32
  }
  func.func @transform_9(%arg0: i32) -> (i32, i32, i32) {
    %c0_i32 = arith.constant 0 : i32
    %c0_i32_0 = arith.constant 0 : i32
    %c0_i32_1 = arith.constant 0 : i32
    return %arg0, %c0_i32, %c0_i32_0 : i32, i32, i32
  }
  func.func @transform_10(%arg0: i32) -> (i32, i32, i32) {
    %c0_i32 = arith.constant 0 : i32
    %c0_i32_0 = arith.constant 0 : i32
    %c0_i32_1 = arith.constant 0 : i32
    return %arg0, %c0_i32, %c0_i32_0 : i32, i32, i32
  }
  func.func @transform_11(%arg0: i32) -> (i32, i32, i32) {
    %c0_i32 = arith.constant 0 : i32
    %c0_i32_0 = arith.constant 0 : i32
    %c0_i32_1 = arith.constant 0 : i32
    return %arg0, %c0_i32, %c0_i32_0 : i32, i32, i32
  }
  func.func @transform_12(%arg0: i32) -> (i32, i32, i32) {
    %c0_i32 = arith.constant 0 : i32
    %c0_i32_0 = arith.constant 0 : i32
    %c0_i32_1 = arith.constant 0 : i32
    return %arg0, %c0_i32, %c0_i32_0 : i32, i32, i32
  }
  func.func @transform_13(%arg0: i32) -> (i32, i32, i32) {
    %c0_i32 = arith.constant 0 : i32
    %c0_i32_0 = arith.constant 0 : i32
    %c0_i32_1 = arith.constant 0 : i32
    return %arg0, %c0_i32, %c0_i32_0 : i32, i32, i32
  }
  func.func @transform_14(%arg0: i32) -> (i32, i32, i32) {
    %c0_i32 = arith.constant 0 : i32
    %c0_i32_0 = arith.constant 0 : i32
    %c0_i32_1 = arith.constant 0 : i32
    return %arg0, %c0_i32, %c0_i32_0 : i32, i32, i32
  }
  func.func @transform_15(%arg0: i32) -> (i32, i32, i32) {
    %c0_i32 = arith.constant 0 : i32
    %c0_i32_0 = arith.constant 0 : i32
    %c0_i32_1 = arith.constant 0 : i32
    return %arg0, %c0_i32, %c0_i32_0 : i32, i32, i32
  }
  func.func @transform_16(%arg0: i32) -> (i32, i32, i32) {
    %c0_i32 = arith.constant 0 : i32
    %c0_i32_0 = arith.constant 0 : i32
    %c0_i32_1 = arith.constant 0 : i32
    return %arg0, %c0_i32, %c0_i32_0 : i32, i32, i32
  }
  func.func @transform_17(%arg0: i32) -> (i32, i32, i32) {
    %c0_i32 = arith.constant 0 : i32
    %c0_i32_0 = arith.constant 0 : i32
    %c0_i32_1 = arith.constant 0 : i32
    return %arg0, %c0_i32, %c0_i32_0 : i32, i32, i32
  }
  func.func @transform_18(%arg0: i32) -> (i32, i32, i32) {
    %c0_i32 = arith.constant 0 : i32
    %c0_i32_0 = arith.constant 0 : i32
    %c0_i32_1 = arith.constant 0 : i32
    return %arg0, %c0_i32, %c0_i32_0 : i32, i32, i32
  }
  func.func @transform_19(%arg0: i32) -> (i32, i32, i32) {
    %c0_i32 = arith.constant 0 : i32
    %c0_i32_0 = arith.constant 0 : i32
    %c0_i32_1 = arith.constant 0 : i32
    return %arg0, %c0_i32, %c0_i32_0 : i32, i32, i32
  }
  func.func @transform_20(%arg0: i32) -> (i32, i32) {
    %c0_i32 = arith.constant 0 : i32
    %c0_i32_0 = arith.constant 0 : i32
    %c0_i32_1 = arith.constant 0 : i32
    return %c0_i32, %c0_i32_0 : i32, i32
  }
  func.func @transform_21(%arg0: i32) -> (i32, i32) {
    %c0_i32 = arith.constant 0 : i32
    %c0_i32_0 = arith.constant 0 : i32
    %c0_i32_1 = arith.constant 0 : i32
    return %c0_i32, %c0_i32_0 : i32, i32
  }
  func.func @transform_22(%arg0: i32) -> (i32, i32) {
    %c0_i32 = arith.constant 0 : i32
    %c0_i32_0 = arith.constant 0 : i32
    %c0_i32_1 = arith.constant 0 : i32
    return %c0_i32, %c0_i32_0 : i32, i32
  }
}

</mosaic_0001>

<llo_original>
// kernel: tpu_custom_call.1
$region0: #{tpu_custom_call.1}
  #allocation0 [shape = 'u32[]', space=smem, size = 0x4, offset = 0x4, fixed_abs, tag = 'smem constant byte address 0x4 - core index']
  #allocation1 [shape = 'u32[144,128]{1,0:T(1,128)}', space=vmem, size = 0x12000, scoped, tag = 'internal scratch']
  #allocation2 [shape = 'f32[16,32]{1,0:T(8,128)}', space=vmem, size = 0x2000, scoped, tag = 'scratch operand']
  %s0 = inlined_call_operand.vmem [shape: f32[16,32], index: 0, kind: input, shape index: {}]
  %s1 = inlined_call_operand.hbm [shape: f32[32,32], index: 1, kind: input, shape index: {}]
  %s2 = inlined_call_operand.hbm [shape: s8[2,8,16], index: 2, kind: input, shape index: {}]
  %s3 = inlined_call_operand.hbm [shape: s8[2,8,8], index: 3, kind: input, shape index: {}]
  %s4 = inlined_call_operand.vmem [shape: f32[2,32,96], index: 4, kind: input, shape index: {}]
  %s5 = inlined_call_operand.hbm [shape: f32[2,1,96], index: 5, kind: input, shape index: {}]
  %s6 = inlined_call_operand.vmem [shape: f32[2,32,32], index: 6, kind: input, shape index: {}]
  %s7 = inlined_call_operand.hbm [shape: f32[2,1,32], index: 7, kind: input, shape index: {}]
  %s8 = inlined_call_operand.vmem [shape: f32[2,32,32], index: 8, kind: input, shape index: {}]
  %s9 = inlined_call_operand.hbm [shape: f32[2,1,32], index: 9, kind: input, shape index: {}]
  %s10 = inlined_call_operand.hbm [shape: f32[2,32,64], index: 10, kind: input, shape index: {}]
  %s11 = inlined_call_operand.hbm [shape: f32[2,1,64], index: 11, kind: input, shape index: {}]
  %s12 = inlined_call_operand.hbm [shape: f32[2,32,32], index: 12, kind: input, shape index: {}]
  %s13 = inlined_call_operand.hbm [shape: f32[2,1,32], index: 13, kind: input, shape index: {}]
  %s14 = inlined_call_operand.hbm [shape: f32[2,32,64], index: 14, kind: input, shape index: {}]
  %s15 = inlined_call_operand.hbm [shape: f32[2,1,64], index: 15, kind: input, shape index: {}]
  %s16 = inlined_call_operand.vmem [shape: f32[2,64,32], index: 16, kind: input, shape index: {}]
  %s17 = inlined_call_operand.hbm [shape: f32[2,1,32], index: 17, kind: input, shape index: {}]
  %s18 = inlined_call_operand.vmem [shape: f32[2,3,32], index: 18, kind: input, shape index: {}]
  %s19 = inlined_call_operand.vmem [shape: f32[2,3,32], index: 19, kind: input, shape index: {}]
  %s20 = inlined_call_operand.vmem [shape: f32[1,32], index: 20, kind: input, shape index: {}]
  %s21 = inlined_call_operand.vmem [shape: f32[1,32], index: 21, kind: input, shape index: {}]
  %s22 = inlined_call_operand.hbm [shape: f32[16,32], index: 22, kind: output, shape index: {}]
  %s23 = sld [smem:[#allocation0]]
  $region181: #{tpu_custom_call.1} parent=0
    _
  %s25 = ssub.s32 1, %s23
  %s26 = scalar_select 0, %s25, %s23
  $region1: #{tpu_custom_call.1} parent=0
    #allocation3 [shape = 'u8[16384]{0}', space=vmem, size = 0x4000, scoped, tag = 'input window, operand 1, single buffered']
    #allocation4 [shape = 's32[2]{0}', space=sflag, size = 0x8, scoped, tag = 'scoped memory for tpu_custom_call.1']
    #allocation5 [shape = 's32[2]{0}', space=sflag, size = 0x8, scoped, tag = 'scoped memory for tpu_custom_call.1']
    #allocation6 [shape = 'u8[2048]{0}', space=vmem, size = 0x800, scoped, tag = 'input window, operand 2, single buffered']
    #allocation7 [shape = 's32[1]{0}', space=sflag, size = 0x4, scoped, tag = 'scoped memory for tpu_custom_call.1']
    #allocation8 [shape = 'u8[2048]{0}', space=vmem, size = 0x800, scoped, tag = 'input window, operand 3, single buffered']
    #allocation9 [shape = 'u8[1024]{0}', space=vmem, size = 0x400, scoped, tag = 'input window, operand 5']
    #allocation10 [shape = 's32[2]{0}', space=sflag, size = 0x8, scoped, tag = 'scoped memory for tpu_custom_call.1']
    #allocation11 [shape = 'u8[1024]{0}', space=vmem, size = 0x400, scoped, tag = 'input window, operand 7']
    #allocation12 [shape = 'u8[1024]{0}', space=vmem, size = 0x400, scoped, tag = 'input window, operand 9']
    #allocation13 [shape = 's32[2]{0}', space=sflag, size = 0x8, scoped, tag = 'scoped memory for tpu_custom_call.1']
    #allocation14 [shape = 'u8[32768]{0}', space=vmem, size = 0x8000, scoped, tag = 'input window, operand 10']
    #allocation15 [shape = 'u8[1024]{0}', space=vmem, size = 0x400, scoped, tag = 'input window, operand 11']
    #allocation16 [shape = 's32[2]{0}', space=sflag, size = 0x8, scoped, tag = 'scoped memory for tpu_custom_call.1']
    #allocation17 [shape = 'u8[32768]{0}', space=vmem, size = 0x8000, scoped, tag = 'input window, operand 12']
    #allocation18 [shape = 'u8[1024]{0}', space=vmem, size = 0x400, scoped, tag = 'input window, operand 13']
    #allocation19 [shape = 's32[2]{0}', space=sflag, size = 0x8, scoped, tag = 'scoped memory for tpu_custom_call.1']
    #allocation20 [shape = 'u8[32768]{0}', space=vmem, size = 0x8000, scoped, tag = 'input window, operand 14']
    #allocation21 [shape = 'u8[1024]{0}', space=vmem, size = 0x400, scoped, tag = 'input window, operand 15']
    #allocation22 [shape = 's32[2]{0}', space=sflag, size = 0x8, scoped, tag = 'scoped memory for tpu_custom_call.1']
    #allocation23 [shape = 'u8[1024]{0}', space=vmem, size = 0x400, scoped, tag = 'input window, operand 17']
    #allocation24 [shape = 'u8[8192]{0}', space=vmem, size = 0x2000, scoped, tag = 'output window, operand 0, single buffered']
    %27 = vsyncpa [#allocation4], 0
    %28 = vsyncpa [#allocation7], 0
    %29 = vsyncpa [#allocation10], 0
    %s30 = scalar_lea.sflag [#allocation10], 1
    %31 = vsyncpa %s30, 0
    %32 = vsyncpa [#allocation13], 0
    %s33 = scalar_lea.sflag [#allocation13], 1
    %34 = vsyncpa %s33, 0
    %35 = vsyncpa [#allocation16], 0
    %s36 = scalar_lea.sflag [#allocation16], 1
    %37 = vsyncpa %s36, 0
    %38 = vsyncpa [#allocation19], 0
    %s39 = scalar_lea.sflag [#allocation19], 1
    %40 = vsyncpa %s39, 0
    %41 = vsyncpa [#allocation22], 0
    %s42 = scalar_lea.sflag [#allocation22], 1
    %43 = vsyncpa %s42, 0
    %44 = vsyncpa [#allocation5], 0
    loop: start=0, step=1, limit=4
    $region2: #{tpu_custom_call.1} parent=1 // loop_pre_header
      _
    $region3: #{tpu_custom_call.1} parent=1 // loop_header
      %s46 = sphi 0, %s50
      %p47 = scmp.ge.s32.totalorder %s46, 4
      %s54 = sphi 0, %s54
      %s56 = sphi 0, %s54
      %s57 = sphi 0, %s56
      %s71 = sphi 0, %s57
      %s75 = sphi 0, %s75
      %s77 = sphi 0, %s75
      %s78 = sphi 0, %s77
      %s92 = sphi 0, %s78
      %s96 = sphi 0, %s96
      %s98 = sphi 0, %s96
      %s99 = sphi 0, %s98
      %s113 = sphi 0, %s99
      %s117 = sphi 0, %s117
      %s119 = sphi 0, %s117
      %s120 = sphi 0, %s119
      %s134 = sphi 0, %s120
      %s140 = sphi 0, %s142
      %s143 = sphi 0, %s140
      %s144 = sphi 0, %s143
      %s160 = sphi 0, %s144
      %s166 = sphi 0, %s168
      %s169 = sphi 0, %s166
      %s170 = sphi 0, %s169
      %s186 = sphi 0, %s170
      %s192 = sphi 0, %s194
      %s195 = sphi 0, %s192
      %s196 = sphi 0, %s195
      %s212 = sphi 0, %s196
      %s218 = sphi 0, %s220
      %s221 = sphi 0, %s218
      %s222 = sphi 0, %s221
      %s238 = sphi 0, %s222
      %s244 = sphi 0, %s246
      %s247 = sphi 0, %s244
      %s248 = sphi 0, %s247
      %s264 = sphi 0, %s248
      %s270 = sphi 0, %s272
      %s273 = sphi 0, %s270
      %s274 = sphi 0, %s273
      %s290 = sphi 0, %s274
      %s296 = sphi 0, %s298
      %s299 = sphi 0, %s296
      %s300 = sphi 0, %s299
      %s316 = sphi 0, %s300
      %s322 = sphi 0, %s324
      %s325 = sphi 0, %s322
      %s326 = sphi 0, %s325
      %s342 = sphi 0, %s326
      %s348 = sphi 0, %s350
      %s351 = sphi 0, %s348
      %s352 = sphi 0, %s351
      %s368 = sphi 0, %s352
      %s374 = sphi 0, %s376
      %s377 = sphi 0, %s374
      %s378 = sphi 0, %s377
      %s394 = sphi 0, %s378
      %s400 = sphi 0, %s402
      %s403 = sphi 0, %s400
      %s404 = sphi 0, %s403
      %s420 = sphi 0, %s404
      %s426 = sphi 0, %s428
      %s429 = sphi 0, %s426
      %s430 = sphi 0, %s429
      %s446 = sphi 0, %s430
      %s452 = sphi 0, %s454
      %s455 = sphi 0, %s452
      %s456 = sphi 0, %s455
      %s472 = sphi 0, %s456
      %s478 = sphi 0, %s480
      %s481 = sphi 0, %s478
      %s482 = sphi 0, %s481
      %s498 = sphi 0, %s482
      %s504 = sphi 0, %s506
      %s507 = sphi 0, %s504
      %s508 = sphi 0, %s507
      %s524 = sphi 0, %s508
      %s530 = sphi 0, %s532
      %s533 = sphi 0, %s530
      %s534 = sphi 0, %s533
      %s550 = sphi 0, %s534
      %s554 = sphi 0, %s554
      %s556 = sphi 0, %s554
      %s557 = sphi 0, %s556
      %s571 = sphi 0, %s557
      %s575 = sphi 0, %s575
      %s577 = sphi 0, %s575
      %s578 = sphi 0, %s577
      %s592 = sphi 0, %s578
      %s596 = sphi 0, %s596
      %s598 = sphi 0, %s596
      %s599 = sphi 0, %s598
      %s613 = sphi 0, %s599
    $region4: #{tpu_custom_call.1} parent=1 // loop_header_branch
      %49 = sbr.rel (%p47) target = $region8
    $region5: #{tpu_custom_call.1} parent=1 // loop_body
      %s51 = ssub.s32 %s46, 1
      %s52 = ssub.s32 %s46, 2
      %s53 = sadd.s32 %s46, 1
      %s55 = sadd.s32 %s54, 1
      %p58 = scmp.eq.s32.totalorder %s46, 1
      %p59 = scmp.ne.s32.totalorder %s54, %s56
      %p60 = scmp.eq.s32.totalorder %s46, 0
      %p61 = por %p59, %p60
      %p62 = scmp.ne.s32.totalorder %s54, %s56
      %p63 = scmp.eq.s32.totalorder %s51, 1
      %p64 = por %p62, %p63
      %p65 = scmp.ne.s32.totalorder %s56, %s57
      %p66 = scmp.eq.s32.totalorder %s51, 0
      %p67 = por %p65, %p66
      %p68 = scmp.ne.s32.totalorder %s56, %s57
      %p69 = scmp.eq.s32.totalorder %s52, 1
      %p70 = por %p68, %p69
      %p72 = scmp.ne.s32.totalorder %s57, %s71
      %p73 = scmp.eq.s32.totalorder %s52, 0
      %p74 = por %p72, %p73
      %s76 = sadd.s32 %s75, 1
      %p79 = scmp.eq.s32.totalorder %s46, 1
      %p80 = scmp.ne.s32.totalorder %s75, %s77
      %p81 = scmp.eq.s32.totalorder %s46, 0
      %p82 = por %p80, %p81
      %p83 = scmp.ne.s32.totalorder %s75, %s77
      %p84 = scmp.eq.s32.totalorder %s51, 1
      %p85 = por %p83, %p84
      %p86 = scmp.ne.s32.totalorder %s77, %s78
      %p87 = scmp.eq.s32.totalorder %s51, 0
      %p88 = por %p86, %p87
      %p89 = scmp.ne.s32.totalorder %s77, %s78
      %p90 = scmp.eq.s32.totalorder %s52, 1
      %p91 = por %p89, %p90
      %p93 = scmp.ne.s32.totalorder %s78, %s92
      %p94 = scmp.eq.s32.totalorder %s52, 0
      %p95 = por %p93, %p94
      %s97 = sadd.s32 %s96, 1
      %p100 = scmp.eq.s32.totalorder %s46, 1
      %p101 = scmp.ne.s32.totalorder %s96, %s98
      %p102 = scmp.eq.s32.totalorder %s46, 0
      %p103 = por %p101, %p102
      %p104 = scmp.ne.s32.totalorder %s96, %s98
      %p105 = scmp.eq.s32.totalorder %s51, 1
      %p106 = por %p104, %p105
      %p107 = scmp.ne.s32.totalorder %s98, %s99
      %p108 = scmp.eq.s32.totalorder %s51, 0
      %p109 = por %p107, %p108
      %p110 = scmp.ne.s32.totalorder %s98, %s99
      %p111 = scmp.eq.s32.totalorder %s52, 1
      %p112 = por %p110, %p111
      %p114 = scmp.ne.s32.totalorder %s99, %s113
      %p115 = scmp.eq.s32.totalorder %s52, 0
      %p116 = por %p114, %p115
      %s118 = sadd.s32 %s117, 1
      %p121 = scmp.eq.s32.totalorder %s46, 1
      %p122 = scmp.ne.s32.totalorder %s117, %s119
      %p123 = scmp.eq.s32.totalorder %s46, 0
      %p124 = por %p122, %p123
      %p125 = scmp.ne.s32.totalorder %s117, %s119
      %p126 = scmp.eq.s32.totalorder %s51, 1
      %p127 = por %p125, %p126
      %p128 = scmp.ne.s32.totalorder %s119, %s120
      %p129 = scmp.eq.s32.totalorder %s51, 0
      %p130 = por %p128, %p129
      %p131 = scmp.ne.s32.totalorder %s119, %s120
      %p132 = scmp.eq.s32.totalorder %s52, 1
      %p133 = por %p131, %p132
      %p135 = scmp.ne.s32.totalorder %s120, %s134
      %p136 = scmp.eq.s32.totalorder %s52, 0
      %p137 = por %p135, %p136
      %s138 = ssub.s32 %s46, %s53
      %p139 = scmp.eq.s32.totalorder %s138, 0
      %s141 = sadd.s32 %s140, 1
      %s142 = scalar_select %p139, %s140, %s141
      %p145 = pneg %p139
      %p146 = scmp.eq.s32.totalorder %s46, 1
      %p147 = por %p145, %p146
      %p148 = scmp.ne.s32.totalorder %s140, %s143
      %p149 = scmp.eq.s32.totalorder %s46, 0
      %p150 = por %p148, %p149
      %p151 = scmp.ne.s32.totalorder %s140, %s143
      %p152 = scmp.eq.s32.totalorder %s51, 1
      %p153 = por %p151, %p152
      %p154 = scmp.ne.s32.totalorder %s143, %s144
      %p155 = scmp.eq.s32.totalorder %s51, 0
      %p156 = por %p154, %p155
      %p157 = scmp.ne.s32.totalorder %s143, %s144
      %p158 = scmp.eq.s32.totalorder %s52, 1
      %p159 = por %p157, %p158
      %p161 = scmp.ne.s32.totalorder %s144, %s160
      %p162 = scmp.eq.s32.totalorder %s52, 0
      %p163 = por %p161, %p162
      %s164 = ssub.s32 %s46, %s53
      %p165 = scmp.eq.s32.totalorder %s164, 0
      %s167 = sadd.s32 %s166, 1
      %s168 = scalar_select %p165, %s166, %s167
      %p171 = pneg %p165
      %p172 = scmp.eq.s32.totalorder %s46, 1
      %p173 = por %p171, %p172
      %p174 = scmp.ne.s32.totalorder %s166, %s169
      %p175 = scmp.eq.s32.totalorder %s46, 0
      %p176 = por %p174, %p175
      %p177 = scmp.ne.s32.totalorder %s166, %s169
      %p178 = scmp.eq.s32.totalorder %s51, 1
      %p179 = por %p177, %p178
      %p180 = scmp.ne.s32.totalorder %s169, %s170
      %p181 = scmp.eq.s32.totalorder %s51, 0
      %p182 = por %p180, %p181
      %p183 = scmp.ne.s32.totalorder %s169, %s170
      %p184 = scmp.eq.s32.totalorder %s52, 1
      %p185 = por %p183, %p184
      %p187 = scmp.ne.s32.totalorder %s170, %s186
      %p188 = scmp.eq.s32.totalorder %s52, 0
      %p189 = por %p187, %p188
      %s190 = ssub.s32 %s46, %s53
      %p191 = scmp.eq.s32.totalorder %s190, 0
      %s193 = sadd.s32 %s192, 1
      %s194 = scalar_select %p191, %s192, %s193
      %p197 = pneg %p191
      %p198 = scmp.eq.s32.totalorder %s46, 1
      %p199 = por %p197, %p198
      %p200 = scmp.ne.s32.totalorder %s192, %s195
      %p201 = scmp.eq.s32.totalorder %s46, 0
      %p202 = por %p200, %p201
      %p203 = scmp.ne.s32.totalorder %s192, %s195
      %p204 = scmp.eq.s32.totalorder %s51, 1
      %p205 = por %p203, %p204
      %p206 = scmp.ne.s32.totalorder %s195, %s196
      %p207 = scmp.eq.s32.totalorder %s51, 0
      %p208 = por %p206, %p207
      %p209 = scmp.ne.s32.totalorder %s195, %s196
      %p210 = scmp.eq.s32.totalorder %s52, 1
      %p211 = por %p209, %p210
      %p213 = scmp.ne.s32.totalorder %s196, %s212
      %p214 = scmp.eq.s32.totalorder %s52, 0
      %p215 = por %p213, %p214
      %s216 = ssub.s32 %s46, %s53
      %p217 = scmp.eq.s32.totalorder %s216, 0
      %s219 = sadd.s32 %s218, 1
      %s220 = scalar_select %p217, %s218, %s219
      %p223 = pneg %p217
      %p224 = scmp.eq.s32.totalorder %s46, 1
      %p225 = por %p223, %p224
      %p226 = scmp.ne.s32.totalorder %s218, %s221
      %p227 = scmp.eq.s32.totalorder %s46, 0
      %p228 = por %p226, %p227
      %p229 = scmp.ne.s32.totalorder %s218, %s221
      %p230 = scmp.eq.s32.totalorder %s51, 1
      %p231 = por %p229, %p230
      %p232 = scmp.ne.s32.totalorder %s221, %s222
      %p233 = scmp.eq.s32.totalorder %s51, 0
      %p234 = por %p232, %p233
      %p235 = scmp.ne.s32.totalorder %s221, %s222
      %p236 = scmp.eq.s32.totalorder %s52, 1
      %p237 = por %p235, %p236
      %p239 = scmp.ne.s32.totalorder %s222, %s238
      %p240 = scmp.eq.s32.totalorder %s52, 0
      %p241 = por %p239, %p240
      %s242 = ssub.s32 %s46, %s53
      %p243 = scmp.eq.s32.totalorder %s242, 0
      %s245 = sadd.s32 %s244, 1
      %s246 = scalar_select %p243, %s244, %s245
      %p249 = pneg %p243
      %p250 = scmp.eq.s32.totalorder %s46, 1
      %p251 = por %p249, %p250
      %p252 = scmp.ne.s32.totalorder %s244, %s247
      %p253 = scmp.eq.s32.totalorder %s46, 0
      %p254 = por %p252, %p253
      %p255 = scmp.ne.s32.totalorder %s244, %s247
      %p256 = scmp.eq.s32.totalorder %s51, 1
      %p257 = por %p255, %p256
      %p258 = scmp.ne.s32.totalorder %s247, %s248
      %p259 = scmp.eq.s32.totalorder %s51, 0
      %p260 = por %p258, %p259
      %p261 = scmp.ne.s32.totalorder %s247, %s248
      %p262 = scmp.eq.s32.totalorder %s52, 1
      %p263 = por %p261, %p262
      %p265 = scmp.ne.s32.totalorder %s248, %s264
      %p266 = scmp.eq.s32.totalorder %s52, 0
      %p267 = por %p265, %p266
      %s268 = ssub.s32 %s46, %s53
      %p269 = scmp.eq.s32.totalorder %s268, 0
      %s271 = sadd.s32 %s270, 1
      %s272 = scalar_select %p269, %s270, %s271
      %p275 = pneg %p269
      %p276 = scmp.eq.s32.totalorder %s46, 1
      %p277 = por %p275, %p276
      %p278 = scmp.ne.s32.totalorder %s270, %s273
      %p279 = scmp.eq.s32.totalorder %s46, 0
      %p280 = por %p278, %p279
      %p281 = scmp.ne.s32.totalorder %s270, %s273
      %p282 = scmp.eq.s32.totalorder %s51, 1
      %p283 = por %p281, %p282
      %p284 = scmp.ne.s32.totalorder %s273, %s274
      %p285 = scmp.eq.s32.totalorder %s51, 0
      %p286 = por %p284, %p285
      %p287 = scmp.ne.s32.totalorder %s273, %s274
      %p288 = scmp.eq.s32.totalorder %s52, 1
      %p289 = por %p287, %p288
      %p291 = scmp.ne.s32.totalorder %s274, %s290
      %p292 = scmp.eq.s32.totalorder %s52, 0
      %p293 = por %p291, %p292
      %s294 = ssub.s32 %s46, %s53
      %p295 = scmp.eq.s32.totalorder %s294, 0
      %s297 = sadd.s32 %s296, 1
      %s298 = scalar_select %p295, %s296, %s297
      %p301 = pneg %p295
      %p302 = scmp.eq.s32.totalorder %s46, 1
      %p303 = por %p301, %p302
      %p304 = scmp.ne.s32.totalorder %s296, %s299
      %p305 = scmp.eq.s32.totalorder %s46, 0
      %p306 = por %p304, %p305
      %p307 = scmp.ne.s32.totalorder %s296, %s299
      %p308 = scmp.eq.s32.totalorder %s51, 1
      %p309 = por %p307, %p308
      %p310 = scmp.ne.s32.totalorder %s299, %s300
      %p311 = scmp.eq.s32.totalorder %s51, 0
      %p312 = por %p310, %p311
      %p313 = scmp.ne.s32.totalorder %s299, %s300
      %p314 = scmp.eq.s32.totalorder %s52, 1
      %p315 = por %p313, %p314
      %p317 = scmp.ne.s32.totalorder %s300, %s316
      %p318 = scmp.eq.s32.totalorder %s52, 0
      %p319 = por %p317, %p318
      %s320 = ssub.s32 %s46, %s53
      %p321 = scmp.eq.s32.totalorder %s320, 0
      %s323 = sadd.s32 %s322, 1
      %s324 = scalar_select %p321, %s322, %s323
      %p327 = pneg %p321
      %p328 = scmp.eq.s32.totalorder %s46, 1
      %p329 = por %p327, %p328
      %p330 = scmp.ne.s32.totalorder %s322, %s325
      %p331 = scmp.eq.s32.totalorder %s46, 0
      %p332 = por %p330, %p331
      %p333 = scmp.ne.s32.totalorder %s322, %s325
      %p334 = scmp.eq.s32.totalorder %s51, 1
      %p335 = por %p333, %p334
      %p336 = scmp.ne.s32.totalorder %s325, %s326
      %p337 = scmp.eq.s32.totalorder %s51, 0
      %p338 = por %p336, %p337
      %p339 = scmp.ne.s32.totalorder %s325, %s326
      %p340 = scmp.eq.s32.totalorder %s52, 1
      %p341 = por %p339, %p340
      %p343 = scmp.ne.s32.totalorder %s326, %s342
      %p344 = scmp.eq.s32.totalorder %s52, 0
      %p345 = por %p343, %p344
      %s346 = ssub.s32 %s46, %s53
      %p347 = scmp.eq.s32.totalorder %s346, 0
      %s349 = sadd.s32 %s348, 1
      %s350 = scalar_select %p347, %s348, %s349
      %p353 = pneg %p347
      %p354 = scmp.eq.s32.totalorder %s46, 1
      %p355 = por %p353, %p354
      %p356 = scmp.ne.s32.totalorder %s348, %s351
      %p357 = scmp.eq.s32.totalorder %s46, 0
      %p358 = por %p356, %p357
      %p359 = scmp.ne.s32.totalorder %s348, %s351
      %p360 = scmp.eq.s32.totalorder %s51, 1
      %p361 = por %p359, %p360
      %p362 = scmp.ne.s32.totalorder %s351, %s352
      %p363 = scmp.eq.s32.totalorder %s51, 0
      %p364 = por %p362, %p363
      %p365 = scmp.ne.s32.totalorder %s351, %s352
      %p366 = scmp.eq.s32.totalorder %s52, 1
      %p367 = por %p365, %p366
      %p369 = scmp.ne.s32.totalorder %s352, %s368
      %p370 = scmp.eq.s32.totalorder %s52, 0
      %p371 = por %p369, %p370
      %s372 = ssub.s32 %s46, %s53
      %p373 = scmp.eq.s32.totalorder %s372, 0
      %s375 = sadd.s32 %s374, 1
      %s376 = scalar_select %p373, %s374, %s375
      %p379 = pneg %p373
      %p380 = scmp.eq.s32.totalorder %s46, 1
      %p381 = por %p379, %p380
      %p382 = scmp.ne.s32.totalorder %s374, %s377
      %p383 = scmp.eq.s32.totalorder %s46, 0
      %p384 = por %p382, %p383
      %p385 = scmp.ne.s32.totalorder %s374, %s377
      %p386 = scmp.eq.s32.totalorder %s51, 1
      %p387 = por %p385, %p386
      %p388 = scmp.ne.s32.totalorder %s377, %s378
      %p389 = scmp.eq.s32.totalorder %s51, 0
      %p390 = por %p388, %p389
      %p391 = scmp.ne.s32.totalorder %s377, %s378
      %p392 = scmp.eq.s32.totalorder %s52, 1
      %p393 = por %p391, %p392
      %p395 = scmp.ne.s32.totalorder %s378, %s394
      %p396 = scmp.eq.s32.totalorder %s52, 0
      %p397 = por %p395, %p396
      %s398 = ssub.s32 %s46, %s53
      %p399 = scmp.eq.s32.totalorder %s398, 0
      %s401 = sadd.s32 %s400, 1
      %s402 = scalar_select %p399, %s400, %s401
      %p405 = pneg %p399
      %p406 = scmp.eq.s32.totalorder %s46, 1
      %p407 = por %p405, %p406
      %p408 = scmp.ne.s32.totalorder %s400, %s403
      %p409 = scmp.eq.s32.totalorder %s46, 0
      %p410 = por %p408, %p409
      %p411 = scmp.ne.s32.totalorder %s400, %s403
      %p412 = scmp.eq.s32.totalorder %s51, 1
      %p413 = por %p411, %p412
      %p414 = scmp.ne.s32.totalorder %s403, %s404
      %p415 = scmp.eq.s32.totalorder %s51, 0
      %p416 = por %p414, %p415
      %p417 = scmp.ne.s32.totalorder %s403, %s404
      %p418 = scmp.eq.s32.totalorder %s52, 1
      %p419 = por %p417, %p418
      %p421 = scmp.ne.s32.totalorder %s404, %s420
      %p422 = scmp.eq.s32.totalorder %s52, 0
      %p423 = por %p421, %p422
      %s424 = ssub.s32 %s46, %s53
      %p425 = scmp.eq.s32.totalorder %s424, 0
      %s427 = sadd.s32 %s426, 1
      %s428 = scalar_select %p425, %s426, %s427
      %p431 = pneg %p425
      %p432 = scmp.eq.s32.totalorder %s46, 1
      %p433 = por %p431, %p432
      %p434 = scmp.ne.s32.totalorder %s426, %s429
      %p435 = scmp.eq.s32.totalorder %s46, 0
      %p436 = por %p434, %p435
      %p437 = scmp.ne.s32.totalorder %s426, %s429
      %p438 = scmp.eq.s32.totalorder %s51, 1
      %p439 = por %p437, %p438
      %p440 = scmp.ne.s32.totalorder %s429, %s430
      %p441 = scmp.eq.s32.totalorder %s51, 0
      %p442 = por %p440, %p441
      %p443 = scmp.ne.s32.totalorder %s429, %s430
      %p444 = scmp.eq.s32.totalorder %s52, 1
      %p445 = por %p443, %p444
      %p447 = scmp.ne.s32.totalorder %s430, %s446
      %p448 = scmp.eq.s32.totalorder %s52, 0
      %p449 = por %p447, %p448
      %s450 = ssub.s32 %s46, %s53
      %p451 = scmp.eq.s32.totalorder %s450, 0
      %s453 = sadd.s32 %s452, 1
      %s454 = scalar_select %p451, %s452, %s453
      %p457 = pneg %p451
      %p458 = scmp.eq.s32.totalorder %s46, 1
      %p459 = por %p457, %p458
      %p460 = scmp.ne.s32.totalorder %s452, %s455
      %p461 = scmp.eq.s32.totalorder %s46, 0
      %p462 = por %p460, %p461
      %p463 = scmp.ne.s32.totalorder %s452, %s455
      %p464 = scmp.eq.s32.totalorder %s51, 1
      %p465 = por %p463, %p464
      %p466 = scmp.ne.s32.totalorder %s455, %s456
      %p467 = scmp.eq.s32.totalorder %s51, 0
      %p468 = por %p466, %p467
      %p469 = scmp.ne.s32.totalorder %s455, %s456
      %p470 = scmp.eq.s32.totalorder %s52, 1
      %p471 = por %p469, %p470
      %p473 = scmp.ne.s32.totalorder %s456, %s472
      %p474 = scmp.eq.s32.totalorder %s52, 0
      %p475 = por %p473, %p474
      %s476 = ssub.s32 %s46, %s53
      %p477 = scmp.eq.s32.totalorder %s476, 0
      %s479 = sadd.s32 %s478, 1
      %s480 = scalar_select %p477, %s478, %s479
      %p483 = pneg %p477
      %p484 = scmp.eq.s32.totalorder %s46, 1
      %p485 = por %p483, %p484
      %p486 = scmp.ne.s32.totalorder %s478, %s481
      %p487 = scmp.eq.s32.totalorder %s46, 0
      %p488 = por %p486, %p487
      %p489 = scmp.ne.s32.totalorder %s478, %s481
      %p490 = scmp.eq.s32.totalorder %s51, 1
      %p491 = por %p489, %p490
      %p492 = scmp.ne.s32.totalorder %s481, %s482
      %p493 = scmp.eq.s32.totalorder %s51, 0
      %p494 = por %p492, %p493
      %p495 = scmp.ne.s32.totalorder %s481, %s482
      %p496 = scmp.eq.s32.totalorder %s52, 1
      %p497 = por %p495, %p496
      %p499 = scmp.ne.s32.totalorder %s482, %s498
      %p500 = scmp.eq.s32.totalorder %s52, 0
      %p501 = por %p499, %p500
      %s502 = ssub.s32 %s46, %s53
      %p503 = scmp.eq.s32.totalorder %s502, 0
      %s505 = sadd.s32 %s504, 1
      %s506 = scalar_select %p503, %s504, %s505
      %p509 = pneg %p503
      %p510 = scmp.eq.s32.totalorder %s46, 1
      %p511 = por %p509, %p510
      %p512 = scmp.ne.s32.totalorder %s504, %s507
      %p513 = scmp.eq.s32.totalorder %s46, 0
      %p514 = por %p512, %p513
      %p515 = scmp.ne.s32.totalorder %s504, %s507
      %p516 = scmp.eq.s32.totalorder %s51, 1
      %p517 = por %p515, %p516
      %p518 = scmp.ne.s32.totalorder %s507, %s508
      %p519 = scmp.eq.s32.totalorder %s51, 0
      %p520 = por %p518, %p519
      %p521 = scmp.ne.s32.totalorder %s507, %s508
      %p522 = scmp.eq.s32.totalorder %s52, 1
      %p523 = por %p521, %p522
      %p525 = scmp.ne.s32.totalorder %s508, %s524
      %p526 = scmp.eq.s32.totalorder %s52, 0
      %p527 = por %p525, %p526
      %s528 = ssub.s32 %s46, %s53
      %p529 = scmp.eq.s32.totalorder %s528, 0
      %s531 = sadd.s32 %s530, 1
      %s532 = scalar_select %p529, %s530, %s531
      %p535 = pneg %p529
      %p536 = scmp.eq.s32.totalorder %s46, 1
      %p537 = por %p535, %p536
      %p538 = scmp.ne.s32.totalorder %s530, %s533
      %p539 = scmp.eq.s32.totalorder %s46, 0
      %p540 = por %p538, %p539
      %p541 = scmp.ne.s32.totalorder %s530, %s533
      %p542 = scmp.eq.s32.totalorder %s51, 1
      %p543 = por %p541, %p542
      %p544 = scmp.ne.s32.totalorder %s533, %s534
      %p545 = scmp.eq.s32.totalorder %s51, 0
      %p546 = por %p544, %p545
      %p547 = scmp.ne.s32.totalorder %s533, %s534
      %p548 = scmp.eq.s32.totalorder %s52, 1
      %p549 = por %p547, %p548
      %p551 = scmp.ne.s32.totalorder %s534, %s550
      %p552 = scmp.eq.s32.totalorder %s52, 0
      %p553 = por %p551, %p552
      %s555 = sadd.s32 %s554, 1
      %p558 = scmp.eq.s32.totalorder %s46, 1
      %p559 = scmp.ne.s32.totalorder %s554, %s556
      %p560 = scmp.eq.s32.totalorder %s46, 0
      %p561 = por %p559, %p560
      %p562 = scmp.ne.s32.totalorder %s554, %s556
      %p563 = scmp.eq.s32.totalorder %s51, 1
      %p564 = por %p562, %p563
      %p565 = scmp.ne.s32.totalorder %s556, %s557
      %p566 = scmp.eq.s32.totalorder %s51, 0
      %p567 = por %p565, %p566
      %p568 = scmp.ne.s32.totalorder %s556, %s557
      %p569 = scmp.eq.s32.totalorder %s52, 1
      %p570 = por %p568, %p569
      %p572 = scmp.ne.s32.totalorder %s557, %s571
      %p573 = scmp.eq.s32.totalorder %s52, 0
      %p574 = por %p572, %p573
      %s576 = sadd.s32 %s575, 1
      %p579 = scmp.eq.s32.totalorder %s46, 1
      %p580 = scmp.ne.s32.totalorder %s575, %s577
      %p581 = scmp.eq.s32.totalorder %s46, 0
      %p582 = por %p580, %p581
      %p583 = scmp.ne.s32.totalorder %s575, %s577
      %p584 = scmp.eq.s32.totalorder %s51, 1
      %p585 = por %p583, %p584
      %p586 = scmp.ne.s32.totalorder %s577, %s578
      %p587 = scmp.eq.s32.totalorder %s51, 0
      %p588 = por %p586, %p587
      %p589 = scmp.ne.s32.totalorder %s577, %s578
      %p590 = scmp.eq.s32.totalorder %s52, 1
      %p591 = por %p589, %p590
      %p593 = scmp.ne.s32.totalorder %s578, %s592
      %p594 = scmp.eq.s32.totalorder %s52, 0
      %p595 = por %p593, %p594
      %s597 = sadd.s32 %s596, 1
      %p600 = scmp.eq.s32.totalorder %s46, 1
      %p601 = scmp.ne.s32.totalorder %s596, %s598
      %p602 = scmp.eq.s32.totalorder %s46, 0
      %p603 = por %p601, %p602
      %p604 = scmp.ne.s32.totalorder %s596, %s598
      %p605 = scmp.eq.s32.totalorder %s51, 1
      %p606 = por %p604, %p605
      %p607 = scmp.ne.s32.totalorder %s598, %s599
      %p608 = scmp.eq.s32.totalorder %s51, 0
      %p609 = por %p607, %p608
      %p610 = scmp.ne.s32.totalorder %s598, %s599
      %p611 = scmp.eq.s32.totalorder %s52, 1
      %p612 = por %p610, %p611
      %p614 = scmp.ne.s32.totalorder %s599, %s613
      %p615 = scmp.eq.s32.totalorder %s52, 0
      %p616 = por %p614, %p615
      %p617 = scmp.le.s32.totalorder 1, %s46
      %p618 = scmp.lt.s32.totalorder %s46, 3
      %p619 = pnand %p617, %p618
      %p620 = pneg %p619
      // Predicated region
      $region9: #{tpu_custom_call.1} parent=5 // pred_check
        _
      $region10: #{tpu_custom_call.1} parent=5 // pred_check_branch
        %622 = sbr.rel (%p619) target = $region12
      $region11: #{tpu_custom_call.1} parent=5 // pred_region
        %s623 = ssub.s32 %s46, 1
        // Predicated region
        $region13: #{tpu_custom_call.1} parent=11 // pred_check
          %p624 = pneg %p67
        $region14: #{tpu_custom_call.1} parent=11 // pred_check_branch
          %626 = sbr.rel (%p624) target = $region16
        $region15: #{tpu_custom_call.1} parent=11 // pred_region
          _
        $region16: #{tpu_custom_call.1} parent=11 // pred_fallthru
          _
        // Predicated region
        $region17: #{tpu_custom_call.1} parent=11 // pred_check
          %p627 = pneg %p88
        $region18: #{tpu_custom_call.1} parent=11 // pred_check_branch
          %629 = sbr.rel (%p627) target = $region20
        $region19: #{tpu_custom_call.1} parent=11 // pred_region
          %s631 = ssub.s32 512, 512
          %632 = vsyncadd [#allocation4], %s631
          %s633 = sshll.u32 [#allocation3], 4
          %s634 = int_to_ptr.vmem [resolvable:$true] %s633
          %639 = dma.hbm_to_vmem [thread:$0]  %s1, 512, %s634, [#allocation4], 128, 128, 8
        $region20: #{tpu_custom_call.1} parent=11 // pred_fallthru
          _
        // Predicated region
        $region21: #{tpu_custom_call.1} parent=11 // pred_check
          %p640 = pneg %p109
        $region22: #{tpu_custom_call.1} parent=11 // pred_check_branch
          %642 = sbr.rel (%p640) target = $region24
        $region23: #{tpu_custom_call.1} parent=11 // pred_region
          %s644 = ssub.s32 64, 64
          %645 = vsyncadd [#allocation7], %s644
          %s646 = sshll.u32 [#allocation6], 4
          %s647 = int_to_ptr.vmem [resolvable:$true] %s646
          %652 = dma.hbm_to_vmem [thread:$0]  %s2, 64, %s647, [#allocation7], 32, 32, 2
        $region24: #{tpu_custom_call.1} parent=11 // pred_fallthru
          _
        // Predicated region
        $region25: #{tpu_custom_call.1} parent=11 // pred_check
          %p653 = pneg %p130
        $region26: #{tpu_custom_call.1} parent=11 // pred_check_branch
          %655 = sbr.rel (%p653) target = $region28
        $region27: #{tpu_custom_call.1} parent=11 // pred_region
          %s657 = ssub.s32 64, 64
          %658 = vsyncadd [#allocation7], %s657
          %s659 = sshll.u32 [#allocation8], 4
          %s660 = int_to_ptr.vmem [resolvable:$true] %s659
          %665 = dma.hbm_to_vmem [thread:$0]  %s3, 64, %s660, [#allocation7], 32, 32, 2
        $region28: #{tpu_custom_call.1} parent=11 // pred_fallthru
          _
        // Predicated region
        $region29: #{tpu_custom_call.1} parent=11 // pred_check
          %p666 = pneg %p567
        $region30: #{tpu_custom_call.1} parent=11 // pred_check_branch
          %668 = sbr.rel (%p666) target = $region32
        $region31: #{tpu_custom_call.1} parent=11 // pred_region
          _
        $region32: #{tpu_custom_call.1} parent=11 // pred_fallthru
          _
        // Predicated region
        $region33: #{tpu_custom_call.1} parent=11 // pred_check
          %p669 = pneg %p588
        $region34: #{tpu_custom_call.1} parent=11 // pred_check_branch
          %671 = sbr.rel (%p669) target = $region36
        $region35: #{tpu_custom_call.1} parent=11 // pred_region
          _
        $region36: #{tpu_custom_call.1} parent=11 // pred_fallthru
          _
      $region12: #{tpu_custom_call.1} parent=5 // pred_fallthru
        _
      %p672 = scmp.lt.s32.totalorder %s46, 2
      // Predicated region
      $region37: #{tpu_custom_call.1} parent=5 // pred_check
        %p673 = pneg %p672
      $region38: #{tpu_custom_call.1} parent=5 // pred_check_branch
        %675 = sbr.rel (%p673) target = $region40
      $region39: #{tpu_custom_call.1} parent=5 // pred_region
        // Predicated region
        $region41: #{tpu_custom_call.1} parent=39 // pred_check
          %p676 = pneg %p150
        $region42: #{tpu_custom_call.1} parent=39 // pred_check_branch
          %678 = sbr.rel (%p676) target = $region44
        $region43: #{tpu_custom_call.1} parent=39 // pred_region
          %p679 = scmp.lt.s32.totalorder %s46, 1
          %s680 = scalar_select %p679, %s46, 1
          %s681 = smul.addr %s680, 4
          %s682 = smul.addr %s681, 8
          %s683 = scalar_lea.vmem %s4, %s682
        $region44: #{tpu_custom_call.1} parent=39 // pred_fallthru
          _
        // Predicated region
        $region45: #{tpu_custom_call.1} parent=39 // pred_check
          %p684 = pneg %p176
        $region46: #{tpu_custom_call.1} parent=39 // pred_check_branch
          %686 = sbr.rel (%p684) target = $region48
        $region47: #{tpu_custom_call.1} parent=39 // pred_region
          %s687 = sand.u32 %s46, 1
          %s688 = scalar_lea.sflag [#allocation10], %s687
          %s689 = sand.u32 %s166, 1
          %s690 = scalar_lea.vmem [#allocation9], %s689
          %s692 = ssub.s32 16, 16
          %693 = vsyncadd %s688, %s692
          %s694 = smul.addr %s46, 16
          %s695 = scalar_lea.hbm %s5, %s694
          %s697 = sshll.u32 %s690, 4
          %s698 = int_to_ptr.vmem [resolvable:$true] %s697
          %700 = dma.hbm_to_vmem [thread:$0]  %s695, 16, %s698, %s688
        $region48: #{tpu_custom_call.1} parent=39 // pred_fallthru
          _
        // Predicated region
        $region49: #{tpu_custom_call.1} parent=39 // pred_check
          %p701 = pneg %p202
        $region50: #{tpu_custom_call.1} parent=39 // pred_check_branch
          %703 = sbr.rel (%p701) target = $region52
        $region51: #{tpu_custom_call.1} parent=39 // pred_region
          %p704 = scmp.lt.s32.totalorder %s46, 1
          %s705 = scalar_select %p704, %s46, 1
          %s706 = smul.addr %s705, 4
          %s707 = smul.addr %s706, 8
          %s708 = scalar_lea.vmem %s6, %s707
        $region52: #{tpu_custom_call.1} parent=39 // pred_fallthru
          _
        // Predicated region
        $region53: #{tpu_custom_call.1} parent=39 // pred_check
          %p709 = pneg %p228
        $region54: #{tpu_custom_call.1} parent=39 // pred_check_branch
          %711 = sbr.rel (%p709) target = $region56
        $region55: #{tpu_custom_call.1} parent=39 // pred_region
          %s712 = sand.u32 %s46, 1
          %s713 = scalar_lea.sflag [#allocation10], %s712
          %s714 = sand.u32 %s218, 1
          %s715 = scalar_lea.vmem [#allocation11], %s714
          %s717 = ssub.s32 16, 16
          %718 = vsyncadd %s713, %s717
          %s719 = smul.addr %s46, 16
          %s720 = scalar_lea.hbm %s7, %s719
          %s722 = sshll.u32 %s715, 4
          %s723 = int_to_ptr.vmem [resolvable:$true] %s722
          %725 = dma.hbm_to_vmem [thread:$0]  %s720, 16, %s723, %s713
        $region56: #{tpu_custom_call.1} parent=39 // pred_fallthru
          _
        // Predicated region
        $region57: #{tpu_custom_call.1} parent=39 // pred_check
          %p726 = pneg %p254
        $region58: #{tpu_custom_call.1} parent=39 // pred_check_branch
          %728 = sbr.rel (%p726) target = $region60
        $region59: #{tpu_custom_call.1} parent=39 // pred_region
          %p729 = scmp.lt.s32.totalorder %s46, 1
          %s730 = scalar_select %p729, %s46, 1
          %s731 = smul.addr %s730, 4
          %s732 = smul.addr %s731, 8
          %s733 = scalar_lea.vmem %s8, %s732
        $region60: #{tpu_custom_call.1} parent=39 // pred_fallthru
          _
        // Predicated region
        $region61: #{tpu_custom_call.1} parent=39 // pred_check
          %p734 = pneg %p280
        $region62: #{tpu_custom_call.1} parent=39 // pred_check_branch
          %736 = sbr.rel (%p734) target = $region64
        $region63: #{tpu_custom_call.1} parent=39 // pred_region
          %s737 = sand.u32 %s46, 1
          %s738 = scalar_lea.sflag [#allocation13], %s737
          %s739 = sand.u32 %s270, 1
          %s740 = scalar_lea.vmem [#allocation12], %s739
          %s742 = ssub.s32 16, 16
          %743 = vsyncadd %s738, %s742
          %s744 = smul.addr %s46, 16
          %s745 = scalar_lea.hbm %s9, %s744
          %s747 = sshll.u32 %s740, 4
          %s748 = int_to_ptr.vmem [resolvable:$true] %s747
          %750 = dma.hbm_to_vmem [thread:$0]  %s745, 16, %s748, %s738
        $region64: #{tpu_custom_call.1} parent=39 // pred_fallthru
          _
        // Predicated region
        $region65: #{tpu_custom_call.1} parent=39 // pred_check
          %p751 = pneg %p306
        $region66: #{tpu_custom_call.1} parent=39 // pred_check_branch
          %753 = sbr.rel (%p751) target = $region68
        $region67: #{tpu_custom_call.1} parent=39 // pred_region
          %s754 = sand.u32 %s46, 1
          %s755 = scalar_lea.sflag [#allocation13], %s754
          %s756 = sand.u32 %s296, 1
          %s757 = smul.addr %s756, 32
          %s758 = scalar_lea.vmem [#allocation14], %s757
          %s760 = ssub.s32 512, 512
          %761 = vsyncadd %s755, %s760
          %s762 = smul.addr %s46, 4
          %s763 = smul.addr %s762, 128
          %s764 = scalar_lea.hbm %s10, %s763
          %s765 = sshll.u32 %s758, 4
          %s766 = int_to_ptr.vmem [resolvable:$true] %s765
          %771 = dma.hbm_to_vmem [thread:$0]  %s764, 512, %s766, %s755, 128, 128, 8
        $region68: #{tpu_custom_call.1} parent=39 // pred_fallthru
          _
        // Predicated region
        $region69: #{tpu_custom_call.1} parent=39 // pred_check
          %p772 = pneg %p332
        $region70: #{tpu_custom_call.1} parent=39 // pred_check_branch
          %774 = sbr.rel (%p772) target = $region72
        $region71: #{tpu_custom_call.1} parent=39 // pred_region
          %s775 = sand.u32 %s46, 1
          %s776 = scalar_lea.sflag [#allocation16], %s775
          %s777 = sand.u32 %s322, 1
          %s778 = scalar_lea.vmem [#allocation15], %s777
          %s780 = ssub.s32 16, 16
          %781 = vsyncadd %s776, %s780
          %s782 = smul.addr %s46, 16
          %s783 = scalar_lea.hbm %s11, %s782
          %s785 = sshll.u32 %s778, 4
          %s786 = int_to_ptr.vmem [resolvable:$true] %s785
          %788 = dma.hbm_to_vmem [thread:$0]  %s783, 16, %s786, %s776
        $region72: #{tpu_custom_call.1} parent=39 // pred_fallthru
          _
        // Predicated region
        $region73: #{tpu_custom_call.1} parent=39 // pred_check
          %p789 = pneg %p358
        $region74: #{tpu_custom_call.1} parent=39 // pred_check_branch
          %791 = sbr.rel (%p789) target = $region76
        $region75: #{tpu_custom_call.1} parent=39 // pred_region
          %s792 = sand.u32 %s46, 1
          %s793 = scalar_lea.sflag [#allocation16], %s792
          %s794 = sand.u32 %s348, 1
          %s795 = smul.addr %s794, 32
          %s796 = scalar_lea.vmem [#allocation17], %s795
          %s798 = ssub.s32 512, 512
          %799 = vsyncadd %s793, %s798
          %s800 = smul.addr %s46, 4
          %s801 = smul.addr %s800, 128
          %s802 = scalar_lea.hbm %s12, %s801
          %s803 = sshll.u32 %s796, 4
          %s804 = int_to_ptr.vmem [resolvable:$true] %s803
          %809 = dma.hbm_to_vmem [thread:$0]  %s802, 512, %s804, %s793, 128, 128, 8
        $region76: #{tpu_custom_call.1} parent=39 // pred_fallthru
          _
        // Predicated region
        $region77: #{tpu_custom_call.1} parent=39 // pred_check
          %p810 = pneg %p384
        $region78: #{tpu_custom_call.1} parent=39 // pred_check_branch
          %812 = sbr.rel (%p810) target = $region80
        $region79: #{tpu_custom_call.1} parent=39 // pred_region
          %s813 = sand.u32 %s46, 1
          %s814 = scalar_lea.sflag [#allocation19], %s813
          %s815 = sand.u32 %s374, 1
          %s816 = scalar_lea.vmem [#allocation18], %s815
          %s818 = ssub.s32 16, 16
          %819 = vsyncadd %s814, %s818
          %s820 = smul.addr %s46, 16
          %s821 = scalar_lea.hbm %s13, %s820
          %s823 = sshll.u32 %s816, 4
          %s824 = int_to_ptr.vmem [resolvable:$true] %s823
          %826 = dma.hbm_to_vmem [thread:$0]  %s821, 16, %s824, %s814
        $region80: #{tpu_custom_call.1} parent=39 // pred_fallthru
          _
        // Predicated region
        $region81: #{tpu_custom_call.1} parent=39 // pred_check
          %p827 = pneg %p410
        $region82: #{tpu_custom_call.1} parent=39 // pred_check_branch
          %829 = sbr.rel (%p827) target = $region84
        $region83: #{tpu_custom_call.1} parent=39 // pred_region
          %s830 = sand.u32 %s46, 1
          %s831 = scalar_lea.sflag [#allocation19], %s830
          %s832 = sand.u32 %s400, 1
          %s833 = smul.addr %s832, 32
          %s834 = scalar_lea.vmem [#allocation20], %s833
          %s836 = ssub.s32 512, 512
          %837 = vsyncadd %s831, %s836
          %s838 = smul.addr %s46, 4
          %s839 = smul.addr %s838, 128
          %s840 = scalar_lea.hbm %s14, %s839
          %s841 = sshll.u32 %s834, 4
          %s842 = int_to_ptr.vmem [resolvable:$true] %s841
          %847 = dma.hbm_to_vmem [thread:$0]  %s840, 512, %s842, %s831, 128, 128, 8
        $region84: #{tpu_custom_call.1} parent=39 // pred_fallthru
          _
        // Predicated region
        $region85: #{tpu_custom_call.1} parent=39 // pred_check
          %p848 = pneg %p436
        $region86: #{tpu_custom_call.1} parent=39 // pred_check_branch
          %850 = sbr.rel (%p848) target = $region88
        $region87: #{tpu_custom_call.1} parent=39 // pred_region
          %s851 = sand.u32 %s46, 1
          %s852 = scalar_lea.sflag [#allocation22], %s851
          %s853 = sand.u32 %s426, 1
          %s854 = scalar_lea.vmem [#allocation21], %s853
          %s856 = ssub.s32 16, 16
          %857 = vsyncadd %s852, %s856
          %s858 = smul.addr %s46, 16
          %s859 = scalar_lea.hbm %s15, %s858
          %s861 = sshll.u32 %s854, 4
          %s862 = int_to_ptr.vmem [resolvable:$true] %s861
          %864 = dma.hbm_to_vmem [thread:$0]  %s859, 16, %s862, %s852
        $region88: #{tpu_custom_call.1} parent=39 // pred_fallthru
          _
        // Predicated region
        $region89: #{tpu_custom_call.1} parent=39 // pred_check
          %p865 = pneg %p462
        $region90: #{tpu_custom_call.1} parent=39 // pred_check_branch
          %867 = sbr.rel (%p865) target = $region92
        $region91: #{tpu_custom_call.1} parent=39 // pred_region
          %p868 = scmp.lt.s32.totalorder %s46, 1
          %s869 = scalar_select %p868, %s46, 1
          %s870 = smul.addr %s869, 8
          %s871 = smul.addr %s870, 8
          %s872 = scalar_lea.vmem %s16, %s871
        $region92: #{tpu_custom_call.1} parent=39 // pred_fallthru
          _
        // Predicated region
        $region93: #{tpu_custom_call.1} parent=39 // pred_check
          %p873 = pneg %p488
        $region94: #{tpu_custom_call.1} parent=39 // pred_check_branch
          %875 = sbr.rel (%p873) target = $region96
        $region95: #{tpu_custom_call.1} parent=39 // pred_region
          %s876 = sand.u32 %s46, 1
          %s877 = scalar_lea.sflag [#allocation22], %s876
          %s878 = sand.u32 %s478, 1
          %s879 = scalar_lea.vmem [#allocation23], %s878
          %s881 = ssub.s32 16, 16
          %882 = vsyncadd %s877, %s881
          %s883 = smul.addr %s46, 16
          %s884 = scalar_lea.hbm %s17, %s883
          %s886 = sshll.u32 %s879, 4
          %s887 = int_to_ptr.vmem [resolvable:$true] %s886
          %889 = dma.hbm_to_vmem [thread:$0]  %s884, 16, %s887, %s877
        $region96: #{tpu_custom_call.1} parent=39 // pred_fallthru
          _
        // Predicated region
        $region97: #{tpu_custom_call.1} parent=39 // pred_check
          %p890 = pneg %p514
        $region98: #{tpu_custom_call.1} parent=39 // pred_check_branch
          %892 = sbr.rel (%p890) target = $region100
        $region99: #{tpu_custom_call.1} parent=39 // pred_region
          %p893 = scmp.lt.s32.totalorder %s46, 1
          %s894 = scalar_select %p893, %s46, 1
          %s895 = smul.addr %s894, 4
          %s896 = scalar_lea.vmem %s18, %s895
        $region100: #{tpu_custom_call.1} parent=39 // pred_fallthru
          _
        // Predicated region
        $region101: #{tpu_custom_call.1} parent=39 // pred_check
          %p897 = pneg %p540
        $region102: #{tpu_custom_call.1} parent=39 // pred_check_branch
          %899 = sbr.rel (%p897) target = $region104
        $region103: #{tpu_custom_call.1} parent=39 // pred_region
          %p900 = scmp.lt.s32.totalorder %s46, 1
          %s901 = scalar_select %p900, %s46, 1
          %s902 = smul.addr %s901, 4
          %s903 = scalar_lea.vmem %s19, %s902
        $region104: #{tpu_custom_call.1} parent=39 // pred_fallthru
          _
      $region40: #{tpu_custom_call.1} parent=5 // pred_fallthru
        _
      %p904 = scmp.le.s32.totalorder 1, %s46
      %p905 = scmp.lt.s32.totalorder %s46, 3
      %p906 = pnand %p904, %p905
      %p907 = pneg %p906
      // Predicated region
      $region105: #{tpu_custom_call.1} parent=5 // pred_check
        _
      $region106: #{tpu_custom_call.1} parent=5 // pred_check_branch
        %909 = sbr.rel (%p906) target = $region108
      $region107: #{tpu_custom_call.1} parent=5 // pred_region
        %s910 = ssub.s32 %s46, 1
        // Predicated region
        $region109: #{tpu_custom_call.1} parent=107 // pred_check
          %p911 = pneg %p88
        $region110: #{tpu_custom_call.1} parent=107 // pred_check_branch
          %913 = sbr.rel (%p911) target = $region112
        $region111: #{tpu_custom_call.1} parent=107 // pred_region
          %914 = dma.done [#allocation4], 512
        $region112: #{tpu_custom_call.1} parent=107 // pred_fallthru
          _
        // Predicated region
        $region113: #{tpu_custom_call.1} parent=107 // pred_check
          %p915 = pneg %p109
        $region114: #{tpu_custom_call.1} parent=107 // pred_check_branch
          %917 = sbr.rel (%p915) target = $region116
        $region115: #{tpu_custom_call.1} parent=107 // pred_region
          %918 = dma.done [#allocation7], 64
        $region116: #{tpu_custom_call.1} parent=107 // pred_fallthru
          _
        // Predicated region
        $region117: #{tpu_custom_call.1} parent=107 // pred_check
          %p919 = pneg %p130
        $region118: #{tpu_custom_call.1} parent=107 // pred_check_branch
          %921 = sbr.rel (%p919) target = $region120
        $region119: #{tpu_custom_call.1} parent=107 // pred_region
          %922 = dma.done [#allocation7], 64
        $region120: #{tpu_custom_call.1} parent=107 // pred_fallthru
          _
        %s923 = sand.u32 %s51, 1
        %s924 = scalar_lea.sflag [#allocation10], %s923
        %s925 = sand.u32 %s169, 1
        %s926 = scalar_lea.vmem [#allocation9], %s925
        // Predicated region
        $region121: #{tpu_custom_call.1} parent=107 // pred_check
          %p927 = pneg %p182
        $region122: #{tpu_custom_call.1} parent=107 // pred_check_branch
          %929 = sbr.rel (%p927) target = $region124
        $region123: #{tpu_custom_call.1} parent=107 // pred_region
          %930 = dma.done %s924, 16
        $region124: #{tpu_custom_call.1} parent=107 // pred_fallthru
          _
        %s931 = sand.u32 %s51, 1
        %s932 = scalar_lea.sflag [#allocation10], %s931
        %s933 = sand.u32 %s221, 1
        %s934 = scalar_lea.vmem [#allocation11], %s933
        // Predicated region
        $region125: #{tpu_custom_call.1} parent=107 // pred_check
          %p935 = pneg %p234
        $region126: #{tpu_custom_call.1} parent=107 // pred_check_branch
          %937 = sbr.rel (%p935) target = $region128
        $region127: #{tpu_custom_call.1} parent=107 // pred_region
          %938 = dma.done %s932, 16
        $region128: #{tpu_custom_call.1} parent=107 // pred_fallthru
          _
        %s939 = sand.u32 %s51, 1
        %s940 = scalar_lea.sflag [#allocation13], %s939
        %s941 = sand.u32 %s273, 1
        %s942 = scalar_lea.vmem [#allocation12], %s941
        // Predicated region
        $region129: #{tpu_custom_call.1} parent=107 // pred_check
          %p943 = pneg %p286
        $region130: #{tpu_custom_call.1} parent=107 // pred_check_branch
          %945 = sbr.rel (%p943) target = $region132
        $region131: #{tpu_custom_call.1} parent=107 // pred_region
          %946 = dma.done %s940, 16
        $region132: #{tpu_custom_call.1} parent=107 // pred_fallthru
          _
        %s947 = sand.u32 %s51, 1
        %s948 = scalar_lea.sflag [#allocation13], %s947
        %s949 = sand.u32 %s299, 1
        %s950 = smul.addr %s949, 32
        %s951 = scalar_lea.vmem [#allocation14], %s950
        // Predicated region
        $region133: #{tpu_custom_call.1} parent=107 // pred_check
          %p952 = pneg %p312
        $region134: #{tpu_custom_call.1} parent=107 // pred_check_branch
          %954 = sbr.rel (%p952) target = $region136
        $region135: #{tpu_custom_call.1} parent=107 // pred_region
          %955 = dma.done %s948, 512
        $region136: #{tpu_custom_call.1} parent=107 // pred_fallthru
          _
        %s956 = sand.u32 %s51, 1
        %s957 = scalar_lea.sflag [#allocation16], %s956
        %s958 = sand.u32 %s325, 1
        %s959 = scalar_lea.vmem [#allocation15], %s958
        // Predicated region
        $region137: #{tpu_custom_call.1} parent=107 // pred_check
          %p960 = pneg %p338
        $region138: #{tpu_custom_call.1} parent=107 // pred_check_branch
          %962 = sbr.rel (%p960) target = $region140
        $region139: #{tpu_custom_call.1} parent=107 // pred_region
          %963 = dma.done %s957, 16
        $region140: #{tpu_custom_call.1} parent=107 // pred_fallthru
          _
        %s964 = sand.u32 %s51, 1
        %s965 = scalar_lea.sflag [#allocation16], %s964
        %s966 = sand.u32 %s351, 1
        %s967 = smul.addr %s966, 32
        %s968 = scalar_lea.vmem [#allocation17], %s967
        // Predicated region
        $region141: #{tpu_custom_call.1} parent=107 // pred_check
          %p969 = pneg %p364
        $region142: #{tpu_custom_call.1} parent=107 // pred_check_branch
          %971 = sbr.rel (%p969) target = $region144
        $region143: #{tpu_custom_call.1} parent=107 // pred_region
          %972 = dma.done %s965, 512
        $region144: #{tpu_custom_call.1} parent=107 // pred_fallthru
          _
        %s973 = sand.u32 %s51, 1
        %s974 = scalar_lea.sflag [#allocation19], %s973
        %s975 = sand.u32 %s377, 1
        %s976 = scalar_lea.vmem [#allocation18], %s975
        // Predicated region
        $region145: #{tpu_custom_call.1} parent=107 // pred_check
          %p977 = pneg %p390
        $region146: #{tpu_custom_call.1} parent=107 // pred_check_branch
          %979 = sbr.rel (%p977) target = $region148
        $region147: #{tpu_custom_call.1} parent=107 // pred_region
          %980 = dma.done %s974, 16
        $region148: #{tpu_custom_call.1} parent=107 // pred_fallthru
          _
        %s981 = sand.u32 %s51, 1
        %s982 = scalar_lea.sflag [#allocation19], %s981
        %s983 = sand.u32 %s403, 1
        %s984 = smul.addr %s983, 32
        %s985 = scalar_lea.vmem [#allocation20], %s984
        // Predicated region
        $region149: #{tpu_custom_call.1} parent=107 // pred_check
          %p986 = pneg %p416
        $region150: #{tpu_custom_call.1} parent=107 // pred_check_branch
          %988 = sbr.rel (%p986) target = $region152
        $region151: #{tpu_custom_call.1} parent=107 // pred_region
          %989 = dma.done %s982, 512
        $region152: #{tpu_custom_call.1} parent=107 // pred_fallthru
          _
        %s990 = sand.u32 %s51, 1
        %s991 = scalar_lea.sflag [#allocation22], %s990
        %s992 = sand.u32 %s429, 1
        %s993 = scalar_lea.vmem [#allocation21], %s992
        // Predicated region
        $region153: #{tpu_custom_call.1} parent=107 // pred_check
          %p994 = pneg %p442
        $region154: #{tpu_custom_call.1} parent=107 // pred_check_branch
          %996 = sbr.rel (%p994) target = $region156
        $region155: #{tpu_custom_call.1} parent=107 // pred_region
          %997 = dma.done %s991, 16
        $region156: #{tpu_custom_call.1} parent=107 // pred_fallthru
          _
        %s998 = sand.u32 %s51, 1
        %s999 = scalar_lea.sflag [#allocation22], %s998
        %s1000 = sand.u32 %s481, 1
        %s1001 = scalar_lea.vmem [#allocation23], %s1000
        // Predicated region
        $region157: #{tpu_custom_call.1} parent=107 // pred_check
          %p1002 = pneg %p494
        $region158: #{tpu_custom_call.1} parent=107 // pred_check_branch
          %1004 = sbr.rel (%p1002) target = $region160
        $region159: #{tpu_custom_call.1} parent=107 // pred_region
          %1005 = dma.done %s999, 16
        $region160: #{tpu_custom_call.1} parent=107 // pred_fallthru
          _
        %p1006 = pneg %p67
        %p1007 = pneg %p64
        %p1008 = pneg %p88
        %p1009 = pneg %p85
        %p1010 = pneg %p109
        %p1011 = pneg %p106
        %p1012 = pneg %p130
        %p1013 = pneg %p127
        %p1014 = scmp.lt.s32.totalorder %s51, 1
        %s1015 = scalar_select %p1014, %s51, 1
        %s1016 = smul.addr %s1015, 4
        %s1017 = smul.addr %s1016, 8
        %s1018 = scalar_lea.vmem %s4, %s1017
        %p1019 = pneg %p156
        %p1020 = pneg %p153
        %s1021 = sand.u32 %s51, 1
        %s1022 = scalar_lea.sflag [#allocation10], %s1021
        %s1023 = sand.u32 %s169, 1
        %s1024 = scalar_lea.vmem [#allocation9], %s1023
        %p1025 = pneg %p182
        %p1026 = pneg %p179
        %p1027 = scmp.lt.s32.totalorder %s51, 1
        %s1028 = scalar_select %p1027, %s51, 1
        %s1029 = smul.addr %s1028, 4
        %s1030 = smul.addr %s1029, 8
        %s1031 = scalar_lea.vmem %s6, %s1030
        %p1032 = pneg %p208
        %p1033 = pneg %p205
        %s1034 = sand.u32 %s51, 1
        %s1035 = scalar_lea.sflag [#allocation10], %s1034
        %s1036 = sand.u32 %s221, 1
        %s1037 = scalar_lea.vmem [#allocation11], %s1036
        %p1038 = pneg %p234
        %p1039 = pneg %p231
        %p1040 = scmp.lt.s32.totalorder %s51, 1
        %s1041 = scalar_select %p1040, %s51, 1
        %s1042 = smul.addr %s1041, 4
        %s1043 = smul.addr %s1042, 8
        %s1044 = scalar_lea.vmem %s8, %s1043
        %p1045 = pneg %p260
        %p1046 = pneg %p257
        %s1047 = sand.u32 %s51, 1
        %s1048 = scalar_lea.sflag [#allocation13], %s1047
        %s1049 = sand.u32 %s273, 1
        %s1050 = scalar_lea.vmem [#allocation12], %s1049
        %p1051 = pneg %p286
        %p1052 = pneg %p283
        %s1053 = sand.u32 %s51, 1
        %s1054 = scalar_lea.sflag [#allocation13], %s1053
        %s1055 = sand.u32 %s299, 1
        %s1056 = smul.addr %s1055, 32
        %s1057 = scalar_lea.vmem [#allocation14], %s1056
        %p1058 = pneg %p312
        %p1059 = pneg %p309
        %s1060 = sand.u32 %s51, 1
        %s1061 = scalar_lea.sflag [#allocation16], %s1060
        %s1062 = sand.u32 %s325, 1
        %s1063 = scalar_lea.vmem [#allocation15], %s1062
        %p1064 = pneg %p338
        %p1065 = pneg %p335
        %s1066 = sand.u32 %s51, 1
        %s1067 = scalar_lea.sflag [#allocation16], %s1066
        %s1068 = sand.u32 %s351, 1
        %s1069 = smul.addr %s1068, 32
        %s1070 = scalar_lea.vmem [#allocation17], %s1069
        %p1071 = pneg %p364
        %p1072 = pneg %p361
        %s1073 = sand.u32 %s51, 1
        %s1074 = scalar_lea.sflag [#allocation19], %s1073
        %s1075 = sand.u32 %s377, 1
        %s1076 = scalar_lea.vmem [#allocation18], %s1075
        %p1077 = pneg %p390
        %p1078 = pneg %p387
        %s1079 = sand.u32 %s51, 1
        %s1080 = scalar_lea.sflag [#allocation19], %s1079
        %s1081 = sand.u32 %s403, 1
        %s1082 = smul.addr %s1081, 32
        %s1083 = scalar_lea.vmem [#allocation20], %s1082
        %p1084 = pneg %p416
        %p1085 = pneg %p413
        %s1086 = sand.u32 %s51, 1
        %s1087 = scalar_lea.sflag [#allocation22], %s1086
        %s1088 = sand.u32 %s429, 1
        %s1089 = scalar_lea.vmem [#allocation21], %s1088
        %p1090 = pneg %p442
        %p1091 = pneg %p439
        %p1092 = scmp.lt.s32.totalorder %s51, 1
        %s1093 = scalar_select %p1092, %s51, 1
        %s1094 = smul.addr %s1093, 8
        %s1095 = smul.addr %s1094, 8
        %s1096 = scalar_lea.vmem %s16, %s1095
        %p1097 = pneg %p468
        %p1098 = pneg %p465
        %s1099 = sand.u32 %s51, 1
        %s1100 = scalar_lea.sflag [#allocation22], %s1099
        %s1101 = sand.u32 %s481, 1
        %s1102 = scalar_lea.vmem [#allocation23], %s1101
        %p1103 = pneg %p494
        %p1104 = pneg %p491
        %p1105 = scmp.lt.s32.totalorder %s51, 1
        %s1106 = scalar_select %p1105, %s51, 1
        %s1107 = smul.addr %s1106, 4
        %s1108 = scalar_lea.vmem %s18, %s1107
        %p1109 = pneg %p520
        %p1110 = pneg %p517
        %p1111 = scmp.lt.s32.totalorder %s51, 1
        %s1112 = scalar_select %p1111, %s51, 1
        %s1113 = smul.addr %s1112, 4
        %s1114 = scalar_lea.vmem %s19, %s1113
        %p1115 = pneg %p546
        %p1116 = pneg %p543
        %p1117 = pneg %p567
        %p1118 = pneg %p564
        %p1119 = pneg %p588
        %p1120 = pneg %p585
        %p1121 = pneg %p609
        %p1122 = pneg %p606
        %p1123 = scmp.lt.s32.totalorder %s51, 1
        %s1124 = scalar_select %p1123, %s51, 1
        %s1125 = smul.addr %s1124, 4
        %s1126 = smul.addr %s1125, 8
        %s1127 = scalar_lea.vmem %s4, %s1126
        %p1128 = scmp.lt.s32.totalorder %s51, 1
        %s1129 = scalar_select %p1128, %s51, 1
        %s1130 = smul.addr %s1129, 4
        %s1131 = smul.addr %s1130, 8
        %s1132 = scalar_lea.vmem %s6, %s1131
        %p1133 = scmp.lt.s32.totalorder %s51, 1
        %s1134 = scalar_select %p1133, %s51, 1
        %s1135 = smul.addr %s1134, 4
        %s1136 = smul.addr %s1135, 8
        %s1137 = scalar_lea.vmem %s8, %s1136
        %p1138 = scmp.lt.s32.totalorder %s51, 1
        %s1139 = scalar_select %p1138, %s51, 1
        %s1140 = smul.addr %s1139, 8
        %s1141 = smul.addr %s1140, 8
        %s1142 = scalar_lea.vmem %s16, %s1141
        %p1143 = scmp.lt.s32.totalorder %s51, 1
        %s1144 = scalar_select %p1143, %s51, 1
        %s1145 = smul.addr %s1144, 4
        %s1146 = scalar_lea.vmem %s18, %s1145
        %p1147 = scmp.lt.s32.totalorder %s51, 1
        %s1148 = scalar_select %p1147, %s51, 1
        %s1149 = smul.addr %s1148, 4
        %s1150 = scalar_lea.vmem %s19, %s1149
        %p1153 = scmp.eq.s32.totalorder %s51, 0
        // Predicated region
        $region161: #{tpu_custom_call.1} parent=107 // pred_check
          %p1154 = pneg %p1153
        $region162: #{tpu_custom_call.1} parent=107 // pred_check_branch
          %1156 = sbr.rel (%p1154) target = $region164
        $region163: #{tpu_custom_call.1} parent=107 // pred_region
          %v1157 = vld [vmem:[%s0] sm:$0xff]
          %v1158 = vld [vmem:[%s0 + $0x8] sm:$0xff]
          %vm1159 = vcmask 261120
          %1160 = vst.msk [vmem:[#allocation2] sm:$0xff] %vm1159, %v1157
          %1161 = vst.msk [vmem:[#allocation2 + $0x8] sm:$0xff] %vm1159, %v1158
        $region164: #{tpu_custom_call.1} parent=107 // pred_fallthru
          _
        %v1162 = vld [vmem:[#allocation2] sm:$0xff]
        %v1163 = vld [vmem:[#allocation2 + $0x8] sm:$0xff]
        %v1164 = vld [vmem:[#allocation3] sm:$0xff]
        %v1165 = vld [vmem:[#allocation3 + $0x8] sm:$0xff]
        %v1166 = vld [vmem:[#allocation3 + $0x10] sm:$0xff]
        %v1167 = vld [vmem:[#allocation3 + $0x18] sm:$0xff]
        %v1168 = vld [vmem:[#allocation6] sm:$0x3]
        %v1169 = vld [vmem:[#allocation6 + $0x2] sm:$0x3]
        %vm1170 = vnez %v1168
        %vm1171 = vnez %v1169
        %v1172 = vld [vmem:[#allocation8] sm:$0x3]
        %v1173 = vld [vmem:[#allocation8 + $0x2] sm:$0x3]
        %vm1174 = vnez %v1172
        %vm1175 = vnez %v1173
        %v1176 = vld [vmem:[%s1146] sm:$0x7]
        %v1177 = vld [vmem:[%s1150] sm:$0x7]
        %vm1178 = vcmask 261120
        %v1179 = vsel %vm1178, %v1162, 0.0
        %1180 = vadd.xlane.f32.xlu0 %v1179
        %v1181 = vpop.xlane.xlu0 %1180
        %v1182 = vsel %vm1178, %v1163, 0.0
        %1183 = vadd.xlane.f32.xlu0 %v1182
        %v1184 = vpop.xlane.xlu0 %1183
        %v1185 = vrcp.pop 32.0
        %v1186 = vmul.f32 %v1181, %v1185
        %v1187 = vmul.f32 %v1184, %v1185
        %v1188 = vsub.f32 %v1162, %v1186
        %v1189 = vsub.f32 %v1163, %v1187
        %v1190 = vmul.f32 %v1188, %v1188
        %v1191 = vmul.f32 %v1189, %v1189
        %v1192 = vsel %vm1178, %v1190, 0.0
        %1193 = vadd.xlane.f32.xlu0 %v1192
        %v1194 = vpop.xlane.xlu0 %1193
        %v1195 = vsel %vm1178, %v1191, 0.0
        %1196 = vadd.xlane.f32.xlu0 %v1195
        %v1197 = vpop.xlane.xlu0 %1196
        %v1198 = vmul.f32 %v1194, 0.032258064
        %v1199 = vmul.f32 %v1197, 0.032258064
        %v1200 = vrsqrt.pop %v1198
        %v1201 = vmul.f32 %v1198, %v1200
        %vm1202 = vcmp.eq.f32.partialorder %v1198, inf
        %v1203 = vsel %vm1202, %v1198, %v1201
        %vm1204 = vcmp.eq.f32.partialorder %v1198, 0.0
        %v1205 = vand.u32 %v1198, 2147483648
        %v1206 = vsel %vm1204, %v1205, %v1203
        %v1207 = vrsqrt.pop %v1199
        %v1208 = vmul.f32 %v1199, %v1207
        %vm1209 = vcmp.eq.f32.partialorder %v1199, inf
        %v1210 = vsel %vm1209, %v1199, %v1208
        %vm1211 = vcmp.eq.f32.partialorder %v1199, 0.0
        %v1212 = vand.u32 %v1199, 2147483648
        %v1213 = vsel %vm1211, %v1212, %v1210
        %v1214 = vadd.f32 %v1206, 1e-06
        %v1215 = vadd.f32 %v1213, 1e-06
        %v1216 = vrcp.pop %v1214
        %v1217 = vrcp.pop %v1215
        %v1218 = vlaneseq
        %v1219 = vshrl.u32 %v1218, 7
        %v1220 = vsub.s32 0, %v1219
        %v1221 = vrot.slane %v1176, %v1220
        %v1222 = vmul.f32 %v1221, %v1188
        %v1223 = vmul.f32 %v1221, %v1189
        %v1224 = vmul.f32 %v1222, %v1216
        %v1225 = vmul.f32 %v1223, %v1217
        %v1226 = vlaneseq
        %v1227 = vshrl.u32 %v1226, 7
        %v1228 = vsub.s32 0, %v1227
        %v1229 = vrot.slane %v1177, %v1228
        %v1230 = vadd.f32 %v1224, %v1229
        %v1231 = vadd.f32 %v1225, %v1229
        %v1232 = vld [vmem:[%s1127] sm:$0xff]
        %v1233 = vld [vmem:[%s1127 + $0x8] sm:$0xff]
        %v1234 = vld [vmem:[%s1127 + $0x10] sm:$0xff]
        %v1235 = vld [vmem:[%s1127 + $0x18] sm:$0xff]
        %v1236 = vld [vmem:[%s926] sm:$0x1]
        %v1238 = vlaneseq
        %v1239 = vshrl.u32 %v1238, 7
        %v1240 = vsub.s32 0, %v1239
        %v1241 = vrot.slane %v1236, %v1240
        %v1244 = vsel %vm1178, %v1230, 0
        %v1247 = vsel %vm1178, %v1231, 0
        %1249 = vmatprep.subr.mxu0 0.0
        %1250 = vmatpush1.msra.mxu0 %v1232
        %1251 = vmatprep.subr.mxu0 0.0
        %1252 = vmatpush1.msra.mxu0 %v1233
        %1253 = vmatprep.subr.mxu0 0.0
        %1254 = vmatpush1.msra.mxu0 %v1234
        %1255 = vmatprep.subr.mxu0 0.0
        %1256 = vmatpush1.msra.mxu0 %v1235
        %1257 = vmatprep.subr.mxu0 0.0
        %1258 = vmatpush1.msra.mxu0 0.0
        %1259 = vmatprep.subr.mxu0 0.0
        %1260 = vmatpush1.msra.mxu0 0.0
        %1261 = vmatprep.subr.mxu0 0.0
        %1262 = vmatpush1.msra.mxu0 0.0
        %1263 = vmatprep.subr.mxu0 0.0
        %1264 = vmatpush1.msra.mxu0 0.0
        %1265 = vmatprep.subr.mxu0 0.0
        %1266 = vmatpush1.msra.mxu0 0.0
        %1267 = vmatprep.subr.mxu0 0.0
        %1268 = vmatpush1.msra.mxu0 0.0
        %1269 = vmatprep.subr.mxu0 0.0
        %1270 = vmatpush1.msra.mxu0 0.0
        %1271 = vmatprep.subr.mxu0 0.0
        %1272 = vmatpush1.msra.mxu0 0.0
        %1273 = vmatprep.subr.mxu0 0.0
        %1274 = vmatpush1.msra.mxu0 0.0
        %1275 = vmatprep.subr.mxu0 0.0
        %1276 = vmatpush1.msra.mxu0 0.0
        %1277 = vmatprep.subr.mxu0 0.0
        %1278 = vmatpush1.msra.mxu0 0.0
        %1279 = vmatprep.subr.mxu0 0.0
        %1280 = vmatpush1.msra.mxu0 0.0
        %1281 = vmatprep.subr.mxu0 0.0
        %1282 = vmatpush1.msra.mxu0 0.0
        %1283 = vmatprep.subr.mxu0 0.0
        %1284 = vmatpush1.msra.mxu0 0.0
        %1285 = vmatprep.subr.mxu0 0.0
        %1286 = vmatpush1.msra.mxu0 0.0
        %1287 = vmatprep.subr.mxu0 0.0
        %1288 = vmatpush1.msra.mxu0 0.0
        %1289 = vmatprep.subr.mxu0 0.0
        %1290 = vmatpush1.msra.mxu0 0.0
        %1291 = vmatprep.subr.mxu0 0.0
        %1292 = vmatpush1.msra.mxu0 0.0
        %1293 = vmatprep.subr.mxu0 0.0
        %1294 = vmatpush1.msra.mxu0 0.0
        %1295 = vmatprep.subr.mxu0 0.0
        %1296 = vmatpush1.msra.mxu0 0.0
        %1297 = vmatprep.subr.mxu0 0.0
        %1298 = vmatpush1.msra.mxu0 0.0
        %1299 = vmatprep.subr.mxu0 0.0
        %1300 = vmatpush1.msra.mxu0 0.0
        %1301 = vmatprep.subr.mxu0 0.0
        %1302 = vmatpush1.msra.mxu0 0.0
        %1303 = vmatprep.subr.mxu0 0.0
        %1304 = vmatpush1.msra.mxu0 0.0
        %1305 = vmatprep.subr.mxu0 0.0
        %1306 = vmatpush1.msra.mxu0 0.0
        %1307 = vmatprep.subr.mxu0 0.0
        %1308 = vmatpush1.msra.mxu0 0.0
        %1309 = vmatprep.subr.mxu0 0.0
        %1310 = vmatpush1.msra.mxu0 0.0
        %1311 = vmatprep.subr.mxu0 0.0
        %1312 = vmatpush1.msra.mxu0 0.0
        %1313 = vmatprep.mubr.f32.mxu0 0.0
        %1314 = vmatmul.mubr.f32.gmra.mrb[0].mxu0 %v1244
        %v1315 = vpop.f32.mrb[0].mxu0
        %v1316 = vadd.f32 %v1241, %v1315
        %v1317 = vpop.f32.mrb[0].mxu0
        %1318 = vmatprep.mubr.f32.mxu0 0.0
        %1319 = vmatmul.mubr.f32.gmra.mrb[0].mxu0 %v1247
        %v1320 = vpop.f32.mrb[0].mxu0
        %v1321 = vadd.f32 %v1241, %v1320
        %v1322 = vpop.f32.mrb[0].mxu0
        %1323 = vdwg.mxu0
        %1325 = vrot.lane.b32.xlu0 %v1316, 96
        %v1326 = vpop.permute.xlu0 %1325
        %vm1327 = vcmask 64512
        %v1328 = vsel %vm1327, %v1316, 0
        %v1330 = vsel %vm1327, %v1326, 0
        %1332 = vmatprep.subr.mxu0 0.0
        %1333 = vmatpush1.xpose.msra.mxu0 %v1330
        %1334 = vmatprep.subr.mxu0 0.0
        %1335 = vmatpush1.xpose.msra.mxu0 0.0
        %1336 = vmatprep.subr.mxu0 0.0
        %1337 = vmatpush1.xpose.msra.mxu0 0.0
        %1338 = vmatprep.subr.mxu0 0.0
        %1339 = vmatpush1.xpose.msra.mxu0 0.0
        %1340 = vmatprep.subr.mxu0 0.0
        %1341 = vmatpush1.xpose.msra.mxu0 0.0
        %1342 = vmatprep.subr.mxu0 0.0
        %1343 = vmatpush1.xpose.msra.mxu0 0.0
        %1344 = vmatprep.subr.mxu0 0.0
        %1345 = vmatpush1.xpose.msra.mxu0 0.0
        %1346 = vmatprep.subr.mxu0 0.0
        %1347 = vmatpush1.xpose.msra.mxu0 0.0
        %1348 = vmatprep.subr.mxu0 0.0
        %1349 = vmatpush1.xpose.msra.mxu0 0.0
        %1350 = vmatprep.subr.mxu0 0.0
        %1351 = vmatpush1.xpose.msra.mxu0 0.0
        %1352 = vmatprep.subr.mxu0 0.0
        %1353 = vmatpush1.xpose.msra.mxu0 0.0
        %1354 = vmatprep.subr.mxu0 0.0
        %1355 = vmatpush1.xpose.msra.mxu0 0.0
        %1356 = vmatprep.subr.mxu0 0.0
        %1357 = vmatpush1.xpose.msra.mxu0 0.0
        %1358 = vmatprep.subr.mxu0 0.0
        %1359 = vmatpush1.xpose.msra.mxu0 0.0
        %1360 = vmatprep.subr.mxu0 0.0
        %1361 = vmatpush1.xpose.msra.mxu0 0.0
        %1362 = vmatprep.subr.mxu0 0.0
        %1363 = vmatpush1.xpose.msra.mxu0 0.0
        %1364 = vmatprep.subr.mxu0 0.0
        %1365 = vmatpush1.xpose.msra.mxu0 0.0
        %1366 = vmatprep.subr.mxu0 0.0
        %1367 = vmatpush1.xpose.msra.mxu0 0.0
        %1368 = vmatprep.subr.mxu0 0.0
        %1369 = vmatpush1.xpose.msra.mxu0 0.0
        %1370 = vmatprep.subr.mxu0 0.0
        %1371 = vmatpush1.xpose.msra.mxu0 0.0
        %1372 = vmatprep.subr.mxu0 0.0
        %1373 = vmatpush1.xpose.msra.mxu0 0.0
        %1374 = vmatprep.subr.mxu0 0.0
        %1375 = vmatpush1.xpose.msra.mxu0 0.0
        %1376 = vmatprep.subr.mxu0 0.0
        %1377 = vmatpush1.xpose.msra.mxu0 0.0
        %1378 = vmatprep.subr.mxu0 0.0
        %1379 = vmatpush1.xpose.msra.mxu0 0.0
        %1380 = vmatprep.subr.mxu0 0.0
        %1381 = vmatpush1.xpose.msra.mxu0 0.0
        %1382 = vmatprep.subr.mxu0 0.0
        %1383 = vmatpush1.xpose.msra.mxu0 0.0
        %1384 = vmatprep.subr.mxu0 0.0
        %1385 = vmatpush1.xpose.msra.mxu0 0.0
        %1386 = vmatprep.subr.mxu0 0.0
        %1387 = vmatpush1.xpose.msra.mxu0 0.0
        %1388 = vmatprep.subr.mxu0 0.0
        %1389 = vmatpush1.xpose.msra.mxu0 0.0
        %1390 = vmatprep.subr.mxu0 0.0
        %1391 = vmatpush1.xpose.msra.mxu0 0.0
        %1392 = vmatprep.subr.mxu0 0.0
        %1393 = vmatpush1.xpose.msra.mxu0 0.0
        %1394 = vmatprep.subr.mxu0 0.0
        %1395 = vmatpush1.xpose.msra.mxu0 0.0
        %1396 = vmatprep.mubr.f32.mxu0 0.0
        %1397 = vmatmul.mubr.f32.gmra.mrb[0].mxu0 %v1328
        %v1398 = vpop.f32.mrb[0].mxu0
        %v1399 = vadd.f32 0.0, %v1398
        %v1400 = vpop.f32.mrb[0].mxu0
        %1401 = vdwg.mxu0
        %1403 = vrot.lane.b32.xlu0 %v1321, 96
        %v1404 = vpop.permute.xlu0 %1403
        %v1405 = vsel %vm1327, %v1321, 0
        %v1407 = vsel %vm1327, %v1404, 0
        %1409 = vmatprep.subr.mxu0 0.0
        %1410 = vmatpush1.xpose.msra.mxu0 %v1407
        %1411 = vmatprep.subr.mxu0 0.0
        %1412 = vmatpush1.xpose.msra.mxu0 0.0
        %1413 = vmatprep.subr.mxu0 0.0
        %1414 = vmatpush1.xpose.msra.mxu0 0.0
        %1415 = vmatprep.subr.mxu0 0.0
        %1416 = vmatpush1.xpose.msra.mxu0 0.0
        %1417 = vmatprep.subr.mxu0 0.0
        %1418 = vmatpush1.xpose.msra.mxu0 0.0
        %1419 = vmatprep.subr.mxu0 0.0
        %1420 = vmatpush1.xpose.msra.mxu0 0.0
        %1421 = vmatprep.subr.mxu0 0.0
        %1422 = vmatpush1.xpose.msra.mxu0 0.0
        %1423 = vmatprep.subr.mxu0 0.0
        %1424 = vmatpush1.xpose.msra.mxu0 0.0
        %1425 = vmatprep.subr.mxu0 0.0
        %1426 = vmatpush1.xpose.msra.mxu0 0.0
        %1427 = vmatprep.subr.mxu0 0.0
        %1428 = vmatpush1.xpose.msra.mxu0 0.0
        %1429 = vmatprep.subr.mxu0 0.0
        %1430 = vmatpush1.xpose.msra.mxu0 0.0
        %1431 = vmatprep.subr.mxu0 0.0
        %1432 = vmatpush1.xpose.msra.mxu0 0.0
        %1433 = vmatprep.subr.mxu0 0.0
        %1434 = vmatpush1.xpose.msra.mxu0 0.0
        %1435 = vmatprep.subr.mxu0 0.0
        %1436 = vmatpush1.xpose.msra.mxu0 0.0
        %1437 = vmatprep.subr.mxu0 0.0
        %1438 = vmatpush1.xpose.msra.mxu0 0.0
        %1439 = vmatprep.subr.mxu0 0.0
        %1440 = vmatpush1.xpose.msra.mxu0 0.0
        %1441 = vmatprep.subr.mxu0 0.0
        %1442 = vmatpush1.xpose.msra.mxu0 0.0
        %1443 = vmatprep.subr.mxu0 0.0
        %1444 = vmatpush1.xpose.msra.mxu0 0.0
        %1445 = vmatprep.subr.mxu0 0.0
        %1446 = vmatpush1.xpose.msra.mxu0 0.0
        %1447 = vmatprep.subr.mxu0 0.0
        %1448 = vmatpush1.xpose.msra.mxu0 0.0
        %1449 = vmatprep.subr.mxu0 0.0
        %1450 = vmatpush1.xpose.msra.mxu0 0.0
        %1451 = vmatprep.subr.mxu0 0.0
        %1452 = vmatpush1.xpose.msra.mxu0 0.0
        %1453 = vmatprep.subr.mxu0 0.0
        %1454 = vmatpush1.xpose.msra.mxu0 0.0
        %1455 = vmatprep.subr.mxu0 0.0
        %1456 = vmatpush1.xpose.msra.mxu0 0.0
        %1457 = vmatprep.subr.mxu0 0.0
        %1458 = vmatpush1.xpose.msra.mxu0 0.0
        %1459 = vmatprep.subr.mxu0 0.0
        %1460 = vmatpush1.xpose.msra.mxu0 0.0
        %1461 = vmatprep.subr.mxu0 0.0
        %1462 = vmatpush1.xpose.msra.mxu0 0.0
        %1463 = vmatprep.subr.mxu0 0.0
        %1464 = vmatpush1.xpose.msra.mxu0 0.0
        %1465 = vmatprep.subr.mxu0 0.0
        %1466 = vmatpush1.xpose.msra.mxu0 0.0
        %1467 = vmatprep.subr.mxu0 0.0
        %1468 = vmatpush1.xpose.msra.mxu0 0.0
        %1469 = vmatprep.subr.mxu0 0.0
        %1470 = vmatpush1.xpose.msra.mxu0 0.0
        %1471 = vmatprep.subr.mxu0 0.0
        %1472 = vmatpush1.xpose.msra.mxu0 0.0
        %1473 = vmatprep.mubr.f32.mxu0 0.0
        %1474 = vmatmul.mubr.f32.gmra.mrb[0].mxu0 %v1405
        %v1475 = vpop.f32.mrb[0].mxu0
        %v1476 = vadd.f32 0.0, %v1475
        %v1477 = vpop.f32.mrb[0].mxu0
        %1478 = vdwg.mxu0
        %v1479 = vmul.f32 %v1399, 0.35355338
        %v1480 = vmul.f32 %v1476, 0.35355338
        %v1481 = vsel %vm1174, 16843009, 0
        %v1482 = vsel %vm1175, 16843009, 0
        %v1483 = vunpack.c.0.s8 %v1481
        %v1484 = vunpack.c.0.s8 %v1482
        %vm1485 = vcmp.ne.s32.totalorder %v1483, 0
        %vm1486 = vcmp.ne.s32.totalorder %v1484, 0
        %v1487 = vsel %vm1485, %v1479, -1e+09
        %v1488 = vsel %vm1486, %v1480, -1e+09
        %v1489 = vsel %vm1327, %v1487, -inf
        %1490 = vmax.xlane.f32.xlu0 %v1489
        %v1491 = vpop.xlane.xlu0 %1490
        %v1492 = vsel %vm1327, %v1488, -inf
        %1493 = vmax.xlane.f32.xlu0 %v1492
        %v1494 = vpop.xlane.xlu0 %1493
        %v1495 = vsub.f32 %v1487, %v1491
        %v1496 = vsub.f32 %v1488, %v1494
        %v1497 = vmul.f32 %v1495, 1.442695
        %v1498 = vpow.pop %v1497
        %v1499 = vmul.f32 %v1496, 1.442695
        %v1500 = vpow.pop %v1499
        %v1501 = vsel %vm1327, %v1498, 0.0
        %1502 = vadd.xlane.f32.xlu0 %v1501
        %v1503 = vpop.xlane.xlu0 %1502
        %v1504 = vsel %vm1327, %v1500, 0.0
        %1505 = vadd.xlane.f32.xlu0 %v1504
        %v1506 = vpop.xlane.xlu0 %1505
        %v1507 = vrcp.pop %v1503
        %v1508 = vrcp.pop %v1506
        %v1509 = vmul.f32 %v1498, %v1507
        %v1510 = vmul.f32 %v1500, %v1508
        %1511 = vrot.lane.b32.xlu0 %v1316, 64
        %v1512 = vpop.permute.xlu0 %1511
        %v1515 = vsel %vm1327, %v1509, 0
        %1517 = vmatprep.subr.mxu0 0.0
        %1518 = vmatpush1.msra.mxu0 %v1512
        %1519 = vmatprep.subr.mxu0 0.0
        %1520 = vmatpush1.msra.mxu0 0.0
        %1521 = vmatprep.subr.mxu0 0.0
        %1522 = vmatpush1.msra.mxu0 0.0
        %1523 = vmatprep.subr.mxu0 0.0
        %1524 = vmatpush1.msra.mxu0 0.0
        %1525 = vmatprep.subr.mxu0 0.0
        %1526 = vmatpush1.msra.mxu0 0.0
        %1527 = vmatprep.subr.mxu0 0.0
        %1528 = vmatpush1.msra.mxu0 0.0
        %1529 = vmatprep.subr.mxu0 0.0
        %1530 = vmatpush1.msra.mxu0 0.0
        %1531 = vmatprep.subr.mxu0 0.0
        %1532 = vmatpush1.msra.mxu0 0.0
        %1533 = vmatprep.subr.mxu0 0.0
        %1534 = vmatpush1.msra.mxu0 0.0
        %1535 = vmatprep.subr.mxu0 0.0
        %1536 = vmatpush1.msra.mxu0 0.0
        %1537 = vmatprep.subr.mxu0 0.0
        %1538 = vmatpush1.msra.mxu0 0.0
        %1539 = vmatprep.subr.mxu0 0.0
        %1540 = vmatpush1.msra.mxu0 0.0
        %1541 = vmatprep.subr.mxu0 0.0
        %1542 = vmatpush1.msra.mxu0 0.0
        %1543 = vmatprep.subr.mxu0 0.0
        %1544 = vmatpush1.msra.mxu0 0.0
        %1545 = vmatprep.subr.mxu0 0.0
        %1546 = vmatpush1.msra.mxu0 0.0
        %1547 = vmatprep.subr.mxu0 0.0
        %1548 = vmatpush1.msra.mxu0 0.0
        %1549 = vmatprep.subr.mxu0 0.0
        %1550 = vmatpush1.msra.mxu0 0.0
        %1551 = vmatprep.subr.mxu0 0.0
        %1552 = vmatpush1.msra.mxu0 0.0
        %1553 = vmatprep.subr.mxu0 0.0
        %1554 = vmatpush1.msra.mxu0 0.0
        %1555 = vmatprep.subr.mxu0 0.0
        %1556 = vmatpush1.msra.mxu0 0.0
        %1557 = vmatprep.subr.mxu0 0.0
        %1558 = vmatpush1.msra.mxu0 0.0
        %1559 = vmatprep.subr.mxu0 0.0
        %1560 = vmatpush1.msra.mxu0 0.0
        %1561 = vmatprep.subr.mxu0 0.0
        %1562 = vmatpush1.msra.mxu0 0.0
        %1563 = vmatprep.subr.mxu0 0.0
        %1564 = vmatpush1.msra.mxu0 0.0
        %1565 = vmatprep.subr.mxu0 0.0
        %1566 = vmatpush1.msra.mxu0 0.0
        %1567 = vmatprep.subr.mxu0 0.0
        %1568 = vmatpush1.msra.mxu0 0.0
        %1569 = vmatprep.subr.mxu0 0.0
        %1570 = vmatpush1.msra.mxu0 0.0
        %1571 = vmatprep.subr.mxu0 0.0
        %1572 = vmatpush1.msra.mxu0 0.0
        %1573 = vmatprep.subr.mxu0 0.0
        %1574 = vmatpush1.msra.mxu0 0.0
        %1575 = vmatprep.subr.mxu0 0.0
        %1576 = vmatpush1.msra.mxu0 0.0
        %1577 = vmatprep.subr.mxu0 0.0
        %1578 = vmatpush1.msra.mxu0 0.0
        %1579 = vmatprep.subr.mxu0 0.0
        %1580 = vmatpush1.msra.mxu0 0.0
        %1581 = vmatprep.mubr.f32.mxu0 0.0
        %1582 = vmatmul.mubr.f32.gmra.mrb[0].mxu0 %v1515
        %v1583 = vpop.f32.mrb[0].mxu0
        %v1584 = vadd.f32 0.0, %v1583
        %v1585 = vpop.f32.mrb[0].mxu0
        %1586 = vdwg.mxu0
        %1587 = vrot.lane.b32.xlu0 %v1321, 64
        %v1588 = vpop.permute.xlu0 %1587
        %v1591 = vsel %vm1327, %v1510, 0
        %1593 = vmatprep.subr.mxu0 0.0
        %1594 = vmatpush1.msra.mxu0 %v1588
        %1595 = vmatprep.subr.mxu0 0.0
        %1596 = vmatpush1.msra.mxu0 0.0
        %1597 = vmatprep.subr.mxu0 0.0
        %1598 = vmatpush1.msra.mxu0 0.0
        %1599 = vmatprep.subr.mxu0 0.0
        %1600 = vmatpush1.msra.mxu0 0.0
        %1601 = vmatprep.subr.mxu0 0.0
        %1602 = vmatpush1.msra.mxu0 0.0
        %1603 = vmatprep.subr.mxu0 0.0
        %1604 = vmatpush1.msra.mxu0 0.0
        %1605 = vmatprep.subr.mxu0 0.0
        %1606 = vmatpush1.msra.mxu0 0.0
        %1607 = vmatprep.subr.mxu0 0.0
        %1608 = vmatpush1.msra.mxu0 0.0
        %1609 = vmatprep.subr.mxu0 0.0
        %1610 = vmatpush1.msra.mxu0 0.0
        %1611 = vmatprep.subr.mxu0 0.0
        %1612 = vmatpush1.msra.mxu0 0.0
        %1613 = vmatprep.subr.mxu0 0.0
        %1614 = vmatpush1.msra.mxu0 0.0
        %1615 = vmatprep.subr.mxu0 0.0
        %1616 = vmatpush1.msra.mxu0 0.0
        %1617 = vmatprep.subr.mxu0 0.0
        %1618 = vmatpush1.msra.mxu0 0.0
        %1619 = vmatprep.subr.mxu0 0.0
        %1620 = vmatpush1.msra.mxu0 0.0
        %1621 = vmatprep.subr.mxu0 0.0
        %1622 = vmatpush1.msra.mxu0 0.0
        %1623 = vmatprep.subr.mxu0 0.0
        %1624 = vmatpush1.msra.mxu0 0.0
        %1625 = vmatprep.subr.mxu0 0.0
        %1626 = vmatpush1.msra.mxu0 0.0
        %1627 = vmatprep.subr.mxu0 0.0
        %1628 = vmatpush1.msra.mxu0 0.0
        %1629 = vmatprep.subr.mxu0 0.0
        %1630 = vmatpush1.msra.mxu0 0.0
        %1631 = vmatprep.subr.mxu0 0.0
        %1632 = vmatpush1.msra.mxu0 0.0
        %1633 = vmatprep.subr.mxu0 0.0
        %1634 = vmatpush1.msra.mxu0 0.0
        %1635 = vmatprep.subr.mxu0 0.0
        %1636 = vmatpush1.msra.mxu0 0.0
        %1637 = vmatprep.subr.mxu0 0.0
        %1638 = vmatpush1.msra.mxu0 0.0
        %1639 = vmatprep.subr.mxu0 0.0
        %1640 = vmatpush1.msra.mxu0 0.0
        %1641 = vmatprep.subr.mxu0 0.0
        %1642 = vmatpush1.msra.mxu0 0.0
        %1643 = vmatprep.subr.mxu0 0.0
        %1644 = vmatpush1.msra.mxu0 0.0
        %1645 = vmatprep.subr.mxu0 0.0
        %1646 = vmatpush1.msra.mxu0 0.0
        %1647 = vmatprep.subr.mxu0 0.0
        %1648 = vmatpush1.msra.mxu0 0.0
        %1649 = vmatprep.subr.mxu0 0.0
        %1650 = vmatpush1.msra.mxu0 0.0
        %1651 = vmatprep.subr.mxu0 0.0
        %1652 = vmatpush1.msra.mxu0 0.0
        %1653 = vmatprep.subr.mxu0 0.0
        %1654 = vmatpush1.msra.mxu0 0.0
        %1655 = vmatprep.subr.mxu0 0.0
        %1656 = vmatpush1.msra.mxu0 0.0
        %1657 = vmatprep.mubr.f32.mxu0 0.0
        %1658 = vmatmul.mubr.f32.gmra.mrb[0].mxu0 %v1591
        %v1659 = vpop.f32.mrb[0].mxu0
        %v1660 = vadd.f32 0.0, %v1659
        %v1661 = vpop.f32.mrb[0].mxu0
        %1662 = vdwg.mxu0
        %1663 = vrot.lane.b32.xlu0 %v1316, 120
        %v1664 = vpop.permute.xlu0 %1663
        %1665 = vrot.lane.b32.xlu0 %v1316, 88
        %v1666 = vpop.permute.xlu0 %1665
        %v1667 = vsel %vm1327, %v1664, 0
        %v1669 = vsel %vm1327, %v1666, 0
        %1671 = vmatprep.subr.mxu0 0.0
        %1672 = vmatpush1.xpose.msra.mxu0 %v1669
        %1673 = vmatprep.subr.mxu0 0.0
        %1674 = vmatpush1.xpose.msra.mxu0 0.0
        %1675 = vmatprep.subr.mxu0 0.0
        %1676 = vmatpush1.xpose.msra.mxu0 0.0
        %1677 = vmatprep.subr.mxu0 0.0
        %1678 = vmatpush1.xpose.msra.mxu0 0.0
        %1679 = vmatprep.subr.mxu0 0.0
        %1680 = vmatpush1.xpose.msra.mxu0 0.0
        %1681 = vmatprep.subr.mxu0 0.0
        %1682 = vmatpush1.xpose.msra.mxu0 0.0
        %1683 = vmatprep.subr.mxu0 0.0
        %1684 = vmatpush1.xpose.msra.mxu0 0.0
        %1685 = vmatprep.subr.mxu0 0.0
        %1686 = vmatpush1.xpose.msra.mxu0 0.0
        %1687 = vmatprep.subr.mxu0 0.0
        %1688 = vmatpush1.xpose.msra.mxu0 0.0
        %1689 = vmatprep.subr.mxu0 0.0
        %1690 = vmatpush1.xpose.msra.mxu0 0.0
        %1691 = vmatprep.subr.mxu0 0.0
        %1692 = vmatpush1.xpose.msra.mxu0 0.0
        %1693 = vmatprep.subr.mxu0 0.0
        %1694 = vmatpush1.xpose.msra.mxu0 0.0
        %1695 = vmatprep.subr.mxu0 0.0
        %1696 = vmatpush1.xpose.msra.mxu0 0.0
        %1697 = vmatprep.subr.mxu0 0.0
        %1698 = vmatpush1.xpose.msra.mxu0 0.0
        %1699 = vmatprep.subr.mxu0 0.0
        %1700 = vmatpush1.xpose.msra.mxu0 0.0
        %1701 = vmatprep.subr.mxu0 0.0
        %1702 = vmatpush1.xpose.msra.mxu0 0.0
        %1703 = vmatprep.subr.mxu0 0.0
        %1704 = vmatpush1.xpose.msra.mxu0 0.0
        %1705 = vmatprep.subr.mxu0 0.0
        %1706 = vmatpush1.xpose.msra.mxu0 0.0
        %1707 = vmatprep.subr.mxu0 0.0
        %1708 = vmatpush1.xpose.msra.mxu0 0.0
        %1709 = vmatprep.subr.mxu0 0.0
        %1710 = vmatpush1.xpose.msra.mxu0 0.0
        %1711 = vmatprep.subr.mxu0 0.0
        %1712 = vmatpush1.xpose.msra.mxu0 0.0
        %1713 = vmatprep.subr.mxu0 0.0
        %1714 = vmatpush1.xpose.msra.mxu0 0.0
        %1715 = vmatprep.subr.mxu0 0.0
        %1716 = vmatpush1.xpose.msra.mxu0 0.0
        %1717 = vmatprep.subr.mxu0 0.0
        %1718 = vmatpush1.xpose.msra.mxu0 0.0
        %1719 = vmatprep.subr.mxu0 0.0
        %1720 = vmatpush1.xpose.msra.mxu0 0.0
        %1721 = vmatprep.subr.mxu0 0.0
        %1722 = vmatpush1.xpose.msra.mxu0 0.0
        %1723 = vmatprep.subr.mxu0 0.0
        %1724 = vmatpush1.xpose.msra.mxu0 0.0
        %1725 = vmatprep.subr.mxu0 0.0
        %1726 = vmatpush1.xpose.msra.mxu0 0.0
        %1727 = vmatprep.subr.mxu0 0.0
        %1728 = vmatpush1.xpose.msra.mxu0 0.0
        %1729 = vmatprep.subr.mxu0 0.0
        %1730 = vmatpush1.xpose.msra.mxu0 0.0
        %1731 = vmatprep.subr.mxu0 0.0
        %1732 = vmatpush1.xpose.msra.mxu0 0.0
        %1733 = vmatprep.subr.mxu0 0.0
        %1734 = vmatpush1.xpose.msra.mxu0 0.0
        %1735 = vmatprep.mubr.f32.mxu0 0.0
        %1736 = vmatmul.mubr.f32.gmra.mrb[0].mxu0 %v1667
        %v1737 = vpop.f32.mrb[0].mxu0
        %v1738 = vadd.f32 0.0, %v1737
        %v1739 = vpop.f32.mrb[0].mxu0
        %1740 = vdwg.mxu0
        %1741 = vrot.lane.b32.xlu0 %v1321, 120
        %v1742 = vpop.permute.xlu0 %1741
        %1743 = vrot.lane.b32.xlu0 %v1321, 88
        %v1744 = vpop.permute.xlu0 %1743
        %v1745 = vsel %vm1327, %v1742, 0
        %v1747 = vsel %vm1327, %v1744, 0
        %1749 = vmatprep.subr.mxu0 0.0
        %1750 = vmatpush1.xpose.msra.mxu0 %v1747
        %1751 = vmatprep.subr.mxu0 0.0
        %1752 = vmatpush1.xpose.msra.mxu0 0.0
        %1753 = vmatprep.subr.mxu0 0.0
        %1754 = vmatpush1.xpose.msra.mxu0 0.0
        %1755 = vmatprep.subr.mxu0 0.0
        %1756 = vmatpush1.xpose.msra.mxu0 0.0
        %1757 = vmatprep.subr.mxu0 0.0
        %1758 = vmatpush1.xpose.msra.mxu0 0.0
        %1759 = vmatprep.subr.mxu0 0.0
        %1760 = vmatpush1.xpose.msra.mxu0 0.0
        %1761 = vmatprep.subr.mxu0 0.0
        %1762 = vmatpush1.xpose.msra.mxu0 0.0
        %1763 = vmatprep.subr.mxu0 0.0
        %1764 = vmatpush1.xpose.msra.mxu0 0.0
        %1765 = vmatprep.subr.mxu0 0.0
        %1766 = vmatpush1.xpose.msra.mxu0 0.0
        %1767 = vmatprep.subr.mxu0 0.0
        %1768 = vmatpush1.xpose.msra.mxu0 0.0
        %1769 = vmatprep.subr.mxu0 0.0
        %1770 = vmatpush1.xpose.msra.mxu0 0.0
        %1771 = vmatprep.subr.mxu0 0.0
        %1772 = vmatpush1.xpose.msra.mxu0 0.0
        %1773 = vmatprep.subr.mxu0 0.0
        %1774 = vmatpush1.xpose.msra.mxu0 0.0
        %1775 = vmatprep.subr.mxu0 0.0
        %1776 = vmatpush1.xpose.msra.mxu0 0.0
        %1777 = vmatprep.subr.mxu0 0.0
        %1778 = vmatpush1.xpose.msra.mxu0 0.0
        %1779 = vmatprep.subr.mxu0 0.0
        %1780 = vmatpush1.xpose.msra.mxu0 0.0
        %1781 = vmatprep.subr.mxu0 0.0
        %1782 = vmatpush1.xpose.msra.mxu0 0.0
        %1783 = vmatprep.subr.mxu0 0.0
        %1784 = vmatpush1.xpose.msra.mxu0 0.0
        %1785 = vmatprep.subr.mxu0 0.0
        %1786 = vmatpush1.xpose.msra.mxu0 0.0
        %1787 = vmatprep.subr.mxu0 0.0
        %1788 = vmatpush1.xpose.msra.mxu0 0.0
        %1789 = vmatprep.subr.mxu0 0.0
        %1790 = vmatpush1.xpose.msra.mxu0 0.0
        %1791 = vmatprep.subr.mxu0 0.0
        %1792 = vmatpush1.xpose.msra.mxu0 0.0
        %1793 = vmatprep.subr.mxu0 0.0
        %1794 = vmatpush1.xpose.msra.mxu0 0.0
        %1795 = vmatprep.subr.mxu0 0.0
        %1796 = vmatpush1.xpose.msra.mxu0 0.0
        %1797 = vmatprep.subr.mxu0 0.0
        %1798 = vmatpush1.xpose.msra.mxu0 0.0
        %1799 = vmatprep.subr.mxu0 0.0
        %1800 = vmatpush1.xpose.msra.mxu0 0.0
        %1801 = vmatprep.subr.mxu0 0.0
        %1802 = vmatpush1.xpose.msra.mxu0 0.0
        %1803 = vmatprep.subr.mxu0 0.0
        %1804 = vmatpush1.xpose.msra.mxu0 0.0
        %1805 = vmatprep.subr.mxu0 0.0
        %1806 = vmatpush1.xpose.msra.mxu0 0.0
        %1807 = vmatprep.subr.mxu0 0.0
        %1808 = vmatpush1.xpose.msra.mxu0 0.0
        %1809 = vmatprep.subr.mxu0 0.0
        %1810 = vmatpush1.xpose.msra.mxu0 0.0
        %1811 = vmatprep.subr.mxu0 0.0
        %1812 = vmatpush1.xpose.msra.mxu0 0.0
        %1813 = vmatprep.mubr.f32.mxu0 0.0
        %1814 = vmatmul.mubr.f32.gmra.mrb[0].mxu0 %v1745
        %v1815 = vpop.f32.mrb[0].mxu0
        %v1816 = vadd.f32 0.0, %v1815
        %v1817 = vpop.f32.mrb[0].mxu0
        %1818 = vdwg.mxu0
        %v1819 = vmul.f32 %v1738, 0.35355338
        %v1820 = vmul.f32 %v1816, 0.35355338
        %v1821 = vsel %vm1485, %v1819, -1e+09
        %v1822 = vsel %vm1486, %v1820, -1e+09
        %v1823 = vsel %vm1327, %v1821, -inf
        %1824 = vmax.xlane.f32.xlu0 %v1823
        %v1825 = vpop.xlane.xlu0 %1824
        %v1826 = vsel %vm1327, %v1822, -inf
        %1827 = vmax.xlane.f32.xlu0 %v1826
        %v1828 = vpop.xlane.xlu0 %1827
        %v1829 = vsub.f32 %v1821, %v1825
        %v1830 = vsub.f32 %v1822, %v1828
        %v1831 = vmul.f32 %v1829, 1.442695
        %v1832 = vpow.pop %v1831
        %v1833 = vmul.f32 %v1830, 1.442695
        %v1834 = vpow.pop %v1833
        %v1835 = vsel %vm1327, %v1832, 0.0
        %1836 = vadd.xlane.f32.xlu0 %v1835
        %v1837 = vpop.xlane.xlu0 %1836
        %v1838 = vsel %vm1327, %v1834, 0.0
        %1839 = vadd.xlane.f32.xlu0 %v1838
        %v1840 = vpop.xlane.xlu0 %1839
        %v1841 = vrcp.pop %v1837
        %v1842 = vrcp.pop %v1840
        %v1843 = vmul.f32 %v1832, %v1841
        %v1844 = vmul.f32 %v1834, %v1842
        %1845 = vrot.lane.b32.xlu0 %v1316, 56
        %v1846 = vpop.permute.xlu0 %1845
        %v1849 = vsel %vm1327, %v1843, 0
        %1851 = vmatprep.subr.mxu0 0.0
        %1852 = vmatpush1.msra.mxu0 %v1846
        %1853 = vmatprep.subr.mxu0 0.0
        %1854 = vmatpush1.msra.mxu0 0.0
        %1855 = vmatprep.subr.mxu0 0.0
        %1856 = vmatpush1.msra.mxu0 0.0
        %1857 = vmatprep.subr.mxu0 0.0
        %1858 = vmatpush1.msra.mxu0 0.0
        %1859 = vmatprep.subr.mxu0 0.0
        %1860 = vmatpush1.msra.mxu0 0.0
        %1861 = vmatprep.subr.mxu0 0.0
        %1862 = vmatpush1.msra.mxu0 0.0
        %1863 = vmatprep.subr.mxu0 0.0
        %1864 = vmatpush1.msra.mxu0 0.0
        %1865 = vmatprep.subr.mxu0 0.0
        %1866 = vmatpush1.msra.mxu0 0.0
        %1867 = vmatprep.subr.mxu0 0.0
        %1868 = vmatpush1.msra.mxu0 0.0
        %1869 = vmatprep.subr.mxu0 0.0
        %1870 = vmatpush1.msra.mxu0 0.0
        %1871 = vmatprep.subr.mxu0 0.0
        %1872 = vmatpush1.msra.mxu0 0.0
        %1873 = vmatprep.subr.mxu0 0.0
        %1874 = vmatpush1.msra.mxu0 0.0
        %1875 = vmatprep.subr.mxu0 0.0
        %1876 = vmatpush1.msra.mxu0 0.0
        %1877 = vmatprep.subr.mxu0 0.0
        %1878 = vmatpush1.msra.mxu0 0.0
        %1879 = vmatprep.subr.mxu0 0.0
        %1880 = vmatpush1.msra.mxu0 0.0
        %1881 = vmatprep.subr.mxu0 0.0
        %1882 = vmatpush1.msra.mxu0 0.0
        %1883 = vmatprep.subr.mxu0 0.0
        %1884 = vmatpush1.msra.mxu0 0.0
        %1885 = vmatprep.subr.mxu0 0.0
        %1886 = vmatpush1.msra.mxu0 0.0
        %1887 = vmatprep.subr.mxu0 0.0
        %1888 = vmatpush1.msra.mxu0 0.0
        %1889 = vmatprep.subr.mxu0 0.0
        %1890 = vmatpush1.msra.mxu0 0.0
        %1891 = vmatprep.subr.mxu0 0.0
        %1892 = vmatpush1.msra.mxu0 0.0
        %1893 = vmatprep.subr.mxu0 0.0
        %1894 = vmatpush1.msra.mxu0 0.0
        %1895 = vmatprep.subr.mxu0 0.0
        %1896 = vmatpush1.msra.mxu0 0.0
        %1897 = vmatprep.subr.mxu0 0.0
        %1898 = vmatpush1.msra.mxu0 0.0
        %1899 = vmatprep.subr.mxu0 0.0
        %1900 = vmatpush1.msra.mxu0 0.0
        %1901 = vmatprep.subr.mxu0 0.0
        %1902 = vmatpush1.msra.mxu0 0.0
        %1903 = vmatprep.subr.mxu0 0.0
        %1904 = vmatpush1.msra.mxu0 0.0
        %1905 = vmatprep.subr.mxu0 0.0
        %1906 = vmatpush1.msra.mxu0 0.0
        %1907 = vmatprep.subr.mxu0 0.0
        %1908 = vmatpush1.msra.mxu0 0.0
        %1909 = vmatprep.subr.mxu0 0.0
        %1910 = vmatpush1.msra.mxu0 0.0
        %1911 = vmatprep.subr.mxu0 0.0
        %1912 = vmatpush1.msra.mxu0 0.0
        %1913 = vmatprep.subr.mxu0 0.0
        %1914 = vmatpush1.msra.mxu0 0.0
        %1915 = vmatprep.mubr.f32.mxu0 0.0
        %1916 = vmatmul.mubr.f32.gmra.mrb[0].mxu0 %v1849
        %v1917 = vpop.f32.mrb[0].mxu0
        %v1918 = vadd.f32 0.0, %v1917
        %v1919 = vpop.f32.mrb[0].mxu0
        %1920 = vdwg.mxu0
        %1921 = vrot.lane.b32.xlu0 %v1321, 56
        %v1922 = vpop.permute.xlu0 %1921
        %v1925 = vsel %vm1327, %v1844, 0
        %1927 = vmatprep.subr.mxu0 0.0
        %1928 = vmatpush1.msra.mxu0 %v1922
        %1929 = vmatprep.subr.mxu0 0.0
        %1930 = vmatpush1.msra.mxu0 0.0
        %1931 = vmatprep.subr.mxu0 0.0
        %1932 = vmatpush1.msra.mxu0 0.0
        %1933 = vmatprep.subr.mxu0 0.0
        %1934 = vmatpush1.msra.mxu0 0.0
        %1935 = vmatprep.subr.mxu0 0.0
        %1936 = vmatpush1.msra.mxu0 0.0
        %1937 = vmatprep.subr.mxu0 0.0
        %1938 = vmatpush1.msra.mxu0 0.0
        %1939 = vmatprep.subr.mxu0 0.0
        %1940 = vmatpush1.msra.mxu0 0.0
        %1941 = vmatprep.subr.mxu0 0.0
        %1942 = vmatpush1.msra.mxu0 0.0
        %1943 = vmatprep.subr.mxu0 0.0
        %1944 = vmatpush1.msra.mxu0 0.0
        %1945 = vmatprep.subr.mxu0 0.0
        %1946 = vmatpush1.msra.mxu0 0.0
        %1947 = vmatprep.subr.mxu0 0.0
        %1948 = vmatpush1.msra.mxu0 0.0
        %1949 = vmatprep.subr.mxu0 0.0
        %1950 = vmatpush1.msra.mxu0 0.0
        %1951 = vmatprep.subr.mxu0 0.0
        %1952 = vmatpush1.msra.mxu0 0.0
        %1953 = vmatprep.subr.mxu0 0.0
        %1954 = vmatpush1.msra.mxu0 0.0
        %1955 = vmatprep.subr.mxu0 0.0
        %1956 = vmatpush1.msra.mxu0 0.0
        %1957 = vmatprep.subr.mxu0 0.0
        %1958 = vmatpush1.msra.mxu0 0.0
        %1959 = vmatprep.subr.mxu0 0.0
        %1960 = vmatpush1.msra.mxu0 0.0
        %1961 = vmatprep.subr.mxu0 0.0
        %1962 = vmatpush1.msra.mxu0 0.0
        %1963 = vmatprep.subr.mxu0 0.0
        %1964 = vmatpush1.msra.mxu0 0.0
        %1965 = vmatprep.subr.mxu0 0.0
        %1966 = vmatpush1.msra.mxu0 0.0
        %1967 = vmatprep.subr.mxu0 0.0
        %1968 = vmatpush1.msra.mxu0 0.0
        %1969 = vmatprep.subr.mxu0 0.0
        %1970 = vmatpush1.msra.mxu0 0.0
        %1971 = vmatprep.subr.mxu0 0.0
        %1972 = vmatpush1.msra.mxu0 0.0
        %1973 = vmatprep.subr.mxu0 0.0
        %1974 = vmatpush1.msra.mxu0 0.0
        %1975 = vmatprep.subr.mxu0 0.0
        %1976 = vmatpush1.msra.mxu0 0.0
        %1977 = vmatprep.subr.mxu0 0.0
        %1978 = vmatpush1.msra.mxu0 0.0
        %1979 = vmatprep.subr.mxu0 0.0
        %1980 = vmatpush1.msra.mxu0 0.0
        %1981 = vmatprep.subr.mxu0 0.0
        %1982 = vmatpush1.msra.mxu0 0.0
        %1983 = vmatprep.subr.mxu0 0.0
        %1984 = vmatpush1.msra.mxu0 0.0
        %1985 = vmatprep.subr.mxu0 0.0
        %1986 = vmatpush1.msra.mxu0 0.0
        %1987 = vmatprep.subr.mxu0 0.0
        %1988 = vmatpush1.msra.mxu0 0.0
        %1989 = vmatprep.subr.mxu0 0.0
        %1990 = vmatpush1.msra.mxu0 0.0
        %1991 = vmatprep.mubr.f32.mxu0 0.0
        %1992 = vmatmul.mubr.f32.gmra.mrb[0].mxu0 %v1925
        %v1993 = vpop.f32.mrb[0].mxu0
        %v1994 = vadd.f32 0.0, %v1993
        %v1995 = vpop.f32.mrb[0].mxu0
        %1996 = vdwg.mxu0
        %1997 = vrot.lane.b32.xlu0 %v1316, 112
        %v1998 = vpop.permute.xlu0 %1997
        %1999 = vrot.lane.b32.xlu0 %v1316, 80
        %v2000 = vpop.permute.xlu0 %1999
        %v2001 = vsel %vm1327, %v1998, 0
        %v2003 = vsel %vm1327, %v2000, 0
        %2005 = vmatprep.subr.mxu0 0.0
        %2006 = vmatpush1.xpose.msra.mxu0 %v2003
        %2007 = vmatprep.subr.mxu0 0.0
        %2008 = vmatpush1.xpose.msra.mxu0 0.0
        %2009 = vmatprep.subr.mxu0 0.0
        %2010 = vmatpush1.xpose.msra.mxu0 0.0
        %2011 = vmatprep.subr.mxu0 0.0
        %2012 = vmatpush1.xpose.msra.mxu0 0.0
        %2013 = vmatprep.subr.mxu0 0.0
        %2014 = vmatpush1.xpose.msra.mxu0 0.0
        %2015 = vmatprep.subr.mxu0 0.0
        %2016 = vmatpush1.xpose.msra.mxu0 0.0
        %2017 = vmatprep.subr.mxu0 0.0
        %2018 = vmatpush1.xpose.msra.mxu0 0.0
        %2019 = vmatprep.subr.mxu0 0.0
        %2020 = vmatpush1.xpose.msra.mxu0 0.0
        %2021 = vmatprep.subr.mxu0 0.0
        %2022 = vmatpush1.xpose.msra.mxu0 0.0
        %2023 = vmatprep.subr.mxu0 0.0
        %2024 = vmatpush1.xpose.msra.mxu0 0.0
        %2025 = vmatprep.subr.mxu0 0.0
        %2026 = vmatpush1.xpose.msra.mxu0 0.0
        %2027 = vmatprep.subr.mxu0 0.0
        %2028 = vmatpush1.xpose.msra.mxu0 0.0
        %2029 = vmatprep.subr.mxu0 0.0
        %2030 = vmatpush1.xpose.msra.mxu0 0.0
        %2031 = vmatprep.subr.mxu0 0.0
        %2032 = vmatpush1.xpose.msra.mxu0 0.0
        %2033 = vmatprep.subr.mxu0 0.0
        %2034 = vmatpush1.xpose.msra.mxu0 0.0
        %2035 = vmatprep.subr.mxu0 0.0
        %2036 = vmatpush1.xpose.msra.mxu0 0.0
        %2037 = vmatprep.subr.mxu0 0.0
        %2038 = vmatpush1.xpose.msra.mxu0 0.0
        %2039 = vmatprep.subr.mxu0 0.0
        %2040 = vmatpush1.xpose.msra.mxu0 0.0
        %2041 = vmatprep.subr.mxu0 0.0
        %2042 = vmatpush1.xpose.msra.mxu0 0.0
        %2043 = vmatprep.subr.mxu0 0.0
        %2044 = vmatpush1.xpose.msra.mxu0 0.0
        %2045 = vmatprep.subr.mxu0 0.0
        %2046 = vmatpush1.xpose.msra.mxu0 0.0
        %2047 = vmatprep.subr.mxu0 0.0
        %2048 = vmatpush1.xpose.msra.mxu0 0.0
        %2049 = vmatprep.subr.mxu0 0.0
        %2050 = vmatpush1.xpose.msra.mxu0 0.0
        %2051 = vmatprep.subr.mxu0 0.0
        %2052 = vmatpush1.xpose.msra.mxu0 0.0
        %2053 = vmatprep.subr.mxu0 0.0
        %2054 = vmatpush1.xpose.msra.mxu0 0.0
        %2055 = vmatprep.subr.mxu0 0.0
        %2056 = vmatpush1.xpose.msra.mxu0 0.0
        %2057 = vmatprep.subr.mxu0 0.0
        %2058 = vmatpush1.xpose.msra.mxu0 0.0
        %2059 = vmatprep.subr.mxu0 0.0
        %2060 = vmatpush1.xpose.msra.mxu0 0.0
        %2061 = vmatprep.subr.mxu0 0.0
        %2062 = vmatpush1.xpose.msra.mxu0 0.0
        %2063 = vmatprep.subr.mxu0 0.0
        %2064 = vmatpush1.xpose.msra.mxu0 0.0
        %2065 = vmatprep.subr.mxu0 0.0
        %2066 = vmatpush1.xpose.msra.mxu0 0.0
        %2067 = vmatprep.subr.mxu0 0.0
        %2068 = vmatpush1.xpose.msra.mxu0 0.0
        %2069 = vmatprep.mubr.f32.mxu0 0.0
        %2070 = vmatmul.mubr.f32.gmra.mrb[0].mxu0 %v2001
        %v2071 = vpop.f32.mrb[0].mxu0
        %v2072 = vadd.f32 0.0, %v2071
        %v2073 = vpop.f32.mrb[0].mxu0
        %2074 = vdwg.mxu0
        %2075 = vrot.lane.b32.xlu0 %v1321, 112
        %v2076 = vpop.permute.xlu0 %2075
        %2077 = vrot.lane.b32.xlu0 %v1321, 80
        %v2078 = vpop.permute.xlu0 %2077
        %v2079 = vsel %vm1327, %v2076, 0
        %v2081 = vsel %vm1327, %v2078, 0
        %2083 = vmatprep.subr.mxu0 0.0
        %2084 = vmatpush1.xpose.msra.mxu0 %v2081
        %2085 = vmatprep.subr.mxu0 0.0
        %2086 = vmatpush1.xpose.msra.mxu0 0.0
        %2087 = vmatprep.subr.mxu0 0.0
        %2088 = vmatpush1.xpose.msra.mxu0 0.0
        %2089 = vmatprep.subr.mxu0 0.0
        %2090 = vmatpush1.xpose.msra.mxu0 0.0
        %2091 = vmatprep.subr.mxu0 0.0
        %2092 = vmatpush1.xpose.msra.mxu0 0.0
        %2093 = vmatprep.subr.mxu0 0.0
        %2094 = vmatpush1.xpose.msra.mxu0 0.0
        %2095 = vmatprep.subr.mxu0 0.0
        %2096 = vmatpush1.xpose.msra.mxu0 0.0
        %2097 = vmatprep.subr.mxu0 0.0
        %2098 = vmatpush1.xpose.msra.mxu0 0.0
        %2099 = vmatprep.subr.mxu0 0.0
        %2100 = vmatpush1.xpose.msra.mxu0 0.0
        %2101 = vmatprep.subr.mxu0 0.0
        %2102 = vmatpush1.xpose.msra.mxu0 0.0
        %2103 = vmatprep.subr.mxu0 0.0
        %2104 = vmatpush1.xpose.msra.mxu0 0.0
        %2105 = vmatprep.subr.mxu0 0.0
        %2106 = vmatpush1.xpose.msra.mxu0 0.0
        %2107 = vmatprep.subr.mxu0 0.0
        %2108 = vmatpush1.xpose.msra.mxu0 0.0
        %2109 = vmatprep.subr.mxu0 0.0
        %2110 = vmatpush1.xpose.msra.mxu0 0.0
        %2111 = vmatprep.subr.mxu0 0.0
        %2112 = vmatpush1.xpose.msra.mxu0 0.0
        %2113 = vmatprep.subr.mxu0 0.0
        %2114 = vmatpush1.xpose.msra.mxu0 0.0
        %2115 = vmatprep.subr.mxu0 0.0
        %2116 = vmatpush1.xpose.msra.mxu0 0.0
        %2117 = vmatprep.subr.mxu0 0.0
        %2118 = vmatpush1.xpose.msra.mxu0 0.0
        %2119 = vmatprep.subr.mxu0 0.0
        %2120 = vmatpush1.xpose.msra.mxu0 0.0
        %2121 = vmatprep.subr.mxu0 0.0
        %2122 = vmatpush1.xpose.msra.mxu0 0.0
        %2123 = vmatprep.subr.mxu0 0.0
        %2124 = vmatpush1.xpose.msra.mxu0 0.0
        %2125 = vmatprep.subr.mxu0 0.0
        %2126 = vmatpush1.xpose.msra.mxu0 0.0
        %2127 = vmatprep.subr.mxu0 0.0
        %2128 = vmatpush1.xpose.msra.mxu0 0.0
        %2129 = vmatprep.subr.mxu0 0.0
        %2130 = vmatpush1.xpose.msra.mxu0 0.0
        %2131 = vmatprep.subr.mxu0 0.0
        %2132 = vmatpush1.xpose.msra.mxu0 0.0
        %2133 = vmatprep.subr.mxu0 0.0
        %2134 = vmatpush1.xpose.msra.mxu0 0.0
        %2135 = vmatprep.subr.mxu0 0.0
        %2136 = vmatpush1.xpose.msra.mxu0 0.0
        %2137 = vmatprep.subr.mxu0 0.0
        %2138 = vmatpush1.xpose.msra.mxu0 0.0
        %2139 = vmatprep.subr.mxu0 0.0
        %2140 = vmatpush1.xpose.msra.mxu0 0.0
        %2141 = vmatprep.subr.mxu0 0.0
        %2142 = vmatpush1.xpose.msra.mxu0 0.0
        %2143 = vmatprep.subr.mxu0 0.0
        %2144 = vmatpush1.xpose.msra.mxu0 0.0
        %2145 = vmatprep.subr.mxu0 0.0
        %2146 = vmatpush1.xpose.msra.mxu0 0.0
        %2147 = vmatprep.mubr.f32.mxu0 0.0
        %2148 = vmatmul.mubr.f32.gmra.mrb[0].mxu0 %v2079
        %v2149 = vpop.f32.mrb[0].mxu0
        %v2150 = vadd.f32 0.0, %v2149
        %v2151 = vpop.f32.mrb[0].mxu0
        %2152 = vdwg.mxu0
        %v2153 = vmul.f32 %v2072, 0.35355338
        %v2154 = vmul.f32 %v2150, 0.35355338
        %v2155 = vsel %vm1485, %v2153, -1e+09
        %v2156 = vsel %vm1486, %v2154, -1e+09
        %v2157 = vsel %vm1327, %v2155, -inf
        %2158 = vmax.xlane.f32.xlu0 %v2157
        %v2159 = vpop.xlane.xlu0 %2158
        %v2160 = vsel %vm1327, %v2156, -inf
        %2161 = vmax.xlane.f32.xlu0 %v2160
        %v2162 = vpop.xlane.xlu0 %2161
        %v2163 = vsub.f32 %v2155, %v2159
        %v2164 = vsub.f32 %v2156, %v2162
        %v2165 = vmul.f32 %v2163, 1.442695
        %v2166 = vpow.pop %v2165
        %v2167 = vmul.f32 %v2164, 1.442695
        %v2168 = vpow.pop %v2167
        %v2169 = vsel %vm1327, %v2166, 0.0
        %2170 = vadd.xlane.f32.xlu0 %v2169
        %v2171 = vpop.xlane.xlu0 %2170
        %v2172 = vsel %vm1327, %v2168, 0.0
        %2173 = vadd.xlane.f32.xlu0 %v2172
        %v2174 = vpop.xlane.xlu0 %2173
        %v2175 = vrcp.pop %v2171
        %v2176 = vrcp.pop %v2174
        %v2177 = vmul.f32 %v2166, %v2175
        %v2178 = vmul.f32 %v2168, %v2176
        %2179 = vrot.lane.b32.xlu0 %v1316, 48
        %v2180 = vpop.permute.xlu0 %2179
        %v2183 = vsel %vm1327, %v2177, 0
        %2185 = vmatprep.subr.mxu0 0.0
        %2186 = vmatpush1.msra.mxu0 %v2180
        %2187 = vmatprep.subr.mxu0 0.0
        %2188 = vmatpush1.msra.mxu0 0.0
        %2189 = vmatprep.subr.mxu0 0.0
        %2190 = vmatpush1.msra.mxu0 0.0
        %2191 = vmatprep.subr.mxu0 0.0
        %2192 = vmatpush1.msra.mxu0 0.0
        %2193 = vmatprep.subr.mxu0 0.0
        %2194 = vmatpush1.msra.mxu0 0.0
        %2195 = vmatprep.subr.mxu0 0.0
        %2196 = vmatpush1.msra.mxu0 0.0
        %2197 = vmatprep.subr.mxu0 0.0
        %2198 = vmatpush1.msra.mxu0 0.0
        %2199 = vmatprep.subr.mxu0 0.0
        %2200 = vmatpush1.msra.mxu0 0.0
        %2201 = vmatprep.subr.mxu0 0.0
        %2202 = vmatpush1.msra.mxu0 0.0
        %2203 = vmatprep.subr.mxu0 0.0
        %2204 = vmatpush1.msra.mxu0 0.0
        %2205 = vmatprep.subr.mxu0 0.0
        %2206 = vmatpush1.msra.mxu0 0.0
        %2207 = vmatprep.subr.mxu0 0.0
        %2208 = vmatpush1.msra.mxu0 0.0
        %2209 = vmatprep.subr.mxu0 0.0
        %2210 = vmatpush1.msra.mxu0 0.0
        %2211 = vmatprep.subr.mxu0 0.0
        %2212 = vmatpush1.msra.mxu0 0.0
        %2213 = vmatprep.subr.mxu0 0.0
        %2214 = vmatpush1.msra.mxu0 0.0
        %2215 = vmatprep.subr.mxu0 0.0
        %2216 = vmatpush1.msra.mxu0 0.0
        %2217 = vmatprep.subr.mxu0 0.0
        %2218 = vmatpush1.msra.mxu0 0.0
        %2219 = vmatprep.subr.mxu0 0.0
        %2220 = vmatpush1.msra.mxu0 0.0
        %2221 = vmatprep.subr.mxu0 0.0
        %2222 = vmatpush1.msra.mxu0 0.0
        %2223 = vmatprep.subr.mxu0 0.0
        %2224 = vmatpush1.msra.mxu0 0.0
        %2225 = vmatprep.subr.mxu0 0.0
        %2226 = vmatpush1.msra.mxu0 0.0
        %2227 = vmatprep.subr.mxu0 0.0
        %2228 = vmatpush1.msra.mxu0 0.0
        %2229 = vmatprep.subr.mxu0 0.0
        %2230 = vmatpush1.msra.mxu0 0.0
        %2231 = vmatprep.subr.mxu0 0.0
        %2232 = vmatpush1.msra.mxu0 0.0
        %2233 = vmatprep.subr.mxu0 0.0
        %2234 = vmatpush1.msra.mxu0 0.0
        %2235 = vmatprep.subr.mxu0 0.0
        %2236 = vmatpush1.msra.mxu0 0.0
        %2237 = vmatprep.subr.mxu0 0.0
        %2238 = vmatpush1.msra.mxu0 0.0
        %2239 = vmatprep.subr.mxu0 0.0
        %2240 = vmatpush1.msra.mxu0 0.0
        %2241 = vmatprep.subr.mxu0 0.0
        %2242 = vmatpush1.msra.mxu0 0.0
        %2243 = vmatprep.subr.mxu0 0.0
        %2244 = vmatpush1.msra.mxu0 0.0
        %2245 = vmatprep.subr.mxu0 0.0
        %2246 = vmatpush1.msra.mxu0 0.0
        %2247 = vmatprep.subr.mxu0 0.0
        %2248 = vmatpush1.msra.mxu0 0.0
        %2249 = vmatprep.mubr.f32.mxu0 0.0
        %2250 = vmatmul.mubr.f32.gmra.mrb[0].mxu0 %v2183
        %v2251 = vpop.f32.mrb[0].mxu0
        %v2252 = vadd.f32 0.0, %v2251
        %v2253 = vpop.f32.mrb[0].mxu0
        %2254 = vdwg.mxu0
        %2255 = vrot.lane.b32.xlu0 %v1321, 48
        %v2256 = vpop.permute.xlu0 %2255
        %v2259 = vsel %vm1327, %v2178, 0
        %2261 = vmatprep.subr.mxu0 0.0
        %2262 = vmatpush1.msra.mxu0 %v2256
        %2263 = vmatprep.subr.mxu0 0.0
        %2264 = vmatpush1.msra.mxu0 0.0
        %2265 = vmatprep.subr.mxu0 0.0
        %2266 = vmatpush1.msra.mxu0 0.0
        %2267 = vmatprep.subr.mxu0 0.0
        %2268 = vmatpush1.msra.mxu0 0.0
        %2269 = vmatprep.subr.mxu0 0.0
        %2270 = vmatpush1.msra.mxu0 0.0
        %2271 = vmatprep.subr.mxu0 0.0
        %2272 = vmatpush1.msra.mxu0 0.0
        %2273 = vmatprep.subr.mxu0 0.0
        %2274 = vmatpush1.msra.mxu0 0.0
        %2275 = vmatprep.subr.mxu0 0.0
        %2276 = vmatpush1.msra.mxu0 0.0
        %2277 = vmatprep.subr.mxu0 0.0
        %2278 = vmatpush1.msra.mxu0 0.0
        %2279 = vmatprep.subr.mxu0 0.0
        %2280 = vmatpush1.msra.mxu0 0.0
        %2281 = vmatprep.subr.mxu0 0.0
        %2282 = vmatpush1.msra.mxu0 0.0
        %2283 = vmatprep.subr.mxu0 0.0
        %2284 = vmatpush1.msra.mxu0 0.0
        %2285 = vmatprep.subr.mxu0 0.0
        %2286 = vmatpush1.msra.mxu0 0.0
        %2287 = vmatprep.subr.mxu0 0.0
        %2288 = vmatpush1.msra.mxu0 0.0
        %2289 = vmatprep.subr.mxu0 0.0
        %2290 = vmatpush1.msra.mxu0 0.0
        %2291 = vmatprep.subr.mxu0 0.0
        %2292 = vmatpush1.msra.mxu0 0.0
        %2293 = vmatprep.subr.mxu0 0.0
        %2294 = vmatpush1.msra.mxu0 0.0
        %2295 = vmatprep.subr.mxu0 0.0
        %2296 = vmatpush1.msra.mxu0 0.0
        %2297 = vmatprep.subr.mxu0 0.0
        %2298 = vmatpush1.msra.mxu0 0.0
        %2299 = vmatprep.subr.mxu0 0.0
        %2300 = vmatpush1.msra.mxu0 0.0
        %2301 = vmatprep.subr.mxu0 0.0
        %2302 = vmatpush1.msra.mxu0 0.0
        %2303 = vmatprep.subr.mxu0 0.0
        %2304 = vmatpush1.msra.mxu0 0.0
        %2305 = vmatprep.subr.mxu0 0.0
        %2306 = vmatpush1.msra.mxu0 0.0
        %2307 = vmatprep.subr.mxu0 0.0
        %2308 = vmatpush1.msra.mxu0 0.0
        %2309 = vmatprep.subr.mxu0 0.0
        %2310 = vmatpush1.msra.mxu0 0.0
        %2311 = vmatprep.subr.mxu0 0.0
        %2312 = vmatpush1.msra.mxu0 0.0
        %2313 = vmatprep.subr.mxu0 0.0
        %2314 = vmatpush1.msra.mxu0 0.0
        %2315 = vmatprep.subr.mxu0 0.0
        %2316 = vmatpush1.msra.mxu0 0.0
        %2317 = vmatprep.subr.mxu0 0.0
        %2318 = vmatpush1.msra.mxu0 0.0
        %2319 = vmatprep.subr.mxu0 0.0
        %2320 = vmatpush1.msra.mxu0 0.0
        %2321 = vmatprep.subr.mxu0 0.0
        %2322 = vmatpush1.msra.mxu0 0.0
        %2323 = vmatprep.subr.mxu0 0.0
        %2324 = vmatpush1.msra.mxu0 0.0
        %2325 = vmatprep.mubr.f32.mxu0 0.0
        %2326 = vmatmul.mubr.f32.gmra.mrb[0].mxu0 %v2259
        %v2327 = vpop.f32.mrb[0].mxu0
        %v2328 = vadd.f32 0.0, %v2327
        %v2329 = vpop.f32.mrb[0].mxu0
        %2330 = vdwg.mxu0
        %2331 = vrot.lane.b32.xlu0 %v1316, 104
        %v2332 = vpop.permute.xlu0 %2331
        %2333 = vrot.lane.b32.xlu0 %v1316, 72
        %v2334 = vpop.permute.xlu0 %2333
        %v2335 = vsel %vm1327, %v2332, 0
        %v2337 = vsel %vm1327, %v2334, 0
        %2339 = vmatprep.subr.mxu0 0.0
        %2340 = vmatpush1.xpose.msra.mxu0 %v2337
        %2341 = vmatprep.subr.mxu0 0.0
        %2342 = vmatpush1.xpose.msra.mxu0 0.0
        %2343 = vmatprep.subr.mxu0 0.0
        %2344 = vmatpush1.xpose.msra.mxu0 0.0
        %2345 = vmatprep.subr.mxu0 0.0
        %2346 = vmatpush1.xpose.msra.mxu0 0.0
        %2347 = vmatprep.subr.mxu0 0.0
        %2348 = vmatpush1.xpose.msra.mxu0 0.0
        %2349 = vmatprep.subr.mxu0 0.0
        %2350 = vmatpush1.xpose.msra.mxu0 0.0
        %2351 = vmatprep.subr.mxu0 0.0
        %2352 = vmatpush1.xpose.msra.mxu0 0.0
        %2353 = vmatprep.subr.mxu0 0.0
        %2354 = vmatpush1.xpose.msra.mxu0 0.0
        %2355 = vmatprep.subr.mxu0 0.0
        %2356 = vmatpush1.xpose.msra.mxu0 0.0
        %2357 = vmatprep.subr.mxu0 0.0
        %2358 = vmatpush1.xpose.msra.mxu0 0.0
        %2359 = vmatprep.subr.mxu0 0.0
        %2360 = vmatpush1.xpose.msra.mxu0 0.0
        %2361 = vmatprep.subr.mxu0 0.0
        %2362 = vmatpush1.xpose.msra.mxu0 0.0
        %2363 = vmatprep.subr.mxu0 0.0
        %2364 = vmatpush1.xpose.msra.mxu0 0.0
        %2365 = vmatprep.subr.mxu0 0.0
        %2366 = vmatpush1.xpose.msra.mxu0 0.0
        %2367 = vmatprep.subr.mxu0 0.0
        %2368 = vmatpush1.xpose.msra.mxu0 0.0
        %2369 = vmatprep.subr.mxu0 0.0
        %2370 = vmatpush1.xpose.msra.mxu0 0.0
        %2371 = vmatprep.subr.mxu0 0.0
        %2372 = vmatpush1.xpose.msra.mxu0 0.0
        %2373 = vmatprep.subr.mxu0 0.0
        %2374 = vmatpush1.xpose.msra.mxu0 0.0
        %2375 = vmatprep.subr.mxu0 0.0
        %2376 = vmatpush1.xpose.msra.mxu0 0.0
        %2377 = vmatprep.subr.mxu0 0.0
        %2378 = vmatpush1.xpose.msra.mxu0 0.0
        %2379 = vmatprep.subr.mxu0 0.0
        %2380 = vmatpush1.xpose.msra.mxu0 0.0
        %2381 = vmatprep.subr.mxu0 0.0
        %2382 = vmatpush1.xpose.msra.mxu0 0.0
        %2383 = vmatprep.subr.mxu0 0.0
        %2384 = vmatpush1.xpose.msra.mxu0 0.0
        %2385 = vmatprep.subr.mxu0 0.0
        %2386 = vmatpush1.xpose.msra.mxu0 0.0
        %2387 = vmatprep.subr.mxu0 0.0
        %2388 = vmatpush1.xpose.msra.mxu0 0.0
        %2389 = vmatprep.subr.mxu0 0.0
        %2390 = vmatpush1.xpose.msra.mxu0 0.0
        %2391 = vmatprep.subr.mxu0 0.0
        %2392 = vmatpush1.xpose.msra.mxu0 0.0
        %2393 = vmatprep.subr.mxu0 0.0
        %2394 = vmatpush1.xpose.msra.mxu0 0.0
        %2395 = vmatprep.subr.mxu0 0.0
        %2396 = vmatpush1.xpose.msra.mxu0 0.0
        %2397 = vmatprep.subr.mxu0 0.0
        %2398 = vmatpush1.xpose.msra.mxu0 0.0
        %2399 = vmatprep.subr.mxu0 0.0
        %2400 = vmatpush1.xpose.msra.mxu0 0.0
        %2401 = vmatprep.subr.mxu0 0.0
        %2402 = vmatpush1.xpose.msra.mxu0 0.0
        %2403 = vmatprep.mubr.f32.mxu0 0.0
        %2404 = vmatmul.mubr.f32.gmra.mrb[0].mxu0 %v2335
        %v2405 = vpop.f32.mrb[0].mxu0
        %v2406 = vadd.f32 0.0, %v2405
        %v2407 = vpop.f32.mrb[0].mxu0
        %2408 = vdwg.mxu0
        %2409 = vrot.lane.b32.xlu0 %v1321, 104
        %v2410 = vpop.permute.xlu0 %2409
        %2411 = vrot.lane.b32.xlu0 %v1321, 72
        %v2412 = vpop.permute.xlu0 %2411
        %v2413 = vsel %vm1327, %v2410, 0
        %v2415 = vsel %vm1327, %v2412, 0
        %2417 = vmatprep.subr.mxu0 0.0
        %2418 = vmatpush1.xpose.msra.mxu0 %v2415
        %2419 = vmatprep.subr.mxu0 0.0
        %2420 = vmatpush1.xpose.msra.mxu0 0.0
        %2421 = vmatprep.subr.mxu0 0.0
        %2422 = vmatpush1.xpose.msra.mxu0 0.0
        %2423 = vmatprep.subr.mxu0 0.0
        %2424 = vmatpush1.xpose.msra.mxu0 0.0
        %2425 = vmatprep.subr.mxu0 0.0
        %2426 = vmatpush1.xpose.msra.mxu0 0.0
        %2427 = vmatprep.subr.mxu0 0.0
        %2428 = vmatpush1.xpose.msra.mxu0 0.0
        %2429 = vmatprep.subr.mxu0 0.0
        %2430 = vmatpush1.xpose.msra.mxu0 0.0
        %2431 = vmatprep.subr.mxu0 0.0
        %2432 = vmatpush1.xpose.msra.mxu0 0.0
        %2433 = vmatprep.subr.mxu0 0.0
        %2434 = vmatpush1.xpose.msra.mxu0 0.0
        %2435 = vmatprep.subr.mxu0 0.0
        %2436 = vmatpush1.xpose.msra.mxu0 0.0
        %2437 = vmatprep.subr.mxu0 0.0
        %2438 = vmatpush1.xpose.msra.mxu0 0.0
        %2439 = vmatprep.subr.mxu0 0.0
        %2440 = vmatpush1.xpose.msra.mxu0 0.0
        %2441 = vmatprep.subr.mxu0 0.0
        %2442 = vmatpush1.xpose.msra.mxu0 0.0
        %2443 = vmatprep.subr.mxu0 0.0
        %2444 = vmatpush1.xpose.msra.mxu0 0.0
        %2445 = vmatprep.subr.mxu0 0.0
        %2446 = vmatpush1.xpose.msra.mxu0 0.0
        %2447 = vmatprep.subr.mxu0 0.0
        %2448 = vmatpush1.xpose.msra.mxu0 0.0
        %2449 = vmatprep.subr.mxu0 0.0
        %2450 = vmatpush1.xpose.msra.mxu0 0.0
        %2451 = vmatprep.subr.mxu0 0.0
        %2452 = vmatpush1.xpose.msra.mxu0 0.0
        %2453 = vmatprep.subr.mxu0 0.0
        %2454 = vmatpush1.xpose.msra.mxu0 0.0
        %2455 = vmatprep.subr.mxu0 0.0
        %2456 = vmatpush1.xpose.msra.mxu0 0.0
        %2457 = vmatprep.subr.mxu0 0.0
        %2458 = vmatpush1.xpose.msra.mxu0 0.0
        %2459 = vmatprep.subr.mxu0 0.0
        %2460 = vmatpush1.xpose.msra.mxu0 0.0
        %2461 = vmatprep.subr.mxu0 0.0
        %2462 = vmatpush1.xpose.msra.mxu0 0.0
        %2463 = vmatprep.subr.mxu0 0.0
        %2464 = vmatpush1.xpose.msra.mxu0 0.0
        %2465 = vmatprep.subr.mxu0 0.0
        %2466 = vmatpush1.xpose.msra.mxu0 0.0
        %2467 = vmatprep.subr.mxu0 0.0
        %2468 = vmatpush1.xpose.msra.mxu0 0.0
        %2469 = vmatprep.subr.mxu0 0.0
        %2470 = vmatpush1.xpose.msra.mxu0 0.0
        %2471 = vmatprep.subr.mxu0 0.0
        %2472 = vmatpush1.xpose.msra.mxu0 0.0
        %2473 = vmatprep.subr.mxu0 0.0
        %2474 = vmatpush1.xpose.msra.mxu0 0.0
        %2475 = vmatprep.subr.mxu0 0.0
        %2476 = vmatpush1.xpose.msra.mxu0 0.0
        %2477 = vmatprep.subr.mxu0 0.0
        %2478 = vmatpush1.xpose.msra.mxu0 0.0
        %2479 = vmatprep.subr.mxu0 0.0
        %2480 = vmatpush1.xpose.msra.mxu0 0.0
        %2481 = vmatprep.mubr.f32.mxu0 0.0
        %2482 = vmatmul.mubr.f32.gmra.mrb[0].mxu0 %v2413
        %v2483 = vpop.f32.mrb[0].mxu0
        %v2484 = vadd.f32 0.0, %v2483
        %v2485 = vpop.f32.mrb[0].mxu0
        %2486 = vdwg.mxu0
        %v2487 = vmul.f32 %v2406, 0.35355338
        %v2488 = vmul.f32 %v2484, 0.35355338
        %v2489 = vsel %vm1485, %v2487, -1e+09
        %v2490 = vsel %vm1486, %v2488, -1e+09
        %v2491 = vsel %vm1327, %v2489, -inf
        %2492 = vmax.xlane.f32.xlu0 %v2491
        %v2493 = vpop.xlane.xlu0 %2492
        %v2494 = vsel %vm1327, %v2490, -inf
        %2495 = vmax.xlane.f32.xlu0 %v2494
        %v2496 = vpop.xlane.xlu0 %2495
        %v2497 = vsub.f32 %v2489, %v2493
        %v2498 = vsub.f32 %v2490, %v2496
        %v2499 = vmul.f32 %v2497, 1.442695
        %v2500 = vpow.pop %v2499
        %v2501 = vmul.f32 %v2498, 1.442695
        %v2502 = vpow.pop %v2501
        %v2503 = vsel %vm1327, %v2500, 0.0
        %2504 = vadd.xlane.f32.xlu0 %v2503
        %v2505 = vpop.xlane.xlu0 %2504
        %v2506 = vsel %vm1327, %v2502, 0.0
        %2507 = vadd.xlane.f32.xlu0 %v2506
        %v2508 = vpop.xlane.xlu0 %2507
        %v2509 = vrcp.pop %v2505
        %v2510 = vrcp.pop %v2508
        %v2511 = vmul.f32 %v2500, %v2509
        %v2512 = vmul.f32 %v2502, %v2510
        %2513 = vrot.lane.b32.xlu0 %v1316, 40
        %v2514 = vpop.permute.xlu0 %2513
        %v2517 = vsel %vm1327, %v2511, 0
        %2519 = vmatprep.subr.mxu0 0.0
        %2520 = vmatpush1.msra.mxu0 %v2514
        %2521 = vmatprep.subr.mxu0 0.0
        %2522 = vmatpush1.msra.mxu0 0.0
        %2523 = vmatprep.subr.mxu0 0.0
        %2524 = vmatpush1.msra.mxu0 0.0
        %2525 = vmatprep.subr.mxu0 0.0
        %2526 = vmatpush1.msra.mxu0 0.0
        %2527 = vmatprep.subr.mxu0 0.0
        %2528 = vmatpush1.msra.mxu0 0.0
        %2529 = vmatprep.subr.mxu0 0.0
        %2530 = vmatpush1.msra.mxu0 0.0
        %2531 = vmatprep.subr.mxu0 0.0
        %2532 = vmatpush1.msra.mxu0 0.0
        %2533 = vmatprep.subr.mxu0 0.0
        %2534 = vmatpush1.msra.mxu0 0.0
        %2535 = vmatprep.subr.mxu0 0.0
        %2536 = vmatpush1.msra.mxu0 0.0
        %2537 = vmatprep.subr.mxu0 0.0
        %2538 = vmatpush1.msra.mxu0 0.0
        %2539 = vmatprep.subr.mxu0 0.0
        %2540 = vmatpush1.msra.mxu0 0.0
        %2541 = vmatprep.subr.mxu0 0.0
        %2542 = vmatpush1.msra.mxu0 0.0
        %2543 = vmatprep.subr.mxu0 0.0
        %2544 = vmatpush1.msra.mxu0 0.0
        %2545 = vmatprep.subr.mxu0 0.0
        %2546 = vmatpush1.msra.mxu0 0.0
        %2547 = vmatprep.subr.mxu0 0.0
        %2548 = vmatpush1.msra.mxu0 0.0
        %2549 = vmatprep.subr.mxu0 0.0
        %2550 = vmatpush1.msra.mxu0 0.0
        %2551 = vmatprep.subr.mxu0 0.0
        %2552 = vmatpush1.msra.mxu0 0.0
        %2553 = vmatprep.subr.mxu0 0.0
        %2554 = vmatpush1.msra.mxu0 0.0
        %2555 = vmatprep.subr.mxu0 0.0
        %2556 = vmatpush1.msra.mxu0 0.0
        %2557 = vmatprep.subr.mxu0 0.0
        %2558 = vmatpush1.msra.mxu0 0.0
        %2559 = vmatprep.subr.mxu0 0.0
        %2560 = vmatpush1.msra.mxu0 0.0
        %2561 = vmatprep.subr.mxu0 0.0
        %2562 = vmatpush1.msra.mxu0 0.0
        %2563 = vmatprep.subr.mxu0 0.0
        %2564 = vmatpush1.msra.mxu0 0.0
        %2565 = vmatprep.subr.mxu0 0.0
        %2566 = vmatpush1.msra.mxu0 0.0
        %2567 = vmatprep.subr.mxu0 0.0
        %2568 = vmatpush1.msra.mxu0 0.0
        %2569 = vmatprep.subr.mxu0 0.0
        %2570 = vmatpush1.msra.mxu0 0.0
        %2571 = vmatprep.subr.mxu0 0.0
        %2572 = vmatpush1.msra.mxu0 0.0
        %2573 = vmatprep.subr.mxu0 0.0
        %2574 = vmatpush1.msra.mxu0 0.0
        %2575 = vmatprep.subr.mxu0 0.0
        %2576 = vmatpush1.msra.mxu0 0.0
        %2577 = vmatprep.subr.mxu0 0.0
        %2578 = vmatpush1.msra.mxu0 0.0
        %2579 = vmatprep.subr.mxu0 0.0
        %2580 = vmatpush1.msra.mxu0 0.0
        %2581 = vmatprep.subr.mxu0 0.0
        %2582 = vmatpush1.msra.mxu0 0.0
        %2583 = vmatprep.mubr.f32.mxu0 0.0
        %2584 = vmatmul.mubr.f32.gmra.mrb[0].mxu0 %v2517
        %v2585 = vpop.f32.mrb[0].mxu0
        %v2586 = vadd.f32 0.0, %v2585
        %v2587 = vpop.f32.mrb[0].mxu0
        %2588 = vdwg.mxu0
        %2589 = vrot.lane.b32.xlu0 %v1321, 40
        %v2590 = vpop.permute.xlu0 %2589
        %v2593 = vsel %vm1327, %v2512, 0
        %2595 = vmatprep.subr.mxu0 0.0
        %2596 = vmatpush1.msra.mxu0 %v2590
        %2597 = vmatprep.subr.mxu0 0.0
        %2598 = vmatpush1.msra.mxu0 0.0
        %2599 = vmatprep.subr.mxu0 0.0
        %2600 = vmatpush1.msra.mxu0 0.0
        %2601 = vmatprep.subr.mxu0 0.0
        %2602 = vmatpush1.msra.mxu0 0.0
        %2603 = vmatprep.subr.mxu0 0.0
        %2604 = vmatpush1.msra.mxu0 0.0
        %2605 = vmatprep.subr.mxu0 0.0
        %2606 = vmatpush1.msra.mxu0 0.0
        %2607 = vmatprep.subr.mxu0 0.0
        %2608 = vmatpush1.msra.mxu0 0.0
        %2609 = vmatprep.subr.mxu0 0.0
        %2610 = vmatpush1.msra.mxu0 0.0
        %2611 = vmatprep.subr.mxu0 0.0
        %2612 = vmatpush1.msra.mxu0 0.0
        %2613 = vmatprep.subr.mxu0 0.0
        %2614 = vmatpush1.msra.mxu0 0.0
        %2615 = vmatprep.subr.mxu0 0.0
        %2616 = vmatpush1.msra.mxu0 0.0
        %2617 = vmatprep.subr.mxu0 0.0
        %2618 = vmatpush1.msra.mxu0 0.0
        %2619 = vmatprep.subr.mxu0 0.0
        %2620 = vmatpush1.msra.mxu0 0.0
        %2621 = vmatprep.subr.mxu0 0.0
        %2622 = vmatpush1.msra.mxu0 0.0
        %2623 = vmatprep.subr.mxu0 0.0
        %2624 = vmatpush1.msra.mxu0 0.0
        %2625 = vmatprep.subr.mxu0 0.0
        %2626 = vmatpush1.msra.mxu0 0.0
        %2627 = vmatprep.subr.mxu0 0.0
        %2628 = vmatpush1.msra.mxu0 0.0
        %2629 = vmatprep.subr.mxu0 0.0
        %2630 = vmatpush1.msra.mxu0 0.0
        %2631 = vmatprep.subr.mxu0 0.0
        %2632 = vmatpush1.msra.mxu0 0.0
        %2633 = vmatprep.subr.mxu0 0.0
        %2634 = vmatpush1.msra.mxu0 0.0
        %2635 = vmatprep.subr.mxu0 0.0
        %2636 = vmatpush1.msra.mxu0 0.0
        %2637 = vmatprep.subr.mxu0 0.0
        %2638 = vmatpush1.msra.mxu0 0.0
        %2639 = vmatprep.subr.mxu0 0.0
        %2640 = vmatpush1.msra.mxu0 0.0
        %2641 = vmatprep.subr.mxu0 0.0
        %2642 = vmatpush1.msra.mxu0 0.0
        %2643 = vmatprep.subr.mxu0 0.0
        %2644 = vmatpush1.msra.mxu0 0.0
        %2645 = vmatprep.subr.mxu0 0.0
        %2646 = vmatpush1.msra.mxu0 0.0
        %2647 = vmatprep.subr.mxu0 0.0
        %2648 = vmatpush1.msra.mxu0 0.0
        %2649 = vmatprep.subr.mxu0 0.0
        %2650 = vmatpush1.msra.mxu0 0.0
        %2651 = vmatprep.subr.mxu0 0.0
        %2652 = vmatpush1.msra.mxu0 0.0
        %2653 = vmatprep.subr.mxu0 0.0
        %2654 = vmatpush1.msra.mxu0 0.0
        %2655 = vmatprep.subr.mxu0 0.0
        %2656 = vmatpush1.msra.mxu0 0.0
        %2657 = vmatprep.subr.mxu0 0.0
        %2658 = vmatpush1.msra.mxu0 0.0
        %2659 = vmatprep.mubr.f32.mxu0 0.0
        %2660 = vmatmul.mubr.f32.gmra.mrb[0].mxu0 %v2593
        %v2661 = vpop.f32.mrb[0].mxu0
        %v2662 = vadd.f32 0.0, %v2661
        %v2663 = vpop.f32.mrb[0].mxu0
        %2664 = vdwg.mxu0
        %2667 = vrot.lane.b32.xlu0 %v1918, 8
        %v2668 = vpop.permute.xlu0 %2667
        %2669 = vrot.lane.b32.xlu0 %v1994, 8
        %v2670 = vpop.permute.xlu0 %2669
        %2675 = vrot.lane.b32.xlu0 %v2252, 16
        %v2676 = vpop.permute.xlu0 %2675
        %2677 = vrot.lane.b32.xlu0 %v2328, 16
        %v2678 = vpop.permute.xlu0 %2677
        %2683 = vrot.lane.b32.xlu0 %v2586, 24
        %v2684 = vpop.permute.xlu0 %2683
        %2685 = vrot.lane.b32.xlu0 %v2662, 24
        %v2686 = vpop.permute.xlu0 %2685
        %v2689 = vsel %vm1327, %v1584, %v2668
        %v2690 = vsel %vm1327, %v1660, %v2670
        %vm2691 = vcmask 130048
        %v2692 = vsel %vm2691, %v2689, %v2676
        %v2693 = vsel %vm2691, %v2690, %v2678
        %vm2694 = vcmask 195584
        %v2695 = vsel %vm2694, %v2692, %v2684
        %v2696 = vsel %vm2694, %v2693, %v2686
        %v2697 = vld [vmem:[%s1132] sm:$0xff]
        %v2698 = vld [vmem:[%s1132 + $0x8] sm:$0xff]
        %v2699 = vld [vmem:[%s1132 + $0x10] sm:$0xff]
        %v2700 = vld [vmem:[%s1132 + $0x18] sm:$0xff]
        %v2702 = vsel %vm1178, %v2695, 0
        %v2705 = vsel %vm1178, %v2696, 0
        %2707 = vmatprep.subr.mxu0 0.0
        %2708 = vmatpush1.msra.mxu0 %v2697
        %2709 = vmatprep.subr.mxu0 0.0
        %2710 = vmatpush1.msra.mxu0 %v2698
        %2711 = vmatprep.subr.mxu0 0.0
        %2712 = vmatpush1.msra.mxu0 %v2699
        %2713 = vmatprep.subr.mxu0 0.0
        %2714 = vmatpush1.msra.mxu0 %v2700
        %2715 = vmatprep.subr.mxu0 0.0
        %2716 = vmatpush1.msra.mxu0 0.0
        %2717 = vmatprep.subr.mxu0 0.0
        %2718 = vmatpush1.msra.mxu0 0.0
        %2719 = vmatprep.subr.mxu0 0.0
        %2720 = vmatpush1.msra.mxu0 0.0
        %2721 = vmatprep.subr.mxu0 0.0
        %2722 = vmatpush1.msra.mxu0 0.0
        %2723 = vmatprep.subr.mxu0 0.0
        %2724 = vmatpush1.msra.mxu0 0.0
        %2725 = vmatprep.subr.mxu0 0.0
        %2726 = vmatpush1.msra.mxu0 0.0
        %2727 = vmatprep.subr.mxu0 0.0
        %2728 = vmatpush1.msra.mxu0 0.0
        %2729 = vmatprep.subr.mxu0 0.0
        %2730 = vmatpush1.msra.mxu0 0.0
        %2731 = vmatprep.subr.mxu0 0.0
        %2732 = vmatpush1.msra.mxu0 0.0
        %2733 = vmatprep.subr.mxu0 0.0
        %2734 = vmatpush1.msra.mxu0 0.0
        %2735 = vmatprep.subr.mxu0 0.0
        %2736 = vmatpush1.msra.mxu0 0.0
        %2737 = vmatprep.subr.mxu0 0.0
        %2738 = vmatpush1.msra.mxu0 0.0
        %2739 = vmatprep.subr.mxu0 0.0
        %2740 = vmatpush1.msra.mxu0 0.0
        %2741 = vmatprep.subr.mxu0 0.0
        %2742 = vmatpush1.msra.mxu0 0.0
        %2743 = vmatprep.subr.mxu0 0.0
        %2744 = vmatpush1.msra.mxu0 0.0
        %2745 = vmatprep.subr.mxu0 0.0
        %2746 = vmatpush1.msra.mxu0 0.0
        %2747 = vmatprep.subr.mxu0 0.0
        %2748 = vmatpush1.msra.mxu0 0.0
        %2749 = vmatprep.subr.mxu0 0.0
        %2750 = vmatpush1.msra.mxu0 0.0
        %2751 = vmatprep.subr.mxu0 0.0
        %2752 = vmatpush1.msra.mxu0 0.0
        %2753 = vmatprep.subr.mxu0 0.0
        %2754 = vmatpush1.msra.mxu0 0.0
        %2755 = vmatprep.subr.mxu0 0.0
        %2756 = vmatpush1.msra.mxu0 0.0
        %2757 = vmatprep.subr.mxu0 0.0
        %2758 = vmatpush1.msra.mxu0 0.0
        %2759 = vmatprep.subr.mxu0 0.0
        %2760 = vmatpush1.msra.mxu0 0.0
        %2761 = vmatprep.subr.mxu0 0.0
        %2762 = vmatpush1.msra.mxu0 0.0
        %2763 = vmatprep.subr.mxu0 0.0
        %2764 = vmatpush1.msra.mxu0 0.0
        %2765 = vmatprep.subr.mxu0 0.0
        %2766 = vmatpush1.msra.mxu0 0.0
        %2767 = vmatprep.subr.mxu0 0.0
        %2768 = vmatpush1.msra.mxu0 0.0
        %2769 = vmatprep.subr.mxu0 0.0
        %2770 = vmatpush1.msra.mxu0 0.0
        %2771 = vmatprep.mubr.f32.mxu0 0.0
        %2772 = vmatmul.mubr.f32.gmra.mrb[0].mxu0 %v2702
        %v2773 = vpop.f32.mrb[0].mxu0
        %v2774 = vadd.f32 0.0, %v2773
        %v2775 = vpop.f32.mrb[0].mxu0
        %2776 = vmatprep.mubr.f32.mxu0 0.0
        %2777 = vmatmul.mubr.f32.gmra.mrb[0].mxu0 %v2705
        %v2778 = vpop.f32.mrb[0].mxu0
        %v2779 = vadd.f32 0.0, %v2778
        %v2780 = vpop.f32.mrb[0].mxu0
        %2781 = vdwg.mxu0
        %v2782 = vadd.f32 %v1162, %v2774
        %v2783 = vadd.f32 %v1163, %v2779
        %v2784 = vld [vmem:[%s934] sm:$0x1]
        %v2786 = vlaneseq
        %v2787 = vshrl.u32 %v2786, 7
        %v2788 = vsub.s32 0, %v2787
        %v2789 = vrot.slane %v2784, %v2788
        %v2791 = vadd.f32 %v2782, %v2789
        %v2792 = vadd.f32 %v2783, %v2789
        %v2793 = vsel %vm1178, %v2791, 0.0
        %2794 = vadd.xlane.f32.xlu0 %v2793
        %v2795 = vpop.xlane.xlu0 %2794
        %v2796 = vsel %vm1178, %v2792, 0.0
        %2797 = vadd.xlane.f32.xlu0 %v2796
        %v2798 = vpop.xlane.xlu0 %2797
        %v2799 = vmul.f32 %v2795, %v1185
        %v2800 = vmul.f32 %v2798, %v1185
        %v2801 = vsub.f32 %v2791, %v2799
        %v2802 = vsub.f32 %v2792, %v2800
        %v2803 = vmul.f32 %v2801, %v2801
        %v2804 = vmul.f32 %v2802, %v2802
        %v2805 = vsel %vm1178, %v2803, 0.0
        %2806 = vadd.xlane.f32.xlu0 %v2805
        %v2807 = vpop.xlane.xlu0 %2806
        %v2808 = vsel %vm1178, %v2804, 0.0
        %2809 = vadd.xlane.f32.xlu0 %v2808
        %v2810 = vpop.xlane.xlu0 %2809
        %v2811 = vmul.f32 %v2807, 0.032258064
        %v2812 = vmul.f32 %v2810, 0.032258064
        %v2813 = vrsqrt.pop %v2811
        %v2814 = vmul.f32 %v2811, %v2813
        %vm2815 = vcmp.eq.f32.partialorder %v2811, inf
        %v2816 = vsel %vm2815, %v2811, %v2814
        %vm2817 = vcmp.eq.f32.partialorder %v2811, 0.0
        %v2818 = vand.u32 %v2811, 2147483648
        %v2819 = vsel %vm2817, %v2818, %v2816
        %v2820 = vrsqrt.pop %v2812
        %v2821 = vmul.f32 %v2812, %v2820
        %vm2822 = vcmp.eq.f32.partialorder %v2812, inf
        %v2823 = vsel %vm2822, %v2812, %v2821
        %vm2824 = vcmp.eq.f32.partialorder %v2812, 0.0
        %v2825 = vand.u32 %v2812, 2147483648
        %v2826 = vsel %vm2824, %v2825, %v2823
        %v2827 = vadd.f32 %v2819, 1e-06
        %v2828 = vadd.f32 %v2826, 1e-06
        %v2829 = vrcp.pop %v2827
        %v2830 = vrcp.pop %v2828
        %v2831 = vlaneseq
        %v2832 = vshrl.u32 %v2831, 7
        %v2833 = vsub.s32 1, %v2832
        %v2834 = vrot.slane %v1176, %v2833
        %v2835 = vmul.f32 %v2834, %v2801
        %v2836 = vmul.f32 %v2834, %v2802
        %v2837 = vmul.f32 %v2835, %v2829
        %v2838 = vmul.f32 %v2836, %v2830
        %v2839 = vlaneseq
        %v2840 = vshrl.u32 %v2839, 7
        %v2841 = vsub.s32 1, %v2840
        %v2842 = vrot.slane %v1177, %v2841
        %v2843 = vadd.f32 %v2837, %v2842
        %v2844 = vadd.f32 %v2838, %v2842
        %v2845 = vld [vmem:[%s1137] sm:$0xff]
        %v2846 = vld [vmem:[%s1137 + $0x8] sm:$0xff]
        %v2847 = vld [vmem:[%s1137 + $0x10] sm:$0xff]
        %v2848 = vld [vmem:[%s1137 + $0x18] sm:$0xff]
        %v2849 = vld [vmem:[%s942] sm:$0x1]
        %v2851 = vlaneseq
        %v2852 = vshrl.u32 %v2851, 7
        %v2853 = vsub.s32 0, %v2852
        %v2854 = vrot.slane %v2849, %v2853
        %v2857 = vsel %vm1178, %v2843, 0
        %v2860 = vsel %vm1178, %v2844, 0
        %2862 = vmatprep.subr.mxu0 0.0
        %2863 = vmatpush1.msra.mxu0 %v2845
        %2864 = vmatprep.subr.mxu0 0.0
        %2865 = vmatpush1.msra.mxu0 %v2846
        %2866 = vmatprep.subr.mxu0 0.0
        %2867 = vmatpush1.msra.mxu0 %v2847
        %2868 = vmatprep.subr.mxu0 0.0
        %2869 = vmatpush1.msra.mxu0 %v2848
        %2870 = vmatprep.subr.mxu0 0.0
        %2871 = vmatpush1.msra.mxu0 0.0
        %2872 = vmatprep.subr.mxu0 0.0
        %2873 = vmatpush1.msra.mxu0 0.0
        %2874 = vmatprep.subr.mxu0 0.0
        %2875 = vmatpush1.msra.mxu0 0.0
        %2876 = vmatprep.subr.mxu0 0.0
        %2877 = vmatpush1.msra.mxu0 0.0
        %2878 = vmatprep.subr.mxu0 0.0
        %2879 = vmatpush1.msra.mxu0 0.0
        %2880 = vmatprep.subr.mxu0 0.0
        %2881 = vmatpush1.msra.mxu0 0.0
        %2882 = vmatprep.subr.mxu0 0.0
        %2883 = vmatpush1.msra.mxu0 0.0
        %2884 = vmatprep.subr.mxu0 0.0
        %2885 = vmatpush1.msra.mxu0 0.0
        %2886 = vmatprep.subr.mxu0 0.0
        %2887 = vmatpush1.msra.mxu0 0.0
        %2888 = vmatprep.subr.mxu0 0.0
        %2889 = vmatpush1.msra.mxu0 0.0
        %2890 = vmatprep.subr.mxu0 0.0
        %2891 = vmatpush1.msra.mxu0 0.0
        %2892 = vmatprep.subr.mxu0 0.0
        %2893 = vmatpush1.msra.mxu0 0.0
        %2894 = vmatprep.subr.mxu0 0.0
        %2895 = vmatpush1.msra.mxu0 0.0
        %2896 = vmatprep.subr.mxu0 0.0
        %2897 = vmatpush1.msra.mxu0 0.0
        %2898 = vmatprep.subr.mxu0 0.0
        %2899 = vmatpush1.msra.mxu0 0.0
        %2900 = vmatprep.subr.mxu0 0.0
        %2901 = vmatpush1.msra.mxu0 0.0
        %2902 = vmatprep.subr.mxu0 0.0
        %2903 = vmatpush1.msra.mxu0 0.0
        %2904 = vmatprep.subr.mxu0 0.0
        %2905 = vmatpush1.msra.mxu0 0.0
        %2906 = vmatprep.subr.mxu0 0.0
        %2907 = vmatpush1.msra.mxu0 0.0
        %2908 = vmatprep.subr.mxu0 0.0
        %2909 = vmatpush1.msra.mxu0 0.0
        %2910 = vmatprep.subr.mxu0 0.0
        %2911 = vmatpush1.msra.mxu0 0.0
        %2912 = vmatprep.subr.mxu0 0.0
        %2913 = vmatpush1.msra.mxu0 0.0
        %2914 = vmatprep.subr.mxu0 0.0
        %2915 = vmatpush1.msra.mxu0 0.0
        %2916 = vmatprep.subr.mxu0 0.0
        %2917 = vmatpush1.msra.mxu0 0.0
        %2918 = vmatprep.subr.mxu0 0.0
        %2919 = vmatpush1.msra.mxu0 0.0
        %2920 = vmatprep.subr.mxu0 0.0
        %2921 = vmatpush1.msra.mxu0 0.0
        %2922 = vmatprep.subr.mxu0 0.0
        %2923 = vmatpush1.msra.mxu0 0.0
        %2924 = vmatprep.subr.mxu0 0.0
        %2925 = vmatpush1.msra.mxu0 0.0
        %2926 = vmatprep.mubr.f32.mxu0 0.0
        %2927 = vmatmul.mubr.f32.gmra.mrb[0].mxu0 %v2857
        %v2928 = vpop.f32.mrb[0].mxu0
        %v2929 = vadd.f32 %v2854, %v2928
        %v2930 = vpop.f32.mrb[0].mxu0
        %2931 = vmatprep.mubr.f32.mxu0 0.0
        %2932 = vmatmul.mubr.f32.gmra.mrb[0].mxu0 %v2860
        %v2933 = vpop.f32.mrb[0].mxu0
        %v2934 = vadd.f32 %v2854, %v2933
        %v2935 = vpop.f32.mrb[0].mxu0
        %2936 = vdwg.mxu0
        %v2937 = vld [vmem:[%s951] sm:$0xff]
        %v2938 = vld [vmem:[%s951 + $0x8] sm:$0xff]
        %v2939 = vld [vmem:[%s951 + $0x10] sm:$0xff]
        %v2940 = vld [vmem:[%s951 + $0x18] sm:$0xff]
        %v2941 = vld [vmem:[%s959] sm:$0x1]
        %v2943 = vlaneseq
        %v2944 = vshrl.u32 %v2943, 7
        %v2945 = vsub.s32 0, %v2944
        %v2946 = vrot.slane %v2941, %v2945
        %v2949 = vsel %vm1178, %v1164, 0
        %v2952 = vsel %vm1178, %v1165, 0
        %v2955 = vsel %vm1178, %v1166, 0
        %v2958 = vsel %vm1178, %v1167, 0
        %2960 = vmatprep.subr.mxu0 0.0
        %2961 = vmatpush1.msra.mxu0 %v2937
        %2962 = vmatprep.subr.mxu0 0.0
        %2963 = vmatpush1.msra.mxu0 %v2938
        %2964 = vmatprep.subr.mxu0 0.0
        %2965 = vmatpush1.msra.mxu0 %v2939
        %2966 = vmatprep.subr.mxu0 0.0
        %2967 = vmatpush1.msra.mxu0 %v2940
        %2968 = vmatprep.subr.mxu0 0.0
        %2969 = vmatpush1.msra.mxu0 0.0
        %2970 = vmatprep.subr.mxu0 0.0
        %2971 = vmatpush1.msra.mxu0 0.0
        %2972 = vmatprep.subr.mxu0 0.0
        %2973 = vmatpush1.msra.mxu0 0.0
        %2974 = vmatprep.subr.mxu0 0.0
        %2975 = vmatpush1.msra.mxu0 0.0
        %2976 = vmatprep.subr.mxu0 0.0
        %2977 = vmatpush1.msra.mxu0 0.0
        %2978 = vmatprep.subr.mxu0 0.0
        %2979 = vmatpush1.msra.mxu0 0.0
        %2980 = vmatprep.subr.mxu0 0.0
        %2981 = vmatpush1.msra.mxu0 0.0
        %2982 = vmatprep.subr.mxu0 0.0
        %2983 = vmatpush1.msra.mxu0 0.0
        %2984 = vmatprep.subr.mxu0 0.0
        %2985 = vmatpush1.msra.mxu0 0.0
        %2986 = vmatprep.subr.mxu0 0.0
        %2987 = vmatpush1.msra.mxu0 0.0
        %2988 = vmatprep.subr.mxu0 0.0
        %2989 = vmatpush1.msra.mxu0 0.0
        %2990 = vmatprep.subr.mxu0 0.0
        %2991 = vmatpush1.msra.mxu0 0.0
        %2992 = vmatprep.subr.mxu0 0.0
        %2993 = vmatpush1.msra.mxu0 0.0
        %2994 = vmatprep.subr.mxu0 0.0
        %2995 = vmatpush1.msra.mxu0 0.0
        %2996 = vmatprep.subr.mxu0 0.0
        %2997 = vmatpush1.msra.mxu0 0.0
        %2998 = vmatprep.subr.mxu0 0.0
        %2999 = vmatpush1.msra.mxu0 0.0
        %3000 = vmatprep.subr.mxu0 0.0
        %3001 = vmatpush1.msra.mxu0 0.0
        %3002 = vmatprep.subr.mxu0 0.0
        %3003 = vmatpush1.msra.mxu0 0.0
        %3004 = vmatprep.subr.mxu0 0.0
        %3005 = vmatpush1.msra.mxu0 0.0
        %3006 = vmatprep.subr.mxu0 0.0
        %3007 = vmatpush1.msra.mxu0 0.0
        %3008 = vmatprep.subr.mxu0 0.0
        %3009 = vmatpush1.msra.mxu0 0.0
        %3010 = vmatprep.subr.mxu0 0.0
        %3011 = vmatpush1.msra.mxu0 0.0
        %3012 = vmatprep.subr.mxu0 0.0
        %3013 = vmatpush1.msra.mxu0 0.0
        %3014 = vmatprep.subr.mxu0 0.0
        %3015 = vmatpush1.msra.mxu0 0.0
        %3016 = vmatprep.subr.mxu0 0.0
        %3017 = vmatpush1.msra.mxu0 0.0
        %3018 = vmatprep.subr.mxu0 0.0
        %3019 = vmatpush1.msra.mxu0 0.0
        %3020 = vmatprep.subr.mxu0 0.0
        %3021 = vmatpush1.msra.mxu0 0.0
        %3022 = vmatprep.subr.mxu0 0.0
        %3023 = vmatpush1.msra.mxu0 0.0
        %3024 = vmatprep.mubr.f32.mxu0 0.0
        %3025 = vmatmul.mubr.f32.gmra.mrb[0].mxu0 %v2949
        %v3026 = vpop.f32.mrb[0].mxu0
        %v3027 = vadd.f32 %v2946, %v3026
        %v3028 = vpop.f32.mrb[0].mxu0
        %3029 = vmatprep.mubr.f32.mxu0 0.0
        %3030 = vmatmul.mubr.f32.gmra.mrb[0].mxu0 %v2952
        %v3031 = vpop.f32.mrb[0].mxu0
        %v3032 = vadd.f32 %v2946, %v3031
        %v3033 = vpop.f32.mrb[0].mxu0
        %3034 = vmatprep.mubr.f32.mxu0 0.0
        %3035 = vmatmul.mubr.f32.gmra.mrb[0].mxu0 %v2955
        %v3036 = vpop.f32.mrb[0].mxu0
        %v3037 = vadd.f32 %v2946, %v3036
        %v3038 = vpop.f32.mrb[0].mxu0
        %3039 = vmatprep.mubr.f32.mxu0 0.0
        %3040 = vmatmul.mubr.f32.gmra.mrb[0].mxu0 %v2958
        %v3041 = vpop.f32.mrb[0].mxu0
        %v3042 = vadd.f32 %v2946, %v3041
        %v3043 = vpop.f32.mrb[0].mxu0
        %3044 = vdwg.mxu0
        %v3046 = vsel %vm1327, %v2929, 0
        %v3049 = vsel %vm1327, %v3027, 0
        %v3052 = vsel %vm1327, %v3032, 0
        %3054 = vmatprep.subr.mxu0 0.0
        %3055 = vmatpush1.xpose.msra.mxu0 %v3049
        %3056 = vmatprep.subr.mxu0 0.0
        %3057 = vmatpush1.xpose.msra.mxu0 %v3052
        %3058 = vmatprep.subr.mxu0 0.0
        %3059 = vmatpush1.xpose.msra.mxu0 0.0
        %3060 = vmatprep.subr.mxu0 0.0
        %3061 = vmatpush1.xpose.msra.mxu0 0.0
        %3062 = vmatprep.subr.mxu0 0.0
        %3063 = vmatpush1.xpose.msra.mxu0 0.0
        %3064 = vmatprep.subr.mxu0 0.0
        %3065 = vmatpush1.xpose.msra.mxu0 0.0
        %3066 = vmatprep.subr.mxu0 0.0
        %3067 = vmatpush1.xpose.msra.mxu0 0.0
        %3068 = vmatprep.subr.mxu0 0.0
        %3069 = vmatpush1.xpose.msra.mxu0 0.0
        %3070 = vmatprep.subr.mxu0 0.0
        %3071 = vmatpush1.xpose.msra.mxu0 0.0
        %3072 = vmatprep.subr.mxu0 0.0
        %3073 = vmatpush1.xpose.msra.mxu0 0.0
        %3074 = vmatprep.subr.mxu0 0.0
        %3075 = vmatpush1.xpose.msra.mxu0 0.0
        %3076 = vmatprep.subr.mxu0 0.0
        %3077 = vmatpush1.xpose.msra.mxu0 0.0
        %3078 = vmatprep.subr.mxu0 0.0
        %3079 = vmatpush1.xpose.msra.mxu0 0.0
        %3080 = vmatprep.subr.mxu0 0.0
        %3081 = vmatpush1.xpose.msra.mxu0 0.0
        %3082 = vmatprep.subr.mxu0 0.0
        %3083 = vmatpush1.xpose.msra.mxu0 0.0
        %3084 = vmatprep.subr.mxu0 0.0
        %3085 = vmatpush1.xpose.msra.mxu0 0.0
        %3086 = vmatprep.subr.mxu0 0.0
        %3087 = vmatpush1.xpose.msra.mxu0 0.0
        %3088 = vmatprep.subr.mxu0 0.0
        %3089 = vmatpush1.xpose.msra.mxu0 0.0
        %3090 = vmatprep.subr.mxu0 0.0
        %3091 = vmatpush1.xpose.msra.mxu0 0.0
        %3092 = vmatprep.subr.mxu0 0.0
        %3093 = vmatpush1.xpose.msra.mxu0 0.0
        %3094 = vmatprep.subr.mxu0 0.0
        %3095 = vmatpush1.xpose.msra.mxu0 0.0
        %3096 = vmatprep.subr.mxu0 0.0
        %3097 = vmatpush1.xpose.msra.mxu0 0.0
        %3098 = vmatprep.subr.mxu0 0.0
        %3099 = vmatpush1.xpose.msra.mxu0 0.0
        %3100 = vmatprep.subr.mxu0 0.0
        %3101 = vmatpush1.xpose.msra.mxu0 0.0
        %3102 = vmatprep.subr.mxu0 0.0
        %3103 = vmatpush1.xpose.msra.mxu0 0.0
        %3104 = vmatprep.subr.mxu0 0.0
        %3105 = vmatpush1.xpose.msra.mxu0 0.0
        %3106 = vmatprep.subr.mxu0 0.0
        %3107 = vmatpush1.xpose.msra.mxu0 0.0
        %3108 = vmatprep.subr.mxu0 0.0
        %3109 = vmatpush1.xpose.msra.mxu0 0.0
        %3110 = vmatprep.subr.mxu0 0.0
        %3111 = vmatpush1.xpose.msra.mxu0 0.0
        %3112 = vmatprep.subr.mxu0 0.0
        %3113 = vmatpush1.xpose.msra.mxu0 0.0
        %3114 = vmatprep.subr.mxu0 0.0
        %3115 = vmatpush1.xpose.msra.mxu0 0.0
        %3116 = vmatprep.subr.mxu0 0.0
        %3117 = vmatpush1.xpose.msra.mxu0 0.0
        %3118 = vmatprep.mubr.f32.mxu0 0.0
        %3119 = vmatmul.mubr.f32.gmra.mrb[0].mxu0 %v3046
        %v3120 = vpop.f32.mrb[0].mxu0
        %v3121 = vadd.f32 0.0, %v3120
        %v3122 = vpop.f32.mrb[0].mxu0
        %3123 = vdwg.mxu0
        %v3125 = vsel %vm1327, %v2934, 0
        %v3128 = vsel %vm1327, %v3037, 0
        %v3131 = vsel %vm1327, %v3042, 0
        %3133 = vmatprep.subr.mxu0 0.0
        %3134 = vmatpush1.xpose.msra.mxu0 %v3128
        %3135 = vmatprep.subr.mxu0 0.0
        %3136 = vmatpush1.xpose.msra.mxu0 %v3131
        %3137 = vmatprep.subr.mxu0 0.0
        %3138 = vmatpush1.xpose.msra.mxu0 0.0
        %3139 = vmatprep.subr.mxu0 0.0
        %3140 = vmatpush1.xpose.msra.mxu0 0.0
        %3141 = vmatprep.subr.mxu0 0.0
        %3142 = vmatpush1.xpose.msra.mxu0 0.0
        %3143 = vmatprep.subr.mxu0 0.0
        %3144 = vmatpush1.xpose.msra.mxu0 0.0
        %3145 = vmatprep.subr.mxu0 0.0
        %3146 = vmatpush1.xpose.msra.mxu0 0.0
        %3147 = vmatprep.subr.mxu0 0.0
        %3148 = vmatpush1.xpose.msra.mxu0 0.0
        %3149 = vmatprep.subr.mxu0 0.0
        %3150 = vmatpush1.xpose.msra.mxu0 0.0
        %3151 = vmatprep.subr.mxu0 0.0
        %3152 = vmatpush1.xpose.msra.mxu0 0.0
        %3153 = vmatprep.subr.mxu0 0.0
        %3154 = vmatpush1.xpose.msra.mxu0 0.0
        %3155 = vmatprep.subr.mxu0 0.0
        %3156 = vmatpush1.xpose.msra.mxu0 0.0
        %3157 = vmatprep.subr.mxu0 0.0
        %3158 = vmatpush1.xpose.msra.mxu0 0.0
        %3159 = vmatprep.subr.mxu0 0.0
        %3160 = vmatpush1.xpose.msra.mxu0 0.0
        %3161 = vmatprep.subr.mxu0 0.0
        %3162 = vmatpush1.xpose.msra.mxu0 0.0
        %3163 = vmatprep.subr.mxu0 0.0
        %3164 = vmatpush1.xpose.msra.mxu0 0.0
        %3165 = vmatprep.subr.mxu0 0.0
        %3166 = vmatpush1.xpose.msra.mxu0 0.0
        %3167 = vmatprep.subr.mxu0 0.0
        %3168 = vmatpush1.xpose.msra.mxu0 0.0
        %3169 = vmatprep.subr.mxu0 0.0
        %3170 = vmatpush1.xpose.msra.mxu0 0.0
        %3171 = vmatprep.subr.mxu0 0.0
        %3172 = vmatpush1.xpose.msra.mxu0 0.0
        %3173 = vmatprep.subr.mxu0 0.0
        %3174 = vmatpush1.xpose.msra.mxu0 0.0
        %3175 = vmatprep.subr.mxu0 0.0
        %3176 = vmatpush1.xpose.msra.mxu0 0.0
        %3177 = vmatprep.subr.mxu0 0.0
        %3178 = vmatpush1.xpose.msra.mxu0 0.0
        %3179 = vmatprep.subr.mxu0 0.0
        %3180 = vmatpush1.xpose.msra.mxu0 0.0
        %3181 = vmatprep.subr.mxu0 0.0
        %3182 = vmatpush1.xpose.msra.mxu0 0.0
        %3183 = vmatprep.subr.mxu0 0.0
        %3184 = vmatpush1.xpose.msra.mxu0 0.0
        %3185 = vmatprep.subr.mxu0 0.0
        %3186 = vmatpush1.xpose.msra.mxu0 0.0
        %3187 = vmatprep.subr.mxu0 0.0
        %3188 = vmatpush1.xpose.msra.mxu0 0.0
        %3189 = vmatprep.subr.mxu0 0.0
        %3190 = vmatpush1.xpose.msra.mxu0 0.0
        %3191 = vmatprep.subr.mxu0 0.0
        %3192 = vmatpush1.xpose.msra.mxu0 0.0
        %3193 = vmatprep.subr.mxu0 0.0
        %3194 = vmatpush1.xpose.msra.mxu0 0.0
        %3195 = vmatprep.subr.mxu0 0.0
        %3196 = vmatpush1.xpose.msra.mxu0 0.0
        %3197 = vmatprep.mubr.f32.mxu0 0.0
        %3198 = vmatmul.mubr.f32.gmra.mrb[0].mxu0 %v3125
        %v3199 = vpop.f32.mrb[0].mxu0
        %v3200 = vadd.f32 0.0, %v3199
        %v3201 = vpop.f32.mrb[0].mxu0
        %3202 = vdwg.mxu0
        %v3203 = vmul.f32 %v3121, 0.35355338
        %v3204 = vmul.f32 %v3200, 0.35355338
        %v3205 = vsel %vm1170, 16843009, 0
        %v3206 = vsel %vm1171, 16843009, 0
        %v3207 = vunpack.c.0.s8 %v3205
        %v3208 = vunpack.c.0.s8 %v3206
        %vm3209 = vcmp.ne.s32.totalorder %v3207, 0
        %vm3210 = vcmp.ne.s32.totalorder %v3208, 0
        %v3211 = vsel %vm3209, %v3203, -1e+09
        %v3212 = vsel %vm3210, %v3204, -1e+09
        %v3213 = vsel %vm2691, %v3211, -inf
        %3214 = vmax.xlane.f32.xlu0 %v3213
        %v3215 = vpop.xlane.xlu0 %3214
        %v3216 = vsel %vm2691, %v3212, -inf
        %3217 = vmax.xlane.f32.xlu0 %v3216
        %v3218 = vpop.xlane.xlu0 %3217
        %v3219 = vsub.f32 %v3211, %v3215
        %v3220 = vsub.f32 %v3212, %v3218
        %v3221 = vmul.f32 %v3219, 1.442695
        %v3222 = vpow.pop %v3221
        %v3223 = vmul.f32 %v3220, 1.442695
        %v3224 = vpow.pop %v3223
        %v3225 = vsel %vm2691, %v3222, 0.0
        %3226 = vadd.xlane.f32.xlu0 %v3225
        %v3227 = vpop.xlane.xlu0 %3226
        %v3228 = vsel %vm2691, %v3224, 0.0
        %3229 = vadd.xlane.f32.xlu0 %v3228
        %v3230 = vpop.xlane.xlu0 %3229
        %v3231 = vrcp.pop %v3227
        %v3232 = vrcp.pop %v3230
        %v3233 = vmul.f32 %v3222, %v3231
        %v3234 = vmul.f32 %v3224, %v3232
        %3235 = vrot.lane.b32.xlu0 %v3027, 96
        %v3236 = vpop.permute.xlu0 %3235
        %3237 = vrot.lane.b32.xlu0 %v3032, 96
        %v3238 = vpop.permute.xlu0 %3237
        %v3242 = vsel %vm2691, %v3233, 0
        %3244 = vmatprep.subr.mxu0 0.0
        %3245 = vmatpush1.msra.mxu0 %v3236
        %3246 = vmatprep.subr.mxu0 0.0
        %3247 = vmatpush1.msra.mxu0 %v3238
        %3248 = vmatprep.subr.mxu0 0.0
        %3249 = vmatpush1.msra.mxu0 0.0
        %3250 = vmatprep.subr.mxu0 0.0
        %3251 = vmatpush1.msra.mxu0 0.0
        %3252 = vmatprep.subr.mxu0 0.0
        %3253 = vmatpush1.msra.mxu0 0.0
        %3254 = vmatprep.subr.mxu0 0.0
        %3255 = vmatpush1.msra.mxu0 0.0
        %3256 = vmatprep.subr.mxu0 0.0
        %3257 = vmatpush1.msra.mxu0 0.0
        %3258 = vmatprep.subr.mxu0 0.0
        %3259 = vmatpush1.msra.mxu0 0.0
        %3260 = vmatprep.subr.mxu0 0.0
        %3261 = vmatpush1.msra.mxu0 0.0
        %3262 = vmatprep.subr.mxu0 0.0
        %3263 = vmatpush1.msra.mxu0 0.0
        %3264 = vmatprep.subr.mxu0 0.0
        %3265 = vmatpush1.msra.mxu0 0.0
        %3266 = vmatprep.subr.mxu0 0.0
        %3267 = vmatpush1.msra.mxu0 0.0
        %3268 = vmatprep.subr.mxu0 0.0
        %3269 = vmatpush1.msra.mxu0 0.0
        %3270 = vmatprep.subr.mxu0 0.0
        %3271 = vmatpush1.msra.mxu0 0.0
        %3272 = vmatprep.subr.mxu0 0.0
        %3273 = vmatpush1.msra.mxu0 0.0
        %3274 = vmatprep.subr.mxu0 0.0
        %3275 = vmatpush1.msra.mxu0 0.0
        %3276 = vmatprep.subr.mxu0 0.0
        %3277 = vmatpush1.msra.mxu0 0.0
        %3278 = vmatprep.subr.mxu0 0.0
        %3279 = vmatpush1.msra.mxu0 0.0
        %3280 = vmatprep.subr.mxu0 0.0
        %3281 = vmatpush1.msra.mxu0 0.0
        %3282 = vmatprep.subr.mxu0 0.0
        %3283 = vmatpush1.msra.mxu0 0.0
        %3284 = vmatprep.subr.mxu0 0.0
        %3285 = vmatpush1.msra.mxu0 0.0
        %3286 = vmatprep.subr.mxu0 0.0
        %3287 = vmatpush1.msra.mxu0 0.0
        %3288 = vmatprep.subr.mxu0 0.0
        %3289 = vmatpush1.msra.mxu0 0.0
        %3290 = vmatprep.subr.mxu0 0.0
        %3291 = vmatpush1.msra.mxu0 0.0
        %3292 = vmatprep.subr.mxu0 0.0
        %3293 = vmatpush1.msra.mxu0 0.0
        %3294 = vmatprep.subr.mxu0 0.0
        %3295 = vmatpush1.msra.mxu0 0.0
        %3296 = vmatprep.subr.mxu0 0.0
        %3297 = vmatpush1.msra.mxu0 0.0
        %3298 = vmatprep.subr.mxu0 0.0
        %3299 = vmatpush1.msra.mxu0 0.0
        %3300 = vmatprep.subr.mxu0 0.0
        %3301 = vmatpush1.msra.mxu0 0.0
        %3302 = vmatprep.subr.mxu0 0.0
        %3303 = vmatpush1.msra.mxu0 0.0
        %3304 = vmatprep.subr.mxu0 0.0
        %3305 = vmatpush1.msra.mxu0 0.0
        %3306 = vmatprep.subr.mxu0 0.0
        %3307 = vmatpush1.msra.mxu0 0.0
        %3308 = vmatprep.mubr.f32.mxu0 0.0
        %3309 = vmatmul.mubr.f32.gmra.mrb[0].mxu0 %v3242
        %v3310 = vpop.f32.mrb[0].mxu0
        %v3311 = vadd.f32 0.0, %v3310
        %v3312 = vpop.f32.mrb[0].mxu0
        %3313 = vdwg.mxu0
        %3314 = vrot.lane.b32.xlu0 %v3037, 96
        %v3315 = vpop.permute.xlu0 %3314
        %3316 = vrot.lane.b32.xlu0 %v3042, 96
        %v3317 = vpop.permute.xlu0 %3316
        %v3321 = vsel %vm2691, %v3234, 0
        %3323 = vmatprep.subr.mxu0 0.0
        %3324 = vmatpush1.msra.mxu0 %v3315
        %3325 = vmatprep.subr.mxu0 0.0
        %3326 = vmatpush1.msra.mxu0 %v3317
        %3327 = vmatprep.subr.mxu0 0.0
        %3328 = vmatpush1.msra.mxu0 0.0
        %3329 = vmatprep.subr.mxu0 0.0
        %3330 = vmatpush1.msra.mxu0 0.0
        %3331 = vmatprep.subr.mxu0 0.0
        %3332 = vmatpush1.msra.mxu0 0.0
        %3333 = vmatprep.subr.mxu0 0.0
        %3334 = vmatpush1.msra.mxu0 0.0
        %3335 = vmatprep.subr.mxu0 0.0
        %3336 = vmatpush1.msra.mxu0 0.0
        %3337 = vmatprep.subr.mxu0 0.0
        %3338 = vmatpush1.msra.mxu0 0.0
        %3339 = vmatprep.subr.mxu0 0.0
        %3340 = vmatpush1.msra.mxu0 0.0
        %3341 = vmatprep.subr.mxu0 0.0
        %3342 = vmatpush1.msra.mxu0 0.0
        %3343 = vmatprep.subr.mxu0 0.0
        %3344 = vmatpush1.msra.mxu0 0.0
        %3345 = vmatprep.subr.mxu0 0.0
        %3346 = vmatpush1.msra.mxu0 0.0
        %3347 = vmatprep.subr.mxu0 0.0
        %3348 = vmatpush1.msra.mxu0 0.0
        %3349 = vmatprep.subr.mxu0 0.0
        %3350 = vmatpush1.msra.mxu0 0.0
        %3351 = vmatprep.subr.mxu0 0.0
        %3352 = vmatpush1.msra.mxu0 0.0
        %3353 = vmatprep.subr.mxu0 0.0
        %3354 = vmatpush1.msra.mxu0 0.0
        %3355 = vmatprep.subr.mxu0 0.0
        %3356 = vmatpush1.msra.mxu0 0.0
        %3357 = vmatprep.subr.mxu0 0.0
        %3358 = vmatpush1.msra.mxu0 0.0
        %3359 = vmatprep.subr.mxu0 0.0
        %3360 = vmatpush1.msra.mxu0 0.0
        %3361 = vmatprep.subr.mxu0 0.0
        %3362 = vmatpush1.msra.mxu0 0.0
        %3363 = vmatprep.subr.mxu0 0.0
        %3364 = vmatpush1.msra.mxu0 0.0
        %3365 = vmatprep.subr.mxu0 0.0
        %3366 = vmatpush1.msra.mxu0 0.0
        %3367 = vmatprep.subr.mxu0 0.0
        %3368 = vmatpush1.msra.mxu0 0.0
        %3369 = vmatprep.subr.mxu0 0.0
        %3370 = vmatpush1.msra.mxu0 0.0
        %3371 = vmatprep.subr.mxu0 0.0
        %3372 = vmatpush1.msra.mxu0 0.0
        %3373 = vmatprep.subr.mxu0 0.0
        %3374 = vmatpush1.msra.mxu0 0.0
        %3375 = vmatprep.subr.mxu0 0.0
        %3376 = vmatpush1.msra.mxu0 0.0
        %3377 = vmatprep.subr.mxu0 0.0
        %3378 = vmatpush1.msra.mxu0 0.0
        %3379 = vmatprep.subr.mxu0 0.0
        %3380 = vmatpush1.msra.mxu0 0.0
        %3381 = vmatprep.subr.mxu0 0.0
        %3382 = vmatpush1.msra.mxu0 0.0
        %3383 = vmatprep.subr.mxu0 0.0
        %3384 = vmatpush1.msra.mxu0 0.0
        %3385 = vmatprep.subr.mxu0 0.0
        %3386 = vmatpush1.msra.mxu0 0.0
        %3387 = vmatprep.mubr.f32.mxu0 0.0
        %3388 = vmatmul.mubr.f32.gmra.mrb[0].mxu0 %v3321
        %v3389 = vpop.f32.mrb[0].mxu0
        %v3390 = vadd.f32 0.0, %v3389
        %v3391 = vpop.f32.mrb[0].mxu0
        %3392 = vdwg.mxu0
        %3393 = vrot.lane.b32.xlu0 %v2929, 120
        %v3394 = vpop.permute.xlu0 %3393
        %3395 = vrot.lane.b32.xlu0 %v3027, 120
        %v3396 = vpop.permute.xlu0 %3395
        %3397 = vrot.lane.b32.xlu0 %v3032, 120
        %v3398 = vpop.permute.xlu0 %3397
        %v3399 = vsel %vm1327, %v3394, 0
        %v3401 = vsel %vm1327, %v3396, 0
        %v3403 = vsel %vm1327, %v3398, 0
        %3405 = vmatprep.subr.mxu0 0.0
        %3406 = vmatpush1.xpose.msra.mxu0 %v3401
        %3407 = vmatprep.subr.mxu0 0.0
        %3408 = vmatpush1.xpose.msra.mxu0 %v3403
        %3409 = vmatprep.subr.mxu0 0.0
        %3410 = vmatpush1.xpose.msra.mxu0 0.0
        %3411 = vmatprep.subr.mxu0 0.0
        %3412 = vmatpush1.xpose.msra.mxu0 0.0
        %3413 = vmatprep.subr.mxu0 0.0
        %3414 = vmatpush1.xpose.msra.mxu0 0.0
        %3415 = vmatprep.subr.mxu0 0.0
        %3416 = vmatpush1.xpose.msra.mxu0 0.0
        %3417 = vmatprep.subr.mxu0 0.0
        %3418 = vmatpush1.xpose.msra.mxu0 0.0
        %3419 = vmatprep.subr.mxu0 0.0
        %3420 = vmatpush1.xpose.msra.mxu0 0.0
        %3421 = vmatprep.subr.mxu0 0.0
        %3422 = vmatpush1.xpose.msra.mxu0 0.0
        %3423 = vmatprep.subr.mxu0 0.0
        %3424 = vmatpush1.xpose.msra.mxu0 0.0
        %3425 = vmatprep.subr.mxu0 0.0
        %3426 = vmatpush1.xpose.msra.mxu0 0.0
        %3427 = vmatprep.subr.mxu0 0.0
        %3428 = vmatpush1.xpose.msra.mxu0 0.0
        %3429 = vmatprep.subr.mxu0 0.0
        %3430 = vmatpush1.xpose.msra.mxu0 0.0
        %3431 = vmatprep.subr.mxu0 0.0
        %3432 = vmatpush1.xpose.msra.mxu0 0.0
        %3433 = vmatprep.subr.mxu0 0.0
        %3434 = vmatpush1.xpose.msra.mxu0 0.0
        %3435 = vmatprep.subr.mxu0 0.0
        %3436 = vmatpush1.xpose.msra.mxu0 0.0
        %3437 = vmatprep.subr.mxu0 0.0
        %3438 = vmatpush1.xpose.msra.mxu0 0.0
        %3439 = vmatprep.subr.mxu0 0.0
        %3440 = vmatpush1.xpose.msra.mxu0 0.0
        %3441 = vmatprep.subr.mxu0 0.0
        %3442 = vmatpush1.xpose.msra.mxu0 0.0
        %3443 = vmatprep.subr.mxu0 0.0
        %3444 = vmatpush1.xpose.msra.mxu0 0.0
        %3445 = vmatprep.subr.mxu0 0.0
        %3446 = vmatpush1.xpose.msra.mxu0 0.0
        %3447 = vmatprep.subr.mxu0 0.0
        %3448 = vmatpush1.xpose.msra.mxu0 0.0
        %3449 = vmatprep.subr.mxu0 0.0
        %3450 = vmatpush1.xpose.msra.mxu0 0.0
        %3451 = vmatprep.subr.mxu0 0.0
        %3452 = vmatpush1.xpose.msra.mxu0 0.0
        %3453 = vmatprep.subr.mxu0 0.0
        %3454 = vmatpush1.xpose.msra.mxu0 0.0
        %3455 = vmatprep.subr.mxu0 0.0
        %3456 = vmatpush1.xpose.msra.mxu0 0.0
        %3457 = vmatprep.subr.mxu0 0.0
        %3458 = vmatpush1.xpose.msra.mxu0 0.0
        %3459 = vmatprep.subr.mxu0 0.0
        %3460 = vmatpush1.xpose.msra.mxu0 0.0
        %3461 = vmatprep.subr.mxu0 0.0
        %3462 = vmatpush1.xpose.msra.mxu0 0.0
        %3463 = vmatprep.subr.mxu0 0.0
        %3464 = vmatpush1.xpose.msra.mxu0 0.0
        %3465 = vmatprep.subr.mxu0 0.0
        %3466 = vmatpush1.xpose.msra.mxu0 0.0
        %3467 = vmatprep.subr.mxu0 0.0
        %3468 = vmatpush1.xpose.msra.mxu0 0.0
        %3469 = vmatprep.mubr.f32.mxu0 0.0
        %3470 = vmatmul.mubr.f32.gmra.mrb[0].mxu0 %v3399
        %v3471 = vpop.f32.mrb[0].mxu0
        %v3472 = vadd.f32 0.0, %v3471
        %v3473 = vpop.f32.mrb[0].mxu0
        %3474 = vdwg.mxu0
        %3475 = vrot.lane.b32.xlu0 %v2934, 120
        %v3476 = vpop.permute.xlu0 %3475
        %3477 = vrot.lane.b32.xlu0 %v3037, 120
        %v3478 = vpop.permute.xlu0 %3477
        %3479 = vrot.lane.b32.xlu0 %v3042, 120
        %v3480 = vpop.permute.xlu0 %3479
        %v3481 = vsel %vm1327, %v3476, 0
        %v3483 = vsel %vm1327, %v3478, 0
        %v3485 = vsel %vm1327, %v3480, 0
        %3487 = vmatprep.subr.mxu0 0.0
        %3488 = vmatpush1.xpose.msra.mxu0 %v3483
        %3489 = vmatprep.subr.mxu0 0.0
        %3490 = vmatpush1.xpose.msra.mxu0 %v3485
        %3491 = vmatprep.subr.mxu0 0.0
        %3492 = vmatpush1.xpose.msra.mxu0 0.0
        %3493 = vmatprep.subr.mxu0 0.0
        %3494 = vmatpush1.xpose.msra.mxu0 0.0
        %3495 = vmatprep.subr.mxu0 0.0
        %3496 = vmatpush1.xpose.msra.mxu0 0.0
        %3497 = vmatprep.subr.mxu0 0.0
        %3498 = vmatpush1.xpose.msra.mxu0 0.0
        %3499 = vmatprep.subr.mxu0 0.0
        %3500 = vmatpush1.xpose.msra.mxu0 0.0
        %3501 = vmatprep.subr.mxu0 0.0
        %3502 = vmatpush1.xpose.msra.mxu0 0.0
        %3503 = vmatprep.subr.mxu0 0.0
        %3504 = vmatpush1.xpose.msra.mxu0 0.0
        %3505 = vmatprep.subr.mxu0 0.0
        %3506 = vmatpush1.xpose.msra.mxu0 0.0
        %3507 = vmatprep.subr.mxu0 0.0
        %3508 = vmatpush1.xpose.msra.mxu0 0.0
        %3509 = vmatprep.subr.mxu0 0.0
        %3510 = vmatpush1.xpose.msra.mxu0 0.0
        %3511 = vmatprep.subr.mxu0 0.0
        %3512 = vmatpush1.xpose.msra.mxu0 0.0
        %3513 = vmatprep.subr.mxu0 0.0
        %3514 = vmatpush1.xpose.msra.mxu0 0.0
        %3515 = vmatprep.subr.mxu0 0.0
        %3516 = vmatpush1.xpose.msra.mxu0 0.0
        %3517 = vmatprep.subr.mxu0 0.0
        %3518 = vmatpush1.xpose.msra.mxu0 0.0
        %3519 = vmatprep.subr.mxu0 0.0
        %3520 = vmatpush1.xpose.msra.mxu0 0.0
        %3521 = vmatprep.subr.mxu0 0.0
        %3522 = vmatpush1.xpose.msra.mxu0 0.0
        %3523 = vmatprep.subr.mxu0 0.0
        %3524 = vmatpush1.xpose.msra.mxu0 0.0
        %3525 = vmatprep.subr.mxu0 0.0
        %3526 = vmatpush1.xpose.msra.mxu0 0.0
        %3527 = vmatprep.subr.mxu0 0.0
        %3528 = vmatpush1.xpose.msra.mxu0 0.0
        %3529 = vmatprep.subr.mxu0 0.0
        %3530 = vmatpush1.xpose.msra.mxu0 0.0
        %3531 = vmatprep.subr.mxu0 0.0
        %3532 = vmatpush1.xpose.msra.mxu0 0.0
        %3533 = vmatprep.subr.mxu0 0.0
        %3534 = vmatpush1.xpose.msra.mxu0 0.0
        %3535 = vmatprep.subr.mxu0 0.0
        %3536 = vmatpush1.xpose.msra.mxu0 0.0
        %3537 = vmatprep.subr.mxu0 0.0
        %3538 = vmatpush1.xpose.msra.mxu0 0.0
        %3539 = vmatprep.subr.mxu0 0.0
        %3540 = vmatpush1.xpose.msra.mxu0 0.0
        %3541 = vmatprep.subr.mxu0 0.0
        %3542 = vmatpush1.xpose.msra.mxu0 0.0
        %3543 = vmatprep.subr.mxu0 0.0
        %3544 = vmatpush1.xpose.msra.mxu0 0.0
        %3545 = vmatprep.subr.mxu0 0.0
        %3546 = vmatpush1.xpose.msra.mxu0 0.0
        %3547 = vmatprep.subr.mxu0 0.0
        %3548 = vmatpush1.xpose.msra.mxu0 0.0
        %3549 = vmatprep.subr.mxu0 0.0
        %3550 = vmatpush1.xpose.msra.mxu0 0.0
        %3551 = vmatprep.mubr.f32.mxu0 0.0
        %3552 = vmatmul.mubr.f32.gmra.mrb[0].mxu0 %v3481
        %v3553 = vpop.f32.mrb[0].mxu0
        %v3554 = vadd.f32 0.0, %v3553
        %v3555 = vpop.f32.mrb[0].mxu0
        %3556 = vdwg.mxu0
        %v3557 = vmul.f32 %v3472, 0.35355338
        %v3558 = vmul.f32 %v3554, 0.35355338
        %v3559 = vsel %vm3209, %v3557, -1e+09
        %v3560 = vsel %vm3210, %v3558, -1e+09
        %v3561 = vsel %vm2691, %v3559, -inf
        %3562 = vmax.xlane.f32.xlu0 %v3561
        %v3563 = vpop.xlane.xlu0 %3562
        %v3564 = vsel %vm2691, %v3560, -inf
        %3565 = vmax.xlane.f32.xlu0 %v3564
        %v3566 = vpop.xlane.xlu0 %3565
        %v3567 = vsub.f32 %v3559, %v3563
        %v3568 = vsub.f32 %v3560, %v3566
        %v3569 = vmul.f32 %v3567, 1.442695
        %v3570 = vpow.pop %v3569
        %v3571 = vmul.f32 %v3568, 1.442695
        %v3572 = vpow.pop %v3571
        %v3573 = vsel %vm2691, %v3570, 0.0
        %3574 = vadd.xlane.f32.xlu0 %v3573
        %v3575 = vpop.xlane.xlu0 %3574
        %v3576 = vsel %vm2691, %v3572, 0.0
        %3577 = vadd.xlane.f32.xlu0 %v3576
        %v3578 = vpop.xlane.xlu0 %3577
        %v3579 = vrcp.pop %v3575
        %v3580 = vrcp.pop %v3578
        %v3581 = vmul.f32 %v3570, %v3579
        %v3582 = vmul.f32 %v3572, %v3580
        %3583 = vrot.lane.b32.xlu0 %v3027, 88
        %v3584 = vpop.permute.xlu0 %3583
        %3585 = vrot.lane.b32.xlu0 %v3032, 88
        %v3586 = vpop.permute.xlu0 %3585
        %v3590 = vsel %vm2691, %v3581, 0
        %3592 = vmatprep.subr.mxu0 0.0
        %3593 = vmatpush1.msra.mxu0 %v3584
        %3594 = vmatprep.subr.mxu0 0.0
        %3595 = vmatpush1.msra.mxu0 %v3586
        %3596 = vmatprep.subr.mxu0 0.0
        %3597 = vmatpush1.msra.mxu0 0.0
        %3598 = vmatprep.subr.mxu0 0.0
        %3599 = vmatpush1.msra.mxu0 0.0
        %3600 = vmatprep.subr.mxu0 0.0
        %3601 = vmatpush1.msra.mxu0 0.0
        %3602 = vmatprep.subr.mxu0 0.0
        %3603 = vmatpush1.msra.mxu0 0.0
        %3604 = vmatprep.subr.mxu0 0.0
        %3605 = vmatpush1.msra.mxu0 0.0
        %3606 = vmatprep.subr.mxu0 0.0
        %3607 = vmatpush1.msra.mxu0 0.0
        %3608 = vmatprep.subr.mxu0 0.0
        %3609 = vmatpush1.msra.mxu0 0.0
        %3610 = vmatprep.subr.mxu0 0.0
        %3611 = vmatpush1.msra.mxu0 0.0
        %3612 = vmatprep.subr.mxu0 0.0
        %3613 = vmatpush1.msra.mxu0 0.0
        %3614 = vmatprep.subr.mxu0 0.0
        %3615 = vmatpush1.msra.mxu0 0.0
        %3616 = vmatprep.subr.mxu0 0.0
        %3617 = vmatpush1.msra.mxu0 0.0
        %3618 = vmatprep.subr.mxu0 0.0
        %3619 = vmatpush1.msra.mxu0 0.0
        %3620 = vmatprep.subr.mxu0 0.0
        %3621 = vmatpush1.msra.mxu0 0.0
        %3622 = vmatprep.subr.mxu0 0.0
        %3623 = vmatpush1.msra.mxu0 0.0
        %3624 = vmatprep.subr.mxu0 0.0
        %3625 = vmatpush1.msra.mxu0 0.0
        %3626 = vmatprep.subr.mxu0 0.0
        %3627 = vmatpush1.msra.mxu0 0.0
        %3628 = vmatprep.subr.mxu0 0.0
        %3629 = vmatpush1.msra.mxu0 0.0
        %3630 = vmatprep.subr.mxu0 0.0
        %3631 = vmatpush1.msra.mxu0 0.0
        %3632 = vmatprep.subr.mxu0 0.0
        %3633 = vmatpush1.msra.mxu0 0.0
        %3634 = vmatprep.subr.mxu0 0.0
        %3635 = vmatpush1.msra.mxu0 0.0
        %3636 = vmatprep.subr.mxu0 0.0
        %3637 = vmatpush1.msra.mxu0 0.0
        %3638 = vmatprep.subr.mxu0 0.0
        %3639 = vmatpush1.msra.mxu0 0.0
        %3640 = vmatprep.subr.mxu0 0.0
        %3641 = vmatpush1.msra.mxu0 0.0
        %3642 = vmatprep.subr.mxu0 0.0
        %3643 = vmatpush1.msra.mxu0 0.0
        %3644 = vmatprep.subr.mxu0 0.0
        %3645 = vmatpush1.msra.mxu0 0.0
        %3646 = vmatprep.subr.mxu0 0.0
        %3647 = vmatpush1.msra.mxu0 0.0
        %3648 = vmatprep.subr.mxu0 0.0
        %3649 = vmatpush1.msra.mxu0 0.0
        %3650 = vmatprep.subr.mxu0 0.0
        %3651 = vmatpush1.msra.mxu0 0.0
        %3652 = vmatprep.subr.mxu0 0.0
        %3653 = vmatpush1.msra.mxu0 0.0
        %3654 = vmatprep.subr.mxu0 0.0
        %3655 = vmatpush1.msra.mxu0 0.0
        %3656 = vmatprep.mubr.f32.mxu0 0.0
        %3657 = vmatmul.mubr.f32.gmra.mrb[0].mxu0 %v3590
        %v3658 = vpop.f32.mrb[0].mxu0
        %v3659 = vadd.f32 0.0, %v3658
        %v3660 = vpop.f32.mrb[0].mxu0
        %3661 = vdwg.mxu0
        %3662 = vrot.lane.b32.xlu0 %v3037, 88
        %v3663 = vpop.permute.xlu0 %3662
        %3664 = vrot.lane.b32.xlu0 %v3042, 88
        %v3665 = vpop.permute.xlu0 %3664
        %v3669 = vsel %vm2691, %v3582, 0
        %3671 = vmatprep.subr.mxu0 0.0
        %3672 = vmatpush1.msra.mxu0 %v3663
        %3673 = vmatprep.subr.mxu0 0.0
        %3674 = vmatpush1.msra.mxu0 %v3665
        %3675 = vmatprep.subr.mxu0 0.0
        %3676 = vmatpush1.msra.mxu0 0.0
        %3677 = vmatprep.subr.mxu0 0.0
        %3678 = vmatpush1.msra.mxu0 0.0
        %3679 = vmatprep.subr.mxu0 0.0
        %3680 = vmatpush1.msra.mxu0 0.0
        %3681 = vmatprep.subr.mxu0 0.0
        %3682 = vmatpush1.msra.mxu0 0.0
        %3683 = vmatprep.subr.mxu0 0.0
        %3684 = vmatpush1.msra.mxu0 0.0
        %3685 = vmatprep.subr.mxu0 0.0
        %3686 = vmatpush1.msra.mxu0 0.0
        %3687 = vmatprep.subr.mxu0 0.0
        %3688 = vmatpush1.msra.mxu0 0.0
        %3689 = vmatprep.subr.mxu0 0.0
        %3690 = vmatpush1.msra.mxu0 0.0
        %3691 = vmatprep.subr.mxu0 0.0
        %3692 = vmatpush1.msra.mxu0 0.0
        %3693 = vmatprep.subr.mxu0 0.0
        %3694 = vmatpush1.msra.mxu0 0.0
        %3695 = vmatprep.subr.mxu0 0.0
        %3696 = vmatpush1.msra.mxu0 0.0
        %3697 = vmatprep.subr.mxu0 0.0
        %3698 = vmatpush1.msra.mxu0 0.0
        %3699 = vmatprep.subr.mxu0 0.0
        %3700 = vmatpush1.msra.mxu0 0.0
        %3701 = vmatprep.subr.mxu0 0.0
        %3702 = vmatpush1.msra.mxu0 0.0
        %3703 = vmatprep.subr.mxu0 0.0
        %3704 = vmatpush1.msra.mxu0 0.0
        %3705 = vmatprep.subr.mxu0 0.0
        %3706 = vmatpush1.msra.mxu0 0.0
        %3707 = vmatprep.subr.mxu0 0.0
        %3708 = vmatpush1.msra.mxu0 0.0
        %3709 = vmatprep.subr.mxu0 0.0
        %3710 = vmatpush1.msra.mxu0 0.0
        %3711 = vmatprep.subr.mxu0 0.0
        %3712 = vmatpush1.msra.mxu0 0.0
        %3713 = vmatprep.subr.mxu0 0.0
        %3714 = vmatpush1.msra.mxu0 0.0
        %3715 = vmatprep.subr.mxu0 0.0
        %3716 = vmatpush1.msra.mxu0 0.0
        %3717 = vmatprep.subr.mxu0 0.0
        %3718 = vmatpush1.msra.mxu0 0.0
        %3719 = vmatprep.subr.mxu0 0.0
        %3720 = vmatpush1.msra.mxu0 0.0
        %3721 = vmatprep.subr.mxu0 0.0
        %3722 = vmatpush1.msra.mxu0 0.0
        %3723 = vmatprep.subr.mxu0 0.0
        %3724 = vmatpush1.msra.mxu0 0.0
        %3725 = vmatprep.subr.mxu0 0.0
        %3726 = vmatpush1.msra.mxu0 0.0
        %3727 = vmatprep.subr.mxu0 0.0
        %3728 = vmatpush1.msra.mxu0 0.0
        %3729 = vmatprep.subr.mxu0 0.0
        %3730 = vmatpush1.msra.mxu0 0.0
        %3731 = vmatprep.subr.mxu0 0.0
        %3732 = vmatpush1.msra.mxu0 0.0
        %3733 = vmatprep.subr.mxu0 0.0
        %3734 = vmatpush1.msra.mxu0 0.0
        %3735 = vmatprep.mubr.f32.mxu0 0.0
        %3736 = vmatmul.mubr.f32.gmra.mrb[0].mxu0 %v3669
        %v3737 = vpop.f32.mrb[0].mxu0
        %v3738 = vadd.f32 0.0, %v3737
        %v3739 = vpop.f32.mrb[0].mxu0
        %3740 = vdwg.mxu0
        %3741 = vrot.lane.b32.xlu0 %v2929, 112
        %v3742 = vpop.permute.xlu0 %3741
        %3743 = vrot.lane.b32.xlu0 %v3027, 112
        %v3744 = vpop.permute.xlu0 %3743
        %3745 = vrot.lane.b32.xlu0 %v3032, 112
        %v3746 = vpop.permute.xlu0 %3745
        %v3747 = vsel %vm1327, %v3742, 0
        %v3749 = vsel %vm1327, %v3744, 0
        %v3751 = vsel %vm1327, %v3746, 0
        %3753 = vmatprep.subr.mxu0 0.0
        %3754 = vmatpush1.xpose.msra.mxu0 %v3749
        %3755 = vmatprep.subr.mxu0 0.0
        %3756 = vmatpush1.xpose.msra.mxu0 %v3751
        %3757 = vmatprep.subr.mxu0 0.0
        %3758 = vmatpush1.xpose.msra.mxu0 0.0
        %3759 = vmatprep.subr.mxu0 0.0
        %3760 = vmatpush1.xpose.msra.mxu0 0.0
        %3761 = vmatprep.subr.mxu0 0.0
        %3762 = vmatpush1.xpose.msra.mxu0 0.0
        %3763 = vmatprep.subr.mxu0 0.0
        %3764 = vmatpush1.xpose.msra.mxu0 0.0
        %3765 = vmatprep.subr.mxu0 0.0
        %3766 = vmatpush1.xpose.msra.mxu0 0.0
        %3767 = vmatprep.subr.mxu0 0.0
        %3768 = vmatpush1.xpose.msra.mxu0 0.0
        %3769 = vmatprep.subr.mxu0 0.0
        %3770 = vmatpush1.xpose.msra.mxu0 0.0
        %3771 = vmatprep.subr.mxu0 0.0
        %3772 = vmatpush1.xpose.msra.mxu0 0.0
        %3773 = vmatprep.subr.mxu0 0.0
        %3774 = vmatpush1.xpose.msra.mxu0 0.0
        %3775 = vmatprep.subr.mxu0 0.0
        %3776 = vmatpush1.xpose.msra.mxu0 0.0
        %3777 = vmatprep.subr.mxu0 0.0
        %3778 = vmatpush1.xpose.msra.mxu0 0.0
        %3779 = vmatprep.subr.mxu0 0.0
        %3780 = vmatpush1.xpose.msra.mxu0 0.0
        %3781 = vmatprep.subr.mxu0 0.0
        %3782 = vmatpush1.xpose.msra.mxu0 0.0
        %3783 = vmatprep.subr.mxu0 0.0
        %3784 = vmatpush1.xpose.msra.mxu0 0.0
        %3785 = vmatprep.subr.mxu0 0.0
        %3786 = vmatpush1.xpose.msra.mxu0 0.0
        %3787 = vmatprep.subr.mxu0 0.0
        %3788 = vmatpush1.xpose.msra.mxu0 0.0
        %3789 = vmatprep.subr.mxu0 0.0
        %3790 = vmatpush1.xpose.msra.mxu0 0.0
        %3791 = vmatprep.subr.mxu0 0.0
        %3792 = vmatpush1.xpose.msra.mxu0 0.0
        %3793 = vmatprep.subr.mxu0 0.0
        %3794 = vmatpush1.xpose.msra.mxu0 0.0
        %3795 = vmatprep.subr.mxu0 0.0
        %3796 = vmatpush1.xpose.msra.mxu0 0.0
        %3797 = vmatprep.subr.mxu0 0.0
        %3798 = vmatpush1.xpose.msra.mxu0 0.0
        %3799 = vmatprep.subr.mxu0 0.0
        %3800 = vmatpush1.xpose.msra.mxu0 0.0
        %3801 = vmatprep.subr.mxu0 0.0
        %3802 = vmatpush1.xpose.msra.mxu0 0.0
        %3803 = vmatprep.subr.mxu0 0.0
        %3804 = vmatpush1.xpose.msra.mxu0 0.0
        %3805 = vmatprep.subr.mxu0 0.0
        %3806 = vmatpush1.xpose.msra.mxu0 0.0
        %3807 = vmatprep.subr.mxu0 0.0
        %3808 = vmatpush1.xpose.msra.mxu0 0.0
        %3809 = vmatprep.subr.mxu0 0.0
        %3810 = vmatpush1.xpose.msra.mxu0 0.0
        %3811 = vmatprep.subr.mxu0 0.0
        %3812 = vmatpush1.xpose.msra.mxu0 0.0
        %3813 = vmatprep.subr.mxu0 0.0
        %3814 = vmatpush1.xpose.msra.mxu0 0.0
        %3815 = vmatprep.subr.mxu0 0.0
        %3816 = vmatpush1.xpose.msra.mxu0 0.0
        %3817 = vmatprep.mubr.f32.mxu0 0.0
        %3818 = vmatmul.mubr.f32.gmra.mrb[0].mxu0 %v3747
        %v3819 = vpop.f32.mrb[0].mxu0
        %v3820 = vadd.f32 0.0, %v3819
        %v3821 = vpop.f32.mrb[0].mxu0
        %3822 = vdwg.mxu0
        %3823 = vrot.lane.b32.xlu0 %v2934, 112
        %v3824 = vpop.permute.xlu0 %3823
        %3825 = vrot.lane.b32.xlu0 %v3037, 112
        %v3826 = vpop.permute.xlu0 %3825
        %3827 = vrot.lane.b32.xlu0 %v3042, 112
        %v3828 = vpop.permute.xlu0 %3827
        %v3829 = vsel %vm1327, %v3824, 0
        %v3831 = vsel %vm1327, %v3826, 0
        %v3833 = vsel %vm1327, %v3828, 0
        %3835 = vmatprep.subr.mxu0 0.0
        %3836 = vmatpush1.xpose.msra.mxu0 %v3831
        %3837 = vmatprep.subr.mxu0 0.0
        %3838 = vmatpush1.xpose.msra.mxu0 %v3833
        %3839 = vmatprep.subr.mxu0 0.0
        %3840 = vmatpush1.xpose.msra.mxu0 0.0
        %3841 = vmatprep.subr.mxu0 0.0
        %3842 = vmatpush1.xpose.msra.mxu0 0.0
        %3843 = vmatprep.subr.mxu0 0.0
        %3844 = vmatpush1.xpose.msra.mxu0 0.0
        %3845 = vmatprep.subr.mxu0 0.0
        %3846 = vmatpush1.xpose.msra.mxu0 0.0
        %3847 = vmatprep.subr.mxu0 0.0
        %3848 = vmatpush1.xpose.msra.mxu0 0.0
        %3849 = vmatprep.subr.mxu0 0.0
        %3850 = vmatpush1.xpose.msra.mxu0 0.0
        %3851 = vmatprep.subr.mxu0 0.0
        %3852 = vmatpush1.xpose.msra.mxu0 0.0
        %3853 = vmatprep.subr.mxu0 0.0
        %3854 = vmatpush1.xpose.msra.mxu0 0.0
        %3855 = vmatprep.subr.mxu0 0.0
        %3856 = vmatpush1.xpose.msra.mxu0 0.0
        %3857 = vmatprep.subr.mxu0 0.0
        %3858 = vmatpush1.xpose.msra.mxu0 0.0
        %3859 = vmatprep.subr.mxu0 0.0
        %3860 = vmatpush1.xpose.msra.mxu0 0.0
        %3861 = vmatprep.subr.mxu0 0.0
        %3862 = vmatpush1.xpose.msra.mxu0 0.0
        %3863 = vmatprep.subr.mxu0 0.0
        %3864 = vmatpush1.xpose.msra.mxu0 0.0
        %3865 = vmatprep.subr.mxu0 0.0
        %3866 = vmatpush1.xpose.msra.mxu0 0.0
        %3867 = vmatprep.subr.mxu0 0.0
        %3868 = vmatpush1.xpose.msra.mxu0 0.0
        %3869 = vmatprep.subr.mxu0 0.0
        %3870 = vmatpush1.xpose.msra.mxu0 0.0
        %3871 = vmatprep.subr.mxu0 0.0
        %3872 = vmatpush1.xpose.msra.mxu0 0.0
        %3873 = vmatprep.subr.mxu0 0.0
        %3874 = vmatpush1.xpose.msra.mxu0 0.0
        %3875 = vmatprep.subr.mxu0 0.0
        %3876 = vmatpush1.xpose.msra.mxu0 0.0
        %3877 = vmatprep.subr.mxu0 0.0
        %3878 = vmatpush1.xpose.msra.mxu0 0.0
        %3879 = vmatprep.subr.mxu0 0.0
        %3880 = vmatpush1.xpose.msra.mxu0 0.0
        %3881 = vmatprep.subr.mxu0 0.0
        %3882 = vmatpush1.xpose.msra.mxu0 0.0
        %3883 = vmatprep.subr.mxu0 0.0
        %3884 = vmatpush1.xpose.msra.mxu0 0.0
        %3885 = vmatprep.subr.mxu0 0.0
        %3886 = vmatpush1.xpose.msra.mxu0 0.0
        %3887 = vmatprep.subr.mxu0 0.0
        %3888 = vmatpush1.xpose.msra.mxu0 0.0
        %3889 = vmatprep.subr.mxu0 0.0
        %3890 = vmatpush1.xpose.msra.mxu0 0.0
        %3891 = vmatprep.subr.mxu0 0.0
        %3892 = vmatpush1.xpose.msra.mxu0 0.0
        %3893 = vmatprep.subr.mxu0 0.0
        %3894 = vmatpush1.xpose.msra.mxu0 0.0
        %3895 = vmatprep.subr.mxu0 0.0
        %3896 = vmatpush1.xpose.msra.mxu0 0.0
        %3897 = vmatprep.subr.mxu0 0.0
        %3898 = vmatpush1.xpose.msra.mxu0 0.0
        %3899 = vmatprep.mubr.f32.mxu0 0.0
        %3900 = vmatmul.mubr.f32.gmra.mrb[0].mxu0 %v3829
        %v3901 = vpop.f32.mrb[0].mxu0
        %v3902 = vadd.f32 0.0, %v3901
        %v3903 = vpop.f32.mrb[0].mxu0
        %3904 = vdwg.mxu0
        %v3905 = vmul.f32 %v3820, 0.35355338
        %v3906 = vmul.f32 %v3902, 0.35355338
        %v3907 = vsel %vm3209, %v3905, -1e+09
        %v3908 = vsel %vm3210, %v3906, -1e+09
        %v3909 = vsel %vm2691, %v3907, -inf
        %3910 = vmax.xlane.f32.xlu0 %v3909
        %v3911 = vpop.xlane.xlu0 %3910
        %v3912 = vsel %vm2691, %v3908, -inf
        %3913 = vmax.xlane.f32.xlu0 %v3912
        %v3914 = vpop.xlane.xlu0 %3913
        %v3915 = vsub.f32 %v3907, %v3911
        %v3916 = vsub.f32 %v3908, %v3914
        %v3917 = vmul.f32 %v3915, 1.442695
        %v3918 = vpow.pop %v3917
        %v3919 = vmul.f32 %v3916, 1.442695
        %v3920 = vpow.pop %v3919
        %v3921 = vsel %vm2691, %v3918, 0.0
        %3922 = vadd.xlane.f32.xlu0 %v3921
        %v3923 = vpop.xlane.xlu0 %3922
        %v3924 = vsel %vm2691, %v3920, 0.0
        %3925 = vadd.xlane.f32.xlu0 %v3924
        %v3926 = vpop.xlane.xlu0 %3925
        %v3927 = vrcp.pop %v3923
        %v3928 = vrcp.pop %v3926
        %v3929 = vmul.f32 %v3918, %v3927
        %v3930 = vmul.f32 %v3920, %v3928
        %3931 = vrot.lane.b32.xlu0 %v3027, 80
        %v3932 = vpop.permute.xlu0 %3931
        %3933 = vrot.lane.b32.xlu0 %v3032, 80
        %v3934 = vpop.permute.xlu0 %3933
        %v3938 = vsel %vm2691, %v3929, 0
        %3940 = vmatprep.subr.mxu0 0.0
        %3941 = vmatpush1.msra.mxu0 %v3932
        %3942 = vmatprep.subr.mxu0 0.0
        %3943 = vmatpush1.msra.mxu0 %v3934
        %3944 = vmatprep.subr.mxu0 0.0
        %3945 = vmatpush1.msra.mxu0 0.0
        %3946 = vmatprep.subr.mxu0 0.0
        %3947 = vmatpush1.msra.mxu0 0.0
        %3948 = vmatprep.subr.mxu0 0.0
        %3949 = vmatpush1.msra.mxu0 0.0
        %3950 = vmatprep.subr.mxu0 0.0
        %3951 = vmatpush1.msra.mxu0 0.0
        %3952 = vmatprep.subr.mxu0 0.0
        %3953 = vmatpush1.msra.mxu0 0.0
        %3954 = vmatprep.subr.mxu0 0.0
        %3955 = vmatpush1.msra.mxu0 0.0
        %3956 = vmatprep.subr.mxu0 0.0
        %3957 = vmatpush1.msra.mxu0 0.0
        %3958 = vmatprep.subr.mxu0 0.0
        %3959 = vmatpush1.msra.mxu0 0.0
        %3960 = vmatprep.subr.mxu0 0.0
        %3961 = vmatpush1.msra.mxu0 0.0
        %3962 = vmatprep.subr.mxu0 0.0
        %3963 = vmatpush1.msra.mxu0 0.0
        %3964 = vmatprep.subr.mxu0 0.0
        %3965 = vmatpush1.msra.mxu0 0.0
        %3966 = vmatprep.subr.mxu0 0.0
        %3967 = vmatpush1.msra.mxu0 0.0
        %3968 = vmatprep.subr.mxu0 0.0
        %3969 = vmatpush1.msra.mxu0 0.0
        %3970 = vmatprep.subr.mxu0 0.0
        %3971 = vmatpush1.msra.mxu0 0.0
        %3972 = vmatprep.subr.mxu0 0.0
        %3973 = vmatpush1.msra.mxu0 0.0
        %3974 = vmatprep.subr.mxu0 0.0
        %3975 = vmatpush1.msra.mxu0 0.0
        %3976 = vmatprep.subr.mxu0 0.0
        %3977 = vmatpush1.msra.mxu0 0.0
        %3978 = vmatprep.subr.mxu0 0.0
        %3979 = vmatpush1.msra.mxu0 0.0
        %3980 = vmatprep.subr.mxu0 0.0
        %3981 = vmatpush1.msra.mxu0 0.0
        %3982 = vmatprep.subr.mxu0 0.0
        %3983 = vmatpush1.msra.mxu0 0.0
        %3984 = vmatprep.subr.mxu0 0.0
        %3985 = vmatpush1.msra.mxu0 0.0
        %3986 = vmatprep.subr.mxu0 0.0
        %3987 = vmatpush1.msra.mxu0 0.0
        %3988 = vmatprep.subr.mxu0 0.0
        %3989 = vmatpush1.msra.mxu0 0.0
        %3990 = vmatprep.subr.mxu0 0.0
        %3991 = vmatpush1.msra.mxu0 0.0
        %3992 = vmatprep.subr.mxu0 0.0
        %3993 = vmatpush1.msra.mxu0 0.0
        %3994 = vmatprep.subr.mxu0 0.0
        %3995 = vmatpush1.msra.mxu0 0.0
        %3996 = vmatprep.subr.mxu0 0.0
        %3997 = vmatpush1.msra.mxu0 0.0
        %3998 = vmatprep.subr.mxu0 0.0
        %3999 = vmatpush1.msra.mxu0 0.0
        %4000 = vmatprep.subr.mxu0 0.0
        %4001 = vmatpush1.msra.mxu0 0.0
        %4002 = vmatprep.subr.mxu0 0.0
        %4003 = vmatpush1.msra.mxu0 0.0
        %4004 = vmatprep.mubr.f32.mxu0 0.0
        %4005 = vmatmul.mubr.f32.gmra.mrb[0].mxu0 %v3938
        %v4006 = vpop.f32.mrb[0].mxu0
        %v4007 = vadd.f32 0.0, %v4006
        %v4008 = vpop.f32.mrb[0].mxu0
        %4009 = vdwg.mxu0
        %4010 = vrot.lane.b32.xlu0 %v3037, 80
        %v4011 = vpop.permute.xlu0 %4010
        %4012 = vrot.lane.b32.xlu0 %v3042, 80
        %v4013 = vpop.permute.xlu0 %4012
        %v4017 = vsel %vm2691, %v3930, 0
        %4019 = vmatprep.subr.mxu0 0.0
        %4020 = vmatpush1.msra.mxu0 %v4011
        %4021 = vmatprep.subr.mxu0 0.0
        %4022 = vmatpush1.msra.mxu0 %v4013
        %4023 = vmatprep.subr.mxu0 0.0
        %4024 = vmatpush1.msra.mxu0 0.0
        %4025 = vmatprep.subr.mxu0 0.0
        %4026 = vmatpush1.msra.mxu0 0.0
        %4027 = vmatprep.subr.mxu0 0.0
        %4028 = vmatpush1.msra.mxu0 0.0
        %4029 = vmatprep.subr.mxu0 0.0
        %4030 = vmatpush1.msra.mxu0 0.0
        %4031 = vmatprep.subr.mxu0 0.0
        %4032 = vmatpush1.msra.mxu0 0.0
        %4033 = vmatprep.subr.mxu0 0.0
        %4034 = vmatpush1.msra.mxu0 0.0
        %4035 = vmatprep.subr.mxu0 0.0
        %4036 = vmatpush1.msra.mxu0 0.0
        %4037 = vmatprep.subr.mxu0 0.0
        %4038 = vmatpush1.msra.mxu0 0.0
        %4039 = vmatprep.subr.mxu0 0.0
        %4040 = vmatpush1.msra.mxu0 0.0
        %4041 = vmatprep.subr.mxu0 0.0
        %4042 = vmatpush1.msra.mxu0 0.0
        %4043 = vmatprep.subr.mxu0 0.0
        %4044 = vmatpush1.msra.mxu0 0.0
        %4045 = vmatprep.subr.mxu0 0.0
        %4046 = vmatpush1.msra.mxu0 0.0
        %4047 = vmatprep.subr.mxu0 0.0
        %4048 = vmatpush1.msra.mxu0 0.0
        %4049 = vmatprep.subr.mxu0 0.0
        %4050 = vmatpush1.msra.mxu0 0.0
        %4051 = vmatprep.subr.mxu0 0.0
        %4052 = vmatpush1.msra.mxu0 0.0
        %4053 = vmatprep.subr.mxu0 0.0
        %4054 = vmatpush1.msra.mxu0 0.0
        %4055 = vmatprep.subr.mxu0 0.0
        %4056 = vmatpush1.msra.mxu0 0.0
        %4057 = vmatprep.subr.mxu0 0.0
        %4058 = vmatpush1.msra.mxu0 0.0
        %4059 = vmatprep.subr.mxu0 0.0
        %4060 = vmatpush1.msra.mxu0 0.0
        %4061 = vmatprep.subr.mxu0 0.0
        %4062 = vmatpush1.msra.mxu0 0.0
        %4063 = vmatprep.subr.mxu0 0.0
        %4064 = vmatpush1.msra.mxu0 0.0
        %4065 = vmatprep.subr.mxu0 0.0
        %4066 = vmatpush1.msra.mxu0 0.0
        %4067 = vmatprep.subr.mxu0 0.0
        %4068 = vmatpush1.msra.mxu0 0.0
        %4069 = vmatprep.subr.mxu0 0.0
        %4070 = vmatpush1.msra.mxu0 0.0
        %4071 = vmatprep.subr.mxu0 0.0
        %4072 = vmatpush1.msra.mxu0 0.0
        %4073 = vmatprep.subr.mxu0 0.0
        %4074 = vmatpush1.msra.mxu0 0.0
        %4075 = vmatprep.subr.mxu0 0.0
        %4076 = vmatpush1.msra.mxu0 0.0
        %4077 = vmatprep.subr.mxu0 0.0
        %4078 = vmatpush1.msra.mxu0 0.0
        %4079 = vmatprep.subr.mxu0 0.0
        %4080 = vmatpush1.msra.mxu0 0.0
        %4081 = vmatprep.subr.mxu0 0.0
        %4082 = vmatpush1.msra.mxu0 0.0
        %4083 = vmatprep.mubr.f32.mxu0 0.0
        %4084 = vmatmul.mubr.f32.gmra.mrb[0].mxu0 %v4017
        %v4085 = vpop.f32.mrb[0].mxu0
        %v4086 = vadd.f32 0.0, %v4085
        %v4087 = vpop.f32.mrb[0].mxu0
        %4088 = vdwg.mxu0
        %4089 = vrot.lane.b32.xlu0 %v2929, 104
        %v4090 = vpop.permute.xlu0 %4089
        %4091 = vrot.lane.b32.xlu0 %v3027, 104
        %v4092 = vpop.permute.xlu0 %4091
        %4093 = vrot.lane.b32.xlu0 %v3032, 104
        %v4094 = vpop.permute.xlu0 %4093
        %v4095 = vsel %vm1327, %v4090, 0
        %v4097 = vsel %vm1327, %v4092, 0
        %v4099 = vsel %vm1327, %v4094, 0
        %4101 = vmatprep.subr.mxu0 0.0
        %4102 = vmatpush1.xpose.msra.mxu0 %v4097
        %4103 = vmatprep.subr.mxu0 0.0
        %4104 = vmatpush1.xpose.msra.mxu0 %v4099
        %4105 = vmatprep.subr.mxu0 0.0
        %4106 = vmatpush1.xpose.msra.mxu0 0.0
        %4107 = vmatprep.subr.mxu0 0.0
        %4108 = vmatpush1.xpose.msra.mxu0 0.0
        %4109 = vmatprep.subr.mxu0 0.0
        %4110 = vmatpush1.xpose.msra.mxu0 0.0
        %4111 = vmatprep.subr.mxu0 0.0
        %4112 = vmatpush1.xpose.msra.mxu0 0.0
        %4113 = vmatprep.subr.mxu0 0.0
        %4114 = vmatpush1.xpose.msra.mxu0 0.0
        %4115 = vmatprep.subr.mxu0 0.0
        %4116 = vmatpush1.xpose.msra.mxu0 0.0
        %4117 = vmatprep.subr.mxu0 0.0
        %4118 = vmatpush1.xpose.msra.mxu0 0.0
        %4119 = vmatprep.subr.mxu0 0.0
        %4120 = vmatpush1.xpose.msra.mxu0 0.0
        %4121 = vmatprep.subr.mxu0 0.0
        %4122 = vmatpush1.xpose.msra.mxu0 0.0
        %4123 = vmatprep.subr.mxu0 0.0
        %4124 = vmatpush1.xpose.msra.mxu0 0.0
        %4125 = vmatprep.subr.mxu0 0.0
        %4126 = vmatpush1.xpose.msra.mxu0 0.0
        %4127 = vmatprep.subr.mxu0 0.0
        %4128 = vmatpush1.xpose.msra.mxu0 0.0
        %4129 = vmatprep.subr.mxu0 0.0
        %4130 = vmatpush1.xpose.msra.mxu0 0.0
        %4131 = vmatprep.subr.mxu0 0.0
        %4132 = vmatpush1.xpose.msra.mxu0 0.0
        %4133 = vmatprep.subr.mxu0 0.0
        %4134 = vmatpush1.xpose.msra.mxu0 0.0
        %4135 = vmatprep.subr.mxu0 0.0
        %4136 = vmatpush1.xpose.msra.mxu0 0.0
        %4137 = vmatprep.subr.mxu0 0.0
        %4138 = vmatpush1.xpose.msra.mxu0 0.0
        %4139 = vmatprep.subr.mxu0 0.0
        %4140 = vmatpush1.xpose.msra.mxu0 0.0
        %4141 = vmatprep.subr.mxu0 0.0
        %4142 = vmatpush1.xpose.msra.mxu0 0.0
        %4143 = vmatprep.subr.mxu0 0.0
        %4144 = vmatpush1.xpose.msra.mxu0 0.0
        %4145 = vmatprep.subr.mxu0 0.0
        %4146 = vmatpush1.xpose.msra.mxu0 0.0
        %4147 = vmatprep.subr.mxu0 0.0
        %4148 = vmatpush1.xpose.msra.mxu0 0.0
        %4149 = vmatprep.subr.mxu0 0.0
        %4150 = vmatpush1.xpose.msra.mxu0 0.0
        %4151 = vmatprep.subr.mxu0 0.0
        %4152 = vmatpush1.xpose.msra.mxu0 0.0
        %4153 = vmatprep.subr.mxu0 0.0
        %4154 = vmatpush1.xpose.msra.mxu0 0.0
        %4155 = vmatprep.subr.mxu0 0.0
        %4156 = vmatpush1.xpose.msra.mxu0 0.0
        %4157 = vmatprep.subr.mxu0 0.0
        %4158 = vmatpush1.xpose.msra.mxu0 0.0
        %4159 = vmatprep.subr.mxu0 0.0
        %4160 = vmatpush1.xpose.msra.mxu0 0.0
        %4161 = vmatprep.subr.mxu0 0.0
        %4162 = vmatpush1.xpose.msra.mxu0 0.0
        %4163 = vmatprep.subr.mxu0 0.0
        %4164 = vmatpush1.xpose.msra.mxu0 0.0
        %4165 = vmatprep.mubr.f32.mxu0 0.0
        %4166 = vmatmul.mubr.f32.gmra.mrb[0].mxu0 %v4095
        %v4167 = vpop.f32.mrb[0].mxu0
        %v4168 = vadd.f32 0.0, %v4167
        %v4169 = vpop.f32.mrb[0].mxu0
        %4170 = vdwg.mxu0
        %4171 = vrot.lane.b32.xlu0 %v2934, 104
        %v4172 = vpop.permute.xlu0 %4171
        %4173 = vrot.lane.b32.xlu0 %v3037, 104
        %v4174 = vpop.permute.xlu0 %4173
        %4175 = vrot.lane.b32.xlu0 %v3042, 104
        %v4176 = vpop.permute.xlu0 %4175
        %v4177 = vsel %vm1327, %v4172, 0
        %v4179 = vsel %vm1327, %v4174, 0
        %v4181 = vsel %vm1327, %v4176, 0
        %4183 = vmatprep.subr.mxu0 0.0
        %4184 = vmatpush1.xpose.msra.mxu0 %v4179
        %4185 = vmatprep.subr.mxu0 0.0
        %4186 = vmatpush1.xpose.msra.mxu0 %v4181
        %4187 = vmatprep.subr.mxu0 0.0
        %4188 = vmatpush1.xpose.msra.mxu0 0.0
        %4189 = vmatprep.subr.mxu0 0.0
        %4190 = vmatpush1.xpose.msra.mxu0 0.0
        %4191 = vmatprep.subr.mxu0 0.0
        %4192 = vmatpush1.xpose.msra.mxu0 0.0
        %4193 = vmatprep.subr.mxu0 0.0
        %4194 = vmatpush1.xpose.msra.mxu0 0.0
        %4195 = vmatprep.subr.mxu0 0.0
        %4196 = vmatpush1.xpose.msra.mxu0 0.0
        %4197 = vmatprep.subr.mxu0 0.0
        %4198 = vmatpush1.xpose.msra.mxu0 0.0
        %4199 = vmatprep.subr.mxu0 0.0
        %4200 = vmatpush1.xpose.msra.mxu0 0.0
        %4201 = vmatprep.subr.mxu0 0.0
        %4202 = vmatpush1.xpose.msra.mxu0 0.0
        %4203 = vmatprep.subr.mxu0 0.0
        %4204 = vmatpush1.xpose.msra.mxu0 0.0
        %4205 = vmatprep.subr.mxu0 0.0
        %4206 = vmatpush1.xpose.msra.mxu0 0.0
        %4207 = vmatprep.subr.mxu0 0.0
        %4208 = vmatpush1.xpose.msra.mxu0 0.0
        %4209 = vmatprep.subr.mxu0 0.0
        %4210 = vmatpush1.xpose.msra.mxu0 0.0
        %4211 = vmatprep.subr.mxu0 0.0
        %4212 = vmatpush1.xpose.msra.mxu0 0.0
        %4213 = vmatprep.subr.mxu0 0.0
        %4214 = vmatpush1.xpose.msra.mxu0 0.0
        %4215 = vmatprep.subr.mxu0 0.0
        %4216 = vmatpush1.xpose.msra.mxu0 0.0
        %4217 = vmatprep.subr.mxu0 0.0
        %4218 = vmatpush1.xpose.msra.mxu0 0.0
        %4219 = vmatprep.subr.mxu0 0.0
        %4220 = vmatpush1.xpose.msra.mxu0 0.0
        %4221 = vmatprep.subr.mxu0 0.0
        %4222 = vmatpush1.xpose.msra.mxu0 0.0
        %4223 = vmatprep.subr.mxu0 0.0
        %4224 = vmatpush1.xpose.msra.mxu0 0.0
        %4225 = vmatprep.subr.mxu0 0.0
        %4226 = vmatpush1.xpose.msra.mxu0 0.0
        %4227 = vmatprep.subr.mxu0 0.0
        %4228 = vmatpush1.xpose.msra.mxu0 0.0
        %4229 = vmatprep.subr.mxu0 0.0
        %4230 = vmatpush1.xpose.msra.mxu0 0.0
        %4231 = vmatprep.subr.mxu0 0.0
        %4232 = vmatpush1.xpose.msra.mxu0 0.0
        %4233 = vmatprep.subr.mxu0 0.0
        %4234 = vmatpush1.xpose.msra.mxu0 0.0
        %4235 = vmatprep.subr.mxu0 0.0
        %4236 = vmatpush1.xpose.msra.mxu0 0.0
        %4237 = vmatprep.subr.mxu0 0.0
        %4238 = vmatpush1.xpose.msra.mxu0 0.0
        %4239 = vmatprep.subr.mxu0 0.0
        %4240 = vmatpush1.xpose.msra.mxu0 0.0
        %4241 = vmatprep.subr.mxu0 0.0
        %4242 = vmatpush1.xpose.msra.mxu0 0.0
        %4243 = vmatprep.subr.mxu0 0.0
        %4244 = vmatpush1.xpose.msra.mxu0 0.0
        %4245 = vmatprep.subr.mxu0 0.0
        %4246 = vmatpush1.xpose.msra.mxu0 0.0
        %4247 = vmatprep.mubr.f32.mxu0 0.0
        %4248 = vmatmul.mubr.f32.gmra.mrb[0].mxu0 %v4177
        %v4249 = vpop.f32.mrb[0].mxu0
        %v4250 = vadd.f32 0.0, %v4249
        %v4251 = vpop.f32.mrb[0].mxu0
        %4252 = vdwg.mxu0
        %v4253 = vmul.f32 %v4168, 0.35355338
        %v4254 = vmul.f32 %v4250, 0.35355338
        %v4255 = vsel %vm3209, %v4253, -1e+09
        %v4256 = vsel %vm3210, %v4254, -1e+09
        %v4257 = vsel %vm2691, %v4255, -inf
        %4258 = vmax.xlane.f32.xlu0 %v4257
        %v4259 = vpop.xlane.xlu0 %4258
        %v4260 = vsel %vm2691, %v4256, -inf
        %4261 = vmax.xlane.f32.xlu0 %v4260
        %v4262 = vpop.xlane.xlu0 %4261
        %v4263 = vsub.f32 %v4255, %v4259
        %v4264 = vsub.f32 %v4256, %v4262
        %v4265 = vmul.f32 %v4263, 1.442695
        %v4266 = vpow.pop %v4265
        %v4267 = vmul.f32 %v4264, 1.442695
        %v4268 = vpow.pop %v4267
        %v4269 = vsel %vm2691, %v4266, 0.0
        %4270 = vadd.xlane.f32.xlu0 %v4269
        %v4271 = vpop.xlane.xlu0 %4270
        %v4272 = vsel %vm2691, %v4268, 0.0
        %4273 = vadd.xlane.f32.xlu0 %v4272
        %v4274 = vpop.xlane.xlu0 %4273
        %v4275 = vrcp.pop %v4271
        %v4276 = vrcp.pop %v4274
        %v4277 = vmul.f32 %v4266, %v4275
        %v4278 = vmul.f32 %v4268, %v4276
        %4279 = vrot.lane.b32.xlu0 %v3027, 72
        %v4280 = vpop.permute.xlu0 %4279
        %4281 = vrot.lane.b32.xlu0 %v3032, 72
        %v4282 = vpop.permute.xlu0 %4281
        %v4286 = vsel %vm2691, %v4277, 0
        %4288 = vmatprep.subr.mxu0 0.0
        %4289 = vmatpush1.msra.mxu0 %v4280
        %4290 = vmatprep.subr.mxu0 0.0
        %4291 = vmatpush1.msra.mxu0 %v4282
        %4292 = vmatprep.subr.mxu0 0.0
        %4293 = vmatpush1.msra.mxu0 0.0
        %4294 = vmatprep.subr.mxu0 0.0
        %4295 = vmatpush1.msra.mxu0 0.0
        %4296 = vmatprep.subr.mxu0 0.0
        %4297 = vmatpush1.msra.mxu0 0.0
        %4298 = vmatprep.subr.mxu0 0.0
        %4299 = vmatpush1.msra.mxu0 0.0
        %4300 = vmatprep.subr.mxu0 0.0
        %4301 = vmatpush1.msra.mxu0 0.0
        %4302 = vmatprep.subr.mxu0 0.0
        %4303 = vmatpush1.msra.mxu0 0.0
        %4304 = vmatprep.subr.mxu0 0.0
        %4305 = vmatpush1.msra.mxu0 0.0
        %4306 = vmatprep.subr.mxu0 0.0
        %4307 = vmatpush1.msra.mxu0 0.0
        %4308 = vmatprep.subr.mxu0 0.0
        %4309 = vmatpush1.msra.mxu0 0.0
        %4310 = vmatprep.subr.mxu0 0.0
        %4311 = vmatpush1.msra.mxu0 0.0
        %4312 = vmatprep.subr.mxu0 0.0
        %4313 = vmatpush1.msra.mxu0 0.0
        %4314 = vmatprep.subr.mxu0 0.0
        %4315 = vmatpush1.msra.mxu0 0.0
        %4316 = vmatprep.subr.mxu0 0.0
        %4317 = vmatpush1.msra.mxu0 0.0
        %4318 = vmatprep.subr.mxu0 0.0
        %4319 = vmatpush1.msra.mxu0 0.0
        %4320 = vmatprep.subr.mxu0 0.0
        %4321 = vmatpush1.msra.mxu0 0.0
        %4322 = vmatprep.subr.mxu0 0.0
        %4323 = vmatpush1.msra.mxu0 0.0
        %4324 = vmatprep.subr.mxu0 0.0
        %4325 = vmatpush1.msra.mxu0 0.0
        %4326 = vmatprep.subr.mxu0 0.0
        %4327 = vmatpush1.msra.mxu0 0.0
        %4328 = vmatprep.subr.mxu0 0.0
        %4329 = vmatpush1.msra.mxu0 0.0
        %4330 = vmatprep.subr.mxu0 0.0
        %4331 = vmatpush1.msra.mxu0 0.0
        %4332 = vmatprep.subr.mxu0 0.0
        %4333 = vmatpush1.msra.mxu0 0.0
        %4334 = vmatprep.subr.mxu0 0.0
        %4335 = vmatpush1.msra.mxu0 0.0
        %4336 = vmatprep.subr.mxu0 0.0
        %4337 = vmatpush1.msra.mxu0 0.0
        %4338 = vmatprep.subr.mxu0 0.0
        %4339 = vmatpush1.msra.mxu0 0.0
        %4340 = vmatprep.subr.mxu0 0.0
        %4341 = vmatpush1.msra.mxu0 0.0
        %4342 = vmatprep.subr.mxu0 0.0
        %4343 = vmatpush1.msra.mxu0 0.0
        %4344 = vmatprep.subr.mxu0 0.0
        %4345 = vmatpush1.msra.mxu0 0.0
        %4346 = vmatprep.subr.mxu0 0.0
        %4347 = vmatpush1.msra.mxu0 0.0
        %4348 = vmatprep.subr.mxu0 0.0
        %4349 = vmatpush1.msra.mxu0 0.0
        %4350 = vmatprep.subr.mxu0 0.0
        %4351 = vmatpush1.msra.mxu0 0.0
        %4352 = vmatprep.mubr.f32.mxu0 0.0
        %4353 = vmatmul.mubr.f32.gmra.mrb[0].mxu0 %v4286
        %v4354 = vpop.f32.mrb[0].mxu0
        %v4355 = vadd.f32 0.0, %v4354
        %v4356 = vpop.f32.mrb[0].mxu0
        %4357 = vdwg.mxu0
        %4358 = vrot.lane.b32.xlu0 %v3037, 72
        %v4359 = vpop.permute.xlu0 %4358
        %4360 = vrot.lane.b32.xlu0 %v3042, 72
        %v4361 = vpop.permute.xlu0 %4360
        %v4365 = vsel %vm2691, %v4278, 0
        %4367 = vmatprep.subr.mxu0 0.0
        %4368 = vmatpush1.msra.mxu0 %v4359
        %4369 = vmatprep.subr.mxu0 0.0
        %4370 = vmatpush1.msra.mxu0 %v4361
        %4371 = vmatprep.subr.mxu0 0.0
        %4372 = vmatpush1.msra.mxu0 0.0
        %4373 = vmatprep.subr.mxu0 0.0
        %4374 = vmatpush1.msra.mxu0 0.0
        %4375 = vmatprep.subr.mxu0 0.0
        %4376 = vmatpush1.msra.mxu0 0.0
        %4377 = vmatprep.subr.mxu0 0.0
        %4378 = vmatpush1.msra.mxu0 0.0
        %4379 = vmatprep.subr.mxu0 0.0
        %4380 = vmatpush1.msra.mxu0 0.0
        %4381 = vmatprep.subr.mxu0 0.0
        %4382 = vmatpush1.msra.mxu0 0.0
        %4383 = vmatprep.subr.mxu0 0.0
        %4384 = vmatpush1.msra.mxu0 0.0
        %4385 = vmatprep.subr.mxu0 0.0
        %4386 = vmatpush1.msra.mxu0 0.0
        %4387 = vmatprep.subr.mxu0 0.0
        %4388 = vmatpush1.msra.mxu0 0.0
        %4389 = vmatprep.subr.mxu0 0.0
        %4390 = vmatpush1.msra.mxu0 0.0
        %4391 = vmatprep.subr.mxu0 0.0
        %4392 = vmatpush1.msra.mxu0 0.0
        %4393 = vmatprep.subr.mxu0 0.0
        %4394 = vmatpush1.msra.mxu0 0.0
        %4395 = vmatprep.subr.mxu0 0.0
        %4396 = vmatpush1.msra.mxu0 0.0
        %4397 = vmatprep.subr.mxu0 0.0
        %4398 = vmatpush1.msra.mxu0 0.0
        %4399 = vmatprep.subr.mxu0 0.0
        %4400 = vmatpush1.msra.mxu0 0.0
        %4401 = vmatprep.subr.mxu0 0.0
        %4402 = vmatpush1.msra.mxu0 0.0
        %4403 = vmatprep.subr.mxu0 0.0
        %4404 = vmatpush1.msra.mxu0 0.0
        %4405 = vmatprep.subr.mxu0 0.0
        %4406 = vmatpush1.msra.mxu0 0.0
        %4407 = vmatprep.subr.mxu0 0.0
        %4408 = vmatpush1.msra.mxu0 0.0
        %4409 = vmatprep.subr.mxu0 0.0
        %4410 = vmatpush1.msra.mxu0 0.0
        %4411 = vmatprep.subr.mxu0 0.0
        %4412 = vmatpush1.msra.mxu0 0.0
        %4413 = vmatprep.subr.mxu0 0.0
        %4414 = vmatpush1.msra.mxu0 0.0
        %4415 = vmatprep.subr.mxu0 0.0
        %4416 = vmatpush1.msra.mxu0 0.0
        %4417 = vmatprep.subr.mxu0 0.0
        %4418 = vmatpush1.msra.mxu0 0.0
        %4419 = vmatprep.subr.mxu0 0.0
        %4420 = vmatpush1.msra.mxu0 0.0
        %4421 = vmatprep.subr.mxu0 0.0
        %4422 = vmatpush1.msra.mxu0 0.0
        %4423 = vmatprep.subr.mxu0 0.0
        %4424 = vmatpush1.msra.mxu0 0.0
        %4425 = vmatprep.subr.mxu0 0.0
        %4426 = vmatpush1.msra.mxu0 0.0
        %4427 = vmatprep.subr.mxu0 0.0
        %4428 = vmatpush1.msra.mxu0 0.0
        %4429 = vmatprep.subr.mxu0 0.0
        %4430 = vmatpush1.msra.mxu0 0.0
        %4431 = vmatprep.mubr.f32.mxu0 0.0
        %4432 = vmatmul.mubr.f32.gmra.mrb[0].mxu0 %v4365
        %v4433 = vpop.f32.mrb[0].mxu0
        %v4434 = vadd.f32 0.0, %v4433
        %v4435 = vpop.f32.mrb[0].mxu0
        %4436 = vdwg.mxu0
        %4439 = vrot.lane.b32.xlu0 %v3659, 8
        %v4440 = vpop.permute.xlu0 %4439
        %4441 = vrot.lane.b32.xlu0 %v3738, 8
        %v4442 = vpop.permute.xlu0 %4441
        %4447 = vrot.lane.b32.xlu0 %v4007, 16
        %v4448 = vpop.permute.xlu0 %4447
        %4449 = vrot.lane.b32.xlu0 %v4086, 16
        %v4450 = vpop.permute.xlu0 %4449
        %4455 = vrot.lane.b32.xlu0 %v4355, 24
        %v4456 = vpop.permute.xlu0 %4455
        %4457 = vrot.lane.b32.xlu0 %v4434, 24
        %v4458 = vpop.permute.xlu0 %4457
        %v4461 = vsel %vm1327, %v3311, %v4440
        %v4462 = vsel %vm1327, %v3390, %v4442
        %v4463 = vsel %vm2691, %v4461, %v4448
        %v4464 = vsel %vm2691, %v4462, %v4450
        %v4465 = vsel %vm2694, %v4463, %v4456
        %v4466 = vsel %vm2694, %v4464, %v4458
        %v4467 = vld [vmem:[%s968] sm:$0xff]
        %v4468 = vld [vmem:[%s968 + $0x8] sm:$0xff]
        %v4469 = vld [vmem:[%s968 + $0x10] sm:$0xff]
        %v4470 = vld [vmem:[%s968 + $0x18] sm:$0xff]
        %v4472 = vsel %vm1178, %v4465, 0
        %v4475 = vsel %vm1178, %v4466, 0
        %4477 = vmatprep.subr.mxu0 0.0
        %4478 = vmatpush1.msra.mxu0 %v4467
        %4479 = vmatprep.subr.mxu0 0.0
        %4480 = vmatpush1.msra.mxu0 %v4468
        %4481 = vmatprep.subr.mxu0 0.0
        %4482 = vmatpush1.msra.mxu0 %v4469
        %4483 = vmatprep.subr.mxu0 0.0
        %4484 = vmatpush1.msra.mxu0 %v4470
        %4485 = vmatprep.subr.mxu0 0.0
        %4486 = vmatpush1.msra.mxu0 0.0
        %4487 = vmatprep.subr.mxu0 0.0
        %4488 = vmatpush1.msra.mxu0 0.0
        %4489 = vmatprep.subr.mxu0 0.0
        %4490 = vmatpush1.msra.mxu0 0.0
        %4491 = vmatprep.subr.mxu0 0.0
        %4492 = vmatpush1.msra.mxu0 0.0
        %4493 = vmatprep.subr.mxu0 0.0
        %4494 = vmatpush1.msra.mxu0 0.0
        %4495 = vmatprep.subr.mxu0 0.0
        %4496 = vmatpush1.msra.mxu0 0.0
        %4497 = vmatprep.subr.mxu0 0.0
        %4498 = vmatpush1.msra.mxu0 0.0
        %4499 = vmatprep.subr.mxu0 0.0
        %4500 = vmatpush1.msra.mxu0 0.0
        %4501 = vmatprep.subr.mxu0 0.0
        %4502 = vmatpush1.msra.mxu0 0.0
        %4503 = vmatprep.subr.mxu0 0.0
        %4504 = vmatpush1.msra.mxu0 0.0
        %4505 = vmatprep.subr.mxu0 0.0
        %4506 = vmatpush1.msra.mxu0 0.0
        %4507 = vmatprep.subr.mxu0 0.0
        %4508 = vmatpush1.msra.mxu0 0.0
        %4509 = vmatprep.subr.mxu0 0.0
        %4510 = vmatpush1.msra.mxu0 0.0
        %4511 = vmatprep.subr.mxu0 0.0
        %4512 = vmatpush1.msra.mxu0 0.0
        %4513 = vmatprep.subr.mxu0 0.0
        %4514 = vmatpush1.msra.mxu0 0.0
        %4515 = vmatprep.subr.mxu0 0.0
        %4516 = vmatpush1.msra.mxu0 0.0
        %4517 = vmatprep.subr.mxu0 0.0
        %4518 = vmatpush1.msra.mxu0 0.0
        %4519 = vmatprep.subr.mxu0 0.0
        %4520 = vmatpush1.msra.mxu0 0.0
        %4521 = vmatprep.subr.mxu0 0.0
        %4522 = vmatpush1.msra.mxu0 0.0
        %4523 = vmatprep.subr.mxu0 0.0
        %4524 = vmatpush1.msra.mxu0 0.0
        %4525 = vmatprep.subr.mxu0 0.0
        %4526 = vmatpush1.msra.mxu0 0.0
        %4527 = vmatprep.subr.mxu0 0.0
        %4528 = vmatpush1.msra.mxu0 0.0
        %4529 = vmatprep.subr.mxu0 0.0
        %4530 = vmatpush1.msra.mxu0 0.0
        %4531 = vmatprep.subr.mxu0 0.0
        %4532 = vmatpush1.msra.mxu0 0.0
        %4533 = vmatprep.subr.mxu0 0.0
        %4534 = vmatpush1.msra.mxu0 0.0
        %4535 = vmatprep.subr.mxu0 0.0
        %4536 = vmatpush1.msra.mxu0 0.0
        %4537 = vmatprep.subr.mxu0 0.0
        %4538 = vmatpush1.msra.mxu0 0.0
        %4539 = vmatprep.subr.mxu0 0.0
        %4540 = vmatpush1.msra.mxu0 0.0
        %4541 = vmatprep.mubr.f32.mxu0 0.0
        %4542 = vmatmul.mubr.f32.gmra.mrb[0].mxu0 %v4472
        %v4543 = vpop.f32.mrb[0].mxu0
        %v4544 = vadd.f32 0.0, %v4543
        %v4545 = vpop.f32.mrb[0].mxu0
        %4546 = vmatprep.mubr.f32.mxu0 0.0
        %4547 = vmatmul.mubr.f32.gmra.mrb[0].mxu0 %v4475
        %v4548 = vpop.f32.mrb[0].mxu0
        %v4549 = vadd.f32 0.0, %v4548
        %v4550 = vpop.f32.mrb[0].mxu0
        %4551 = vdwg.mxu0
        %v4552 = vadd.f32 %v2791, %v4544
        %v4553 = vadd.f32 %v2792, %v4549
        %v4554 = vld [vmem:[%s976] sm:$0x1]
        %v4556 = vlaneseq
        %v4557 = vshrl.u32 %v4556, 7
        %v4558 = vsub.s32 0, %v4557
        %v4559 = vrot.slane %v4554, %v4558
        %v4561 = vadd.f32 %v4552, %v4559
        %v4562 = vadd.f32 %v4553, %v4559
        %v4563 = vsel %vm1178, %v4561, 0.0
        %4564 = vadd.xlane.f32.xlu0 %v4563
        %v4565 = vpop.xlane.xlu0 %4564
        %v4566 = vsel %vm1178, %v4562, 0.0
        %4567 = vadd.xlane.f32.xlu0 %v4566
        %v4568 = vpop.xlane.xlu0 %4567
        %v4569 = vmul.f32 %v4565, %v1185
        %v4570 = vmul.f32 %v4568, %v1185
        %v4571 = vsub.f32 %v4561, %v4569
        %v4572 = vsub.f32 %v4562, %v4570
        %v4573 = vmul.f32 %v4571, %v4571
        %v4574 = vmul.f32 %v4572, %v4572
        %v4575 = vsel %vm1178, %v4573, 0.0
        %4576 = vadd.xlane.f32.xlu0 %v4575
        %v4577 = vpop.xlane.xlu0 %4576
        %v4578 = vsel %vm1178, %v4574, 0.0
        %4579 = vadd.xlane.f32.xlu0 %v4578
        %v4580 = vpop.xlane.xlu0 %4579
        %v4581 = vmul.f32 %v4577, 0.032258064
        %v4582 = vmul.f32 %v4580, 0.032258064
        %v4583 = vrsqrt.pop %v4581
        %v4584 = vmul.f32 %v4581, %v4583
        %vm4585 = vcmp.eq.f32.partialorder %v4581, inf
        %v4586 = vsel %vm4585, %v4581, %v4584
        %vm4587 = vcmp.eq.f32.partialorder %v4581, 0.0
        %v4588 = vand.u32 %v4581, 2147483648
        %v4589 = vsel %vm4587, %v4588, %v4586
        %v4590 = vrsqrt.pop %v4582
        %v4591 = vmul.f32 %v4582, %v4590
        %vm4592 = vcmp.eq.f32.partialorder %v4582, inf
        %v4593 = vsel %vm4592, %v4582, %v4591
        %vm4594 = vcmp.eq.f32.partialorder %v4582, 0.0
        %v4595 = vand.u32 %v4582, 2147483648
        %v4596 = vsel %vm4594, %v4595, %v4593
        %v4597 = vadd.f32 %v4589, 1e-06
        %v4598 = vadd.f32 %v4596, 1e-06
        %v4599 = vrcp.pop %v4597
        %v4600 = vrcp.pop %v4598
        %v4601 = vlaneseq
        %v4602 = vshrl.u32 %v4601, 7
        %v4603 = vsub.s32 2, %v4602
        %v4604 = vrot.slane %v1176, %v4603
        %v4605 = vmul.f32 %v4604, %v4571
        %v4606 = vmul.f32 %v4604, %v4572
        %v4607 = vmul.f32 %v4605, %v4599
        %v4608 = vmul.f32 %v4606, %v4600
        %v4609 = vlaneseq
        %v4610 = vshrl.u32 %v4609, 7
        %v4611 = vsub.s32 2, %v4610
        %v4612 = vrot.slane %v1177, %v4611
        %v4613 = vadd.f32 %v4607, %v4612
        %v4614 = vadd.f32 %v4608, %v4612
        %v4615 = vld [vmem:[%s985] sm:$0xff]
        %v4616 = vld [vmem:[%s985 + $0x8] sm:$0xff]
        %v4617 = vld [vmem:[%s985 + $0x10] sm:$0xff]
        %v4618 = vld [vmem:[%s985 + $0x18] sm:$0xff]
        %v4619 = vld [vmem:[%s993] sm:$0x1]
        %v4621 = vlaneseq
        %v4622 = vshrl.u32 %v4621, 7
        %v4623 = vsub.s32 0, %v4622
        %v4624 = vrot.slane %v4619, %v4623
        %v4627 = vsel %vm1178, %v4613, 0
        %v4630 = vsel %vm1178, %v4614, 0
        %4632 = vmatprep.subr.mxu0 0.0
        %4633 = vmatpush1.msra.mxu0 %v4615
        %4634 = vmatprep.subr.mxu0 0.0
        %4635 = vmatpush1.msra.mxu0 %v4616
        %4636 = vmatprep.subr.mxu0 0.0
        %4637 = vmatpush1.msra.mxu0 %v4617
        %4638 = vmatprep.subr.mxu0 0.0
        %4639 = vmatpush1.msra.mxu0 %v4618
        %4640 = vmatprep.subr.mxu0 0.0
        %4641 = vmatpush1.msra.mxu0 0.0
        %4642 = vmatprep.subr.mxu0 0.0
        %4643 = vmatpush1.msra.mxu0 0.0
        %4644 = vmatprep.subr.mxu0 0.0
        %4645 = vmatpush1.msra.mxu0 0.0
        %4646 = vmatprep.subr.mxu0 0.0
        %4647 = vmatpush1.msra.mxu0 0.0
        %4648 = vmatprep.subr.mxu0 0.0
        %4649 = vmatpush1.msra.mxu0 0.0
        %4650 = vmatprep.subr.mxu0 0.0
        %4651 = vmatpush1.msra.mxu0 0.0
        %4652 = vmatprep.subr.mxu0 0.0
        %4653 = vmatpush1.msra.mxu0 0.0
        %4654 = vmatprep.subr.mxu0 0.0
        %4655 = vmatpush1.msra.mxu0 0.0
        %4656 = vmatprep.subr.mxu0 0.0
        %4657 = vmatpush1.msra.mxu0 0.0
        %4658 = vmatprep.subr.mxu0 0.0
        %4659 = vmatpush1.msra.mxu0 0.0
        %4660 = vmatprep.subr.mxu0 0.0
        %4661 = vmatpush1.msra.mxu0 0.0
        %4662 = vmatprep.subr.mxu0 0.0
        %4663 = vmatpush1.msra.mxu0 0.0
        %4664 = vmatprep.subr.mxu0 0.0
        %4665 = vmatpush1.msra.mxu0 0.0
        %4666 = vmatprep.subr.mxu0 0.0
        %4667 = vmatpush1.msra.mxu0 0.0
        %4668 = vmatprep.subr.mxu0 0.0
        %4669 = vmatpush1.msra.mxu0 0.0
        %4670 = vmatprep.subr.mxu0 0.0
        %4671 = vmatpush1.msra.mxu0 0.0
        %4672 = vmatprep.subr.mxu0 0.0
        %4673 = vmatpush1.msra.mxu0 0.0
        %4674 = vmatprep.subr.mxu0 0.0
        %4675 = vmatpush1.msra.mxu0 0.0
        %4676 = vmatprep.subr.mxu0 0.0
        %4677 = vmatpush1.msra.mxu0 0.0
        %4678 = vmatprep.subr.mxu0 0.0
        %4679 = vmatpush1.msra.mxu0 0.0
        %4680 = vmatprep.subr.mxu0 0.0
        %4681 = vmatpush1.msra.mxu0 0.0
        %4682 = vmatprep.subr.mxu0 0.0
        %4683 = vmatpush1.msra.mxu0 0.0
        %4684 = vmatprep.subr.mxu0 0.0
        %4685 = vmatpush1.msra.mxu0 0.0
        %4686 = vmatprep.subr.mxu0 0.0
        %4687 = vmatpush1.msra.mxu0 0.0
        %4688 = vmatprep.subr.mxu0 0.0
        %4689 = vmatpush1.msra.mxu0 0.0
        %4690 = vmatprep.subr.mxu0 0.0
        %4691 = vmatpush1.msra.mxu0 0.0
        %4692 = vmatprep.subr.mxu0 0.0
        %4693 = vmatpush1.msra.mxu0 0.0
        %4694 = vmatprep.subr.mxu0 0.0
        %4695 = vmatpush1.msra.mxu0 0.0
        %4696 = vmatprep.mubr.f32.mxu0 0.0
        %4697 = vmatmul.mubr.f32.gmra.mrb[0].mxu0 %v4627
        %v4698 = vpop.f32.mrb[0].mxu0
        %v4699 = vadd.f32 %v4624, %v4698
        %v4700 = vpop.f32.mrb[0].mxu0
        %4701 = vmatprep.mubr.f32.mxu0 0.0
        %4702 = vmatmul.mubr.f32.gmra.mrb[0].mxu0 %v4630
        %v4703 = vpop.f32.mrb[0].mxu0
        %v4704 = vadd.f32 %v4624, %v4703
        %v4705 = vpop.f32.mrb[0].mxu0
        %4706 = vdwg.mxu0
        %v4707 = vmax.f32 %v4699, 0.0
        %v4708 = vmax.f32 %v4704, 0.0
        %v4709 = vld [vmem:[%s1142] sm:$0xff]
        %v4710 = vld [vmem:[%s1142 + $0x8] sm:$0xff]
        %v4711 = vld [vmem:[%s1142 + $0x10] sm:$0xff]
        %v4712 = vld [vmem:[%s1142 + $0x18] sm:$0xff]
        %v4713 = vld [vmem:[%s1142 + $0x20] sm:$0xff]
        %v4714 = vld [vmem:[%s1142 + $0x28] sm:$0xff]
        %v4715 = vld [vmem:[%s1142 + $0x30] sm:$0xff]
        %v4716 = vld [vmem:[%s1142 + $0x38] sm:$0xff]
        %vm4717 = vcmask 523264
        %v4719 = vsel %vm4717, %v4707, 0
        %v4722 = vsel %vm4717, %v4708, 0
        %4724 = vmatprep.subr.mxu0 0.0
        %4725 = vmatpush1.msra.mxu0 %v4709
        %4726 = vmatprep.subr.mxu0 0.0
        %4727 = vmatpush1.msra.mxu0 %v4710
        %4728 = vmatprep.subr.mxu0 0.0
        %4729 = vmatpush1.msra.mxu0 %v4711
        %4730 = vmatprep.subr.mxu0 0.0
        %4731 = vmatpush1.msra.mxu0 %v4712
        %4732 = vmatprep.subr.mxu0 0.0
        %4733 = vmatpush1.msra.mxu0 %v4713
        %4734 = vmatprep.subr.mxu0 0.0
        %4735 = vmatpush1.msra.mxu0 %v4714
        %4736 = vmatprep.subr.mxu0 0.0
        %4737 = vmatpush1.msra.mxu0 %v4715
        %4738 = vmatprep.subr.mxu0 0.0
        %4739 = vmatpush1.msra.mxu0 %v4716
        %4740 = vmatprep.subr.mxu0 0.0
        %4741 = vmatpush1.msra.mxu0 0.0
        %4742 = vmatprep.subr.mxu0 0.0
        %4743 = vmatpush1.msra.mxu0 0.0
        %4744 = vmatprep.subr.mxu0 0.0
        %4745 = vmatpush1.msra.mxu0 0.0
        %4746 = vmatprep.subr.mxu0 0.0
        %4747 = vmatpush1.msra.mxu0 0.0
        %4748 = vmatprep.subr.mxu0 0.0
        %4749 = vmatpush1.msra.mxu0 0.0
        %4750 = vmatprep.subr.mxu0 0.0
        %4751 = vmatpush1.msra.mxu0 0.0
        %4752 = vmatprep.subr.mxu0 0.0
        %4753 = vmatpush1.msra.mxu0 0.0
        %4754 = vmatprep.subr.mxu0 0.0
        %4755 = vmatpush1.msra.mxu0 0.0
        %4756 = vmatprep.subr.mxu0 0.0
        %4757 = vmatpush1.msra.mxu0 0.0
        %4758 = vmatprep.subr.mxu0 0.0
        %4759 = vmatpush1.msra.mxu0 0.0
        %4760 = vmatprep.subr.mxu0 0.0
        %4761 = vmatpush1.msra.mxu0 0.0
        %4762 = vmatprep.subr.mxu0 0.0
        %4763 = vmatpush1.msra.mxu0 0.0
        %4764 = vmatprep.subr.mxu0 0.0
        %4765 = vmatpush1.msra.mxu0 0.0
        %4766 = vmatprep.subr.mxu0 0.0
        %4767 = vmatpush1.msra.mxu0 0.0
        %4768 = vmatprep.subr.mxu0 0.0
        %4769 = vmatpush1.msra.mxu0 0.0
        %4770 = vmatprep.subr.mxu0 0.0
        %4771 = vmatpush1.msra.mxu0 0.0
        %4772 = vmatprep.subr.mxu0 0.0
        %4773 = vmatpush1.msra.mxu0 0.0
        %4774 = vmatprep.subr.mxu0 0.0
        %4775 = vmatpush1.msra.mxu0 0.0
        %4776 = vmatprep.subr.mxu0 0.0
        %4777 = vmatpush1.msra.mxu0 0.0
        %4778 = vmatprep.subr.mxu0 0.0
        %4779 = vmatpush1.msra.mxu0 0.0
        %4780 = vmatprep.subr.mxu0 0.0
        %4781 = vmatpush1.msra.mxu0 0.0
        %4782 = vmatprep.subr.mxu0 0.0
        %4783 = vmatpush1.msra.mxu0 0.0
        %4784 = vmatprep.subr.mxu0 0.0
        %4785 = vmatpush1.msra.mxu0 0.0
        %4786 = vmatprep.subr.mxu0 0.0
        %4787 = vmatpush1.msra.mxu0 0.0
        %4788 = vmatprep.mubr.f32.mxu0 0.0
        %4789 = vmatmul.mubr.f32.gmra.mrb[0].mxu0 %v4719
        %v4790 = vpop.f32.mrb[0].mxu0
        %v4791 = vadd.f32 0.0, %v4790
        %v4792 = vpop.f32.mrb[0].mxu0
        %4793 = vmatprep.mubr.f32.mxu0 0.0
        %4794 = vmatmul.mubr.f32.gmra.mrb[0].mxu0 %v4722
        %v4795 = vpop.f32.mrb[0].mxu0
        %v4796 = vadd.f32 0.0, %v4795
        %v4797 = vpop.f32.mrb[0].mxu0
        %4798 = vdwg.mxu0
        %v4799 = vadd.f32 %v4561, %v4791
        %v4800 = vadd.f32 %v4562, %v4796
        %v4801 = vld [vmem:[%s1001] sm:$0x1]
        %v4803 = vlaneseq
        %v4804 = vshrl.u32 %v4803, 7
        %v4805 = vsub.s32 0, %v4804
        %v4806 = vrot.slane %v4801, %v4805
        %v4808 = vadd.f32 %v4799, %v4806
        %v4809 = vadd.f32 %v4800, %v4806
        %4810 = vst.msk [vmem:[#allocation2] sm:$0xff] %vm1178, %v4808
        %4811 = vst.msk [vmem:[#allocation2 + $0x8] sm:$0xff] %vm1178, %v4809
        %p4812 = scmp.eq.s32.totalorder %s51, 1
        // Predicated region
        $region165: #{tpu_custom_call.1} parent=107 // pred_check
          %p4813 = pneg %p4812
        $region166: #{tpu_custom_call.1} parent=107 // pred_check_branch
          %4815 = sbr.rel (%p4813) target = $region168
        $region167: #{tpu_custom_call.1} parent=107 // pred_region
          %v4816 = vld [vmem:[%s20] sm:$0x1]
          %v4817 = vld [vmem:[%s21] sm:$0x1]
          %v4818 = vsel %vm1178, %v4808, 0.0
          %4819 = vadd.xlane.f32.xlu0 %v4818
          %v4820 = vpop.xlane.xlu0 %4819
          %v4821 = vsel %vm1178, %v4809, 0.0
          %4822 = vadd.xlane.f32.xlu0 %v4821
          %v4823 = vpop.xlane.xlu0 %4822
          %v4824 = vmul.f32 %v4820, %v1185
          %v4825 = vmul.f32 %v4823, %v1185
          %v4826 = vsub.f32 %v4808, %v4824
          %v4827 = vsub.f32 %v4809, %v4825
          %v4828 = vmul.f32 %v4826, %v4826
          %v4829 = vmul.f32 %v4827, %v4827
          %v4830 = vsel %vm1178, %v4828, 0.0
          %4831 = vadd.xlane.f32.xlu0 %v4830
          %v4832 = vpop.xlane.xlu0 %4831
          %v4833 = vsel %vm1178, %v4829, 0.0
          %4834 = vadd.xlane.f32.xlu0 %v4833
          %v4835 = vpop.xlane.xlu0 %4834
          %v4836 = vmul.f32 %v4832, 0.032258064
          %v4837 = vmul.f32 %v4835, 0.032258064
          %v4838 = vrsqrt.pop %v4836
          %v4839 = vmul.f32 %v4836, %v4838
          %vm4840 = vcmp.eq.f32.partialorder %v4836, inf
          %v4841 = vsel %vm4840, %v4836, %v4839
          %vm4842 = vcmp.eq.f32.partialorder %v4836, 0.0
          %v4843 = vand.u32 %v4836, 2147483648
          %v4844 = vsel %vm4842, %v4843, %v4841
          %v4845 = vrsqrt.pop %v4837
          %v4846 = vmul.f32 %v4837, %v4845
          %vm4847 = vcmp.eq.f32.partialorder %v4837, inf
          %v4848 = vsel %vm4847, %v4837, %v4846
          %vm4849 = vcmp.eq.f32.partialorder %v4837, 0.0
          %v4850 = vand.u32 %v4837, 2147483648
          %v4851 = vsel %vm4849, %v4850, %v4848
          %v4852 = vadd.f32 %v4844, 1e-06
          %v4853 = vadd.f32 %v4851, 1e-06
          %v4854 = vrcp.pop %v4852
          %v4855 = vrcp.pop %v4853
          %v4857 = vlaneseq
          %v4858 = vshrl.u32 %v4857, 7
          %v4859 = vsub.s32 0, %v4858
          %v4860 = vrot.slane %v4816, %v4859
          %v4862 = vmul.f32 %v4860, %v4826
          %v4863 = vmul.f32 %v4860, %v4827
          %v4864 = vmul.f32 %v4862, %v4854
          %v4865 = vmul.f32 %v4863, %v4855
          %v4867 = vlaneseq
          %v4868 = vshrl.u32 %v4867, 7
          %v4869 = vsub.s32 0, %v4868
          %v4870 = vrot.slane %v4817, %v4869
          %v4872 = vadd.f32 %v4864, %v4870
          %v4873 = vadd.f32 %v4865, %v4870
          %4874 = vst.msk [vmem:[#allocation24] sm:$0xff] %vm1178, %v4872
          %4875 = vst.msk [vmem:[#allocation24 + $0x8] sm:$0xff] %vm1178, %v4873
        $region168: #{tpu_custom_call.1} parent=107 // pred_fallthru
          _
        // Predicated region
        $region169: #{tpu_custom_call.1} parent=107 // pred_check
          %p4876 = pneg %p606
        $region170: #{tpu_custom_call.1} parent=107 // pred_check_branch
          %4878 = sbr.rel (%p4876) target = $region172
        $region171: #{tpu_custom_call.1} parent=107 // pred_region
          %s4880 = ssub.s32 256, 256
          %4881 = vsyncadd [#allocation5], %s4880
          %s4882 = sshll.u32 [#allocation24], 4
          %s4883 = int_to_ptr.vmem [resolvable:$true] %s4882
          %4888 = dma.vmem_to_hbm [thread:$0]  %s4883, 256, %s22, [#allocation5], 128, 128, 8
        $region172: #{tpu_custom_call.1} parent=107 // pred_fallthru
          _
        // Predicated region
        $region173: #{tpu_custom_call.1} parent=107 // pred_check
          %p4889 = pneg %p606
        $region174: #{tpu_custom_call.1} parent=107 // pred_check_branch
          %4891 = sbr.rel (%p4889) target = $region176
        $region175: #{tpu_custom_call.1} parent=107 // pred_region
          %4892 = dma.done [#allocation5], 256
        $region176: #{tpu_custom_call.1} parent=107 // pred_fallthru
          _
      $region108: #{tpu_custom_call.1} parent=5 // pred_fallthru
        _
      %p4893 = scmp.le.s32.totalorder 2, %s46
      // Predicated region
      $region177: #{tpu_custom_call.1} parent=5 // pred_check
        %p4894 = pneg %p4893
      $region178: #{tpu_custom_call.1} parent=5 // pred_check_branch
        %4896 = sbr.rel (%p4894) target = $region180
      $region179: #{tpu_custom_call.1} parent=5 // pred_region
        %s4897 = ssub.s32 %s46, 2
      $region180: #{tpu_custom_call.1} parent=5 // pred_fallthru
        _
    $region6: #{tpu_custom_call.1} parent=1 // loop_footer
      %s50 = sadd.s32 1, %s46
    $region7: #{tpu_custom_call.1} parent=1 // loop_footer_branch
      %45 = sbr.rel target = $region3
    $region8: #{tpu_custom_call.1} parent=1 // loop_exit
      _
    %4898 = vsyncpa [#allocation4], 1
    %s4899 = scalar_lea.sflag [#allocation4], 1
    %4900 = vsyncpa %s4899, 1
    %4901 = vsyncpa [#allocation7], 1
    %4902 = vsyncpa [#allocation10], 1
    %s4903 = scalar_lea.sflag [#allocation10], 1
    %4904 = vsyncpa %s4903, 1
    %4905 = vsyncpa [#allocation13], 1
    %s4906 = scalar_lea.sflag [#allocation13], 1
    %4907 = vsyncpa %s4906, 1
    %4908 = vsyncpa [#allocation16], 1
    %s4909 = scalar_lea.sflag [#allocation16], 1
    %4910 = vsyncpa %s4909, 1
    %4911 = vsyncpa [#allocation19], 1
    %s4912 = scalar_lea.sflag [#allocation19], 1
    %4913 = vsyncpa %s4912, 1
    %4914 = vsyncpa [#allocation22], 1
    %s4915 = scalar_lea.sflag [#allocation22], 1
    %4916 = vsyncpa %s4915, 1
    %4917 = vsyncpa [#allocation5], 1
    %s4918 = scalar_lea.sflag [#allocation5], 1
    %4919 = vsyncpa %s4918, 1

</llo_original>
